<compile_context>
chip_gen: v7x
topology: tpu7x:2x2x1
jax: 0.10.0
libtpu: 0.0.40
codegen_flags: <defaults>
</compile_context>

<pallas_src>
import numpy as np
import jax
import jax.numpy as jnp
from jax.experimental import pallas as pl
from jax.experimental.pallas import tpu as pltpu


# ---------------------------------------------------------------------------
# Fused Pallas kernel
# ---------------------------------------------------------------------------

def make_psiamese_kernel(L, T, B, H):
    """Build the fused forward kernel for num_layers=L, seq_len=T, batch=B, hidden=H."""
    H4 = 4 * H

    def lstm_cell(gates, c_prev):
        # gates: (B, 4H) in PyTorch order i, f, g, o
        i_g = jax.nn.sigmoid(gates[:, 0:H])
        f_g = jax.nn.sigmoid(gates[:, H:2 * H])
        g_g = jnp.tanh(gates[:, 2 * H:3 * H])
        o_g = jax.nn.sigmoid(gates[:, 3 * H:4 * H])
        c_new = f_g * c_prev + i_g * g_g
        h_new = o_g * jnp.tanh(c_new)
        return h_new, c_new

    def kernel(*refs):
        (xs_ref, w1_ref, b1_ref, w2_ref, b2_ref, w3_ref, b3_ref,
         w4_ref, b4_ref, xa_ref) = refs[:10]
        lstm_refs = refs[10:10 + 4 * L]
        (h0_ref, c0_ref, wfc_ref, bfc_ref, wfa_ref, bfa_ref) = refs[10 + 4 * L:16 + 4 * L]
        out1_ref = refs[16 + 4 * L]
        out2_ref = refs[17 + 4 * L]

        # ------------- smart branch: NN -> relu_smart_1 -> fc_smart -------------
        h = jnp.maximum(
            jnp.dot(xs_ref[...], w1_ref[...], preferred_element_type=jnp.float32)
            + b1_ref[...], 0.0)
        h = jnp.maximum(
            jnp.dot(h, w2_ref[...], preferred_element_type=jnp.float32) + b2_ref[...], 0.0)
        # layer3 (no relu inside NN) followed by relu_smart_1 == relu(layer3(.))
        h = jnp.maximum(
            jnp.dot(h, w3_ref[...], preferred_element_type=jnp.float32) + b3_ref[...], 0.0)
        out1_ref[...] = (jnp.dot(h, w4_ref[...], preferred_element_type=jnp.float32)
                         + b4_ref[...])

        # ------------- aging branch: bidirectional multi-layer LSTM -------------
        cur = xa_ref[...]                                    # (T*B, Din), row index t*B + b
        hf = hb = None
        for layer in range(L):
            wih_ref, whhf_ref, whhb_ref, bg_ref = lstm_refs[4 * layer:4 * layer + 4]

            # Hoisted input projection for ALL timesteps and BOTH directions (bias folded):
            #   cols [0:4H]  -> forward-direction gate pre-activations (x part)
            #   cols [4H:8H] -> backward-direction gate pre-activations (x part)
            P = jnp.dot(cur, wih_ref[...], preferred_element_type=jnp.float32) + bg_ref[...]

            whh_f = whhf_ref[...]                            # (H, 4H), loaded once
            whh_b = whhb_ref[...]
            hf = h0_ref[2 * layer]
            cf = c0_ref[2 * layer]
            hb = h0_ref[2 * layer + 1]
            cb = c0_ref[2 * layer + 1]

            if layer < L - 1:
                # Full bidirectional recurrence; collect the sequence for the next layer.
                hf_seq = [None] * T
                hb_seq = [None] * T
                for s in range(T):
                    # forward direction processes original time s
                    gf = P[s * B:(s + 1) * B, 0:H4] + jnp.dot(
                        hf, whh_f, preferred_element_type=jnp.float32)
                    hf, cf = lstm_cell(gf, cf)
                    hf_seq[s] = hf
                    # backward direction processes original time T-1-s
                    tb = T - 1 - s
                    gb = P[tb * B:(tb + 1) * B, H4:2 * H4] + jnp.dot(
                        hb, whh_b, preferred_element_type=jnp.float32)
                    hb, cb = lstm_cell(gb, cb)
                    hb_seq[tb] = hb
                # Next-layer input: (T*B, 2H) with row t*B + b = [h_fwd(t), h_bwd(t)]
                cur = jnp.concatenate(
                    [jnp.concatenate([hf_seq[t], hb_seq[t]], axis=-1) for t in range(T)],
                    axis=0)
            else:
                # Last layer: only lstm_out[:, -1, :] is consumed downstream, i.e. the
                # forward state after all T steps and the backward state after its FIRST
                # step (which corresponds to time position T-1).
                for s in range(T):
                    gf = P[s * B:(s + 1) * B, 0:H4] + jnp.dot(
                        hf, whh_f, preferred_element_type=jnp.float32)
                    hf, cf = lstm_cell(gf, cf)
                gb = P[(T - 1) * B:T * B, H4:2 * H4] + jnp.dot(
                    hb, whh_b, preferred_element_type=jnp.float32)
                hb, cb = lstm_cell(gb, cb)

        # ---------- aging head: relu -> LSTM.fc -> relu_aging_1 -> fc_aging ----------
        h_last = jnp.maximum(jnp.concatenate([hf, hb], axis=-1), 0.0)        # (B, 2H)
        y = jnp.maximum(
            jnp.dot(h_last, wfc_ref[...], preferred_element_type=jnp.float32)
            + bfc_ref[...], 0.0)
        out2_ref[...] = (jnp.dot(y, wfa_ref[...], preferred_element_type=jnp.float32)
                         + bfa_ref[...])

    return kernel


# ---------------------------------------------------------------------------
# Forward wrapper (single pallas_call; minimal XLA glue, jitted)
# ---------------------------------------------------------------------------

@jax.jit
def psiamese_forward(params, x_smart, x_aging, state_key):
    B = x_smart.shape[0]
    T = x_aging.shape[1]
    L = len(params['lstm_fused'])
    H = params['lstm_fused'][0][1].shape[0]                  # whh_f is (H, 4H)
    out_model = params['smart'][7].shape[1]                  # b4 is (1, out_model)

    x_flat = x_smart.reshape(B, -1)
    # time-major 2-D layout: row t*B + b
    xa_tm = jnp.swapaxes(x_aging, 0, 1).reshape(T * B, x_aging.shape[-1])

    # TODO(synk): PyTorch draws h0/c0 with torch.randn on every forward; replaced by a
    # deterministic jax.random.normal draw from `state_key` for reproducibility.
    kh, kc = jax.random.split(state_key)
    h0 = jax.random.normal(kh, (L * 2, B, H), jnp.float32)
    c0 = jax.random.normal(kc, (L * 2, B, H), jnp.float32)

    lstm_args = []
    for layer in range(L):
        lstm_args.extend(params['lstm_fused'][layer])        # wih_cat, whh_f, whh_b, bg_cat

    args = ([x_flat] + list(params['smart']) + [xa_tm] + lstm_args
            + [h0, c0] + list(params['aging_head']))

    kernel = make_psiamese_kernel(L, T, B, H)
    out1, out2 = pl.pallas_call(
        kernel,
        out_shape=(jax.ShapeDtypeStruct((B, out_model), jnp.float32),
                   jax.ShapeDtypeStruct((B, out_model), jnp.float32)),
        in_specs=[pl.BlockSpec(memory_space=pltpu.MemorySpace.VMEM)] * len(args),
        out_specs=(pl.BlockSpec(memory_space=pltpu.MemorySpace.VMEM),
                   pl.BlockSpec(memory_space=pltpu.MemorySpace.VMEM)),
    )(*args)
    return out1, out2


# ---------------------------------------------------------------------------
# Parameter construction (deterministic, PyTorch-style uniform init)
# ---------------------------------------------------------------------------

def linear_params(key, fan_in, fan_out):
    k = 1.0 / np.sqrt(fan_in)
    kw, kb = jax.random.split(key)
    w = jax.random.uniform(kw, (fan_in, fan_out), jnp.float32, -k, k)   # stored as (in, out)
    b = jax.random.uniform(kb, (1, fan_out), jnp.float32, -k, k)
    return w, b


def lstm_dir_params(key, input_size, H):
    k = 1.0 / np.sqrt(H)
    k1, k2, k3, k4 = jax.random.split(key, 4)
    wih = jax.random.uniform(k1, (input_size, 4 * H), jnp.float32, -k, k)
    whh = jax.random.uniform(k2, (H, 4 * H), jnp.float32, -k, k)
    bih = jax.random.uniform(k3, (1, 4 * H), jnp.float32, -k, k)
    bhh = jax.random.uniform(k4, (1, 4 * H), jnp.float32, -k, k)
    return wih, whh, bih + bhh


def make_params(key, input_size_smart, input_size_aging, hidden_size_smart,
                hidden_size_aging, num_layers_aging, output_size_smart,
                output_size_aging, output_size_model):
    keys = iter(jax.random.split(key, 32))
    p = {}
    # smart NN branch + fc_smart
    w1, b1 = linear_params(next(keys), input_size_smart, hidden_size_smart)
    w2, b2 = linear_params(next(keys), hidden_size_smart, hidden_size_smart)
    w3, b3 = linear_params(next(keys), hidden_size_smart, output_size_smart)
    w4, b4 = linear_params(next(keys), output_size_smart, output_size_model)
    p['smart'] = (w1, b1, w2, b2, w3, b3, w4, b4)
    # bidirectional LSTM: per-direction params (for reference) + fused (for the kernel)
    p['lstm'] = {}
    p['lstm_fused'] = []
    for layer in range(num_layers_aging):
        d_in = input_size_aging if layer == 0 else 2 * hidden_size_aging
        per_dir = []
        for d in range(2):
            prm = lstm_dir_params(next(keys), d_in, hidden_size_aging)
            p['lstm'][(layer, d)] = prm
            per_dir.append(prm)
        (wih_f, whh_f, b_f), (wih_b, whh_b, b_b) = per_dir
        wih_cat = jnp.concatenate([wih_f, wih_b], axis=1)      # (Din, 8H)
        bg_cat = jnp.concatenate([b_f, b_b], axis=1)           # (1, 8H)
        p['lstm_fused'].append((wih_cat, whh_f, whh_b, bg_cat))
    # LSTM.fc + fc_aging
    wfc, bfc = linear_params(next(keys), 2 * hidden_size_aging, output_size_aging)
    wfa, bfa = linear_params(next(keys), output_size_aging, output_size_model)
    p['aging_head'] = (wfc, bfc, wfa, bfa)
    return p


# ---------------------------------------------------------------------------
# Pure-JAX reference (for correctness check)
# ---------------------------------------------------------------------------

def _lstm_layer_ref(x, wih, whh, b, h0, c0):
    H = h0.shape[-1]

    def step(carry, x_t):
        h, c = carry
        g = x_t @ wih + h @ whh + b[0]
        i = jax.nn.sigmoid(g[:, 0 * H:1 * H])
        f = jax.nn.sigmoid(g[:, 1 * H:2 * H])
        gg = jnp.tanh(g[:, 2 * H:3 * H])
        o = jax.nn.sigmoid(g[:, 3 * H:4 * H])
        c = f * c + i * gg
        h = o * jnp.tanh(c)
        return (h, c), h

    (_, _), hs = jax.lax.scan(step, (h0, c0), jnp.swapaxes(x, 0, 1))
    return jnp.swapaxes(hs, 0, 1)


def psiamese_forward_ref(params, x_smart, x_aging, state_key):
    B = x_smart.shape[0]
    L = len(params['lstm_fused'])
    H = params['lstm_fused'][0][1].shape[0]

    w1, b1, w2, b2, w3, b3, w4, b4 = params['smart']
    h = jnp.maximum(x_smart.reshape(B, -1) @ w1 + b1, 0.0)
    h = jnp.maximum(h @ w2 + b2, 0.0)
    h = jnp.maximum(h @ w3 + b3, 0.0)
    out1 = h @ w4 + b4

    kh, kc = jax.random.split(state_key)
    h0 = jax.random.normal(kh, (L * 2, B, H), jnp.float32)
    c0 = jax.random.normal(kc, (L * 2, B, H), jnp.float32)

    seq = x_aging
    for layer in range(L):
        outs = []
        for d in range(2):
            wih, whh, b = params['lstm'][(layer, d)]
            xi = seq if d == 0 else jnp.flip(seq, axis=1)
            o = _lstm_layer_ref(xi, wih, whh, b, h0[2 * layer + d], c0[2 * layer + d])
            if d == 1:
                o = jnp.flip(o, axis=1)
            outs.append(o)
        seq = jnp.concatenate(outs, axis=-1)

    wfc, bfc, wfa, bfa = params['aging_head']
    z = jnp.maximum(seq[:, -1, :], 0.0)
    y = jnp.maximum(z @ wfc + bfc, 0.0)
    out2 = y @ wfa + bfa
    return out1, out2


# ---------------------------------------------------------------------------
# Main
# ---------------------------------------------------------------------------

if __name__ == "__main__":
    # Small shapes consistent with the module:
    B = 2
    F1, F2 = 4, 8                    # x_smart = (B, 4, 8) -> flattened to 32
    input_size_smart = F1 * F2       # 32
    hidden_size_smart = 32
    output_size_smart = 16
    T = 8
    input_size_aging = 8             # x_aging = (B, T, 8)
    hidden_size_aging = 16
    num_layers_aging = 2
    output_size_aging = 16
    output_size_model = 8

    root = jax.random.PRNGKey(0)
    k_params, k_xs, k_xa, k_state = jax.random.split(root, 4)

    params = make_params(k_params, input_size_smart, input_size_aging,
                         hidden_size_smart, hidden_size_aging, num_layers_aging,
                         output_size_smart, output_size_aging, output_size_model)

    x_smart = jax.random.normal(k_xs, (B, F1, F2), jnp.float32)
    x_aging = jax.random.normal(k_xa, (B, T, input_size_aging), jnp.float32)

    out1, out2 = psiamese_forward(params, x_smart, x_aging, k_state)
    out1 = jax.block_until_ready(out1)
    out2 = jax.block_until_ready(out2)

    ref1, ref2 = psiamese_forward_ref(params, x_smart, x_aging, k_state)
    ref1 = jax.block_until_ready(ref1)
    ref2 = jax.block_until_ready(ref2)

    assert out1.shape == (B, output_size_model) and out2.shape == (B, output_size_model)
    np.testing.assert_allclose(np.asarray(out1), np.asarray(ref1), rtol=1e-4, atol=1e-4)
    np.testing.assert_allclose(np.asarray(out2), np.asarray(ref2), rtol=1e-4, atol=1e-4)

    print("KERNEL_OK")
</pallas_src>

<mosaic_0001>
module attributes {stable_mosaic.version = 11 : i64} {
  func.func @kernel(%arg0: memref<2x32xf32, #tpu.memory_space<vmem>>, %arg1: memref<32x32xf32, #tpu.memory_space<vmem>>, %arg2: memref<1x32xf32, #tpu.memory_space<vmem>>, %arg3: memref<32x32xf32, #tpu.memory_space<vmem>>, %arg4: memref<1x32xf32, #tpu.memory_space<vmem>>, %arg5: memref<32x16xf32, #tpu.memory_space<vmem>>, %arg6: memref<1x16xf32, #tpu.memory_space<vmem>>, %arg7: memref<16x8xf32, #tpu.memory_space<vmem>>, %arg8: memref<1x8xf32, #tpu.memory_space<vmem>>, %arg9: memref<16x8xf32, #tpu.memory_space<vmem>>, %arg10: memref<8x128xf32, #tpu.memory_space<vmem>>, %arg11: memref<16x64xf32, #tpu.memory_space<vmem>>, %arg12: memref<16x64xf32, #tpu.memory_space<vmem>>, %arg13: memref<1x128xf32, #tpu.memory_space<vmem>>, %arg14: memref<32x128xf32, #tpu.memory_space<vmem>>, %arg15: memref<16x64xf32, #tpu.memory_space<vmem>>, %arg16: memref<16x64xf32, #tpu.memory_space<vmem>>, %arg17: memref<1x128xf32, #tpu.memory_space<vmem>>, %arg18: memref<4x2x16xf32, #tpu.memory_space<vmem>>, %arg19: memref<4x2x16xf32, #tpu.memory_space<vmem>>, %arg20: memref<32x16xf32, #tpu.memory_space<vmem>>, %arg21: memref<1x16xf32, #tpu.memory_space<vmem>>, %arg22: memref<16x8xf32, #tpu.memory_space<vmem>>, %arg23: memref<1x8xf32, #tpu.memory_space<vmem>>, %arg24: memref<2x8xf32, #tpu.memory_space<vmem>>, %arg25: memref<2x8xf32, #tpu.memory_space<vmem>>) attributes {dimension_semantics = [], scalar_prefetch = 0 : i64, scratch_operands = 0 : i64, tpu.core_type = #tpu.core_type<tc>} {
    %c0 = arith.constant 0 : index
    %c0_0 = arith.constant 0 : index
    %0 = vector.load %arg0[%c0, %c0_0] : memref<2x32xf32, #tpu.memory_space<vmem>>, vector<2x32xf32>
    %c0_1 = arith.constant 0 : index
    %c0_2 = arith.constant 0 : index
    %1 = vector.load %arg1[%c0_1, %c0_2] : memref<32x32xf32, #tpu.memory_space<vmem>>, vector<32x32xf32>
    %cst = arith.constant dense<0.000000e+00> : vector<2x32xf32>
    %2 = tpu.matmul %0, %1, %cst {dimension_numbers = #tpu.dot_dimension_numbers<[1], [0], [0], [1], [0, 0, 1, 1], [], []>} : vector<2x32xf32>, vector<32x32xf32>, vector<2x32xf32> -> vector<2x32xf32>
    %c0_3 = arith.constant 0 : index
    %c0_4 = arith.constant 0 : index
    %3 = vector.load %arg2[%c0_3, %c0_4] : memref<1x32xf32, #tpu.memory_space<vmem>>, vector<1x32xf32>
    %4 = vector.broadcast %3 : vector<1x32xf32> to vector<2x32xf32>
    %5 = arith.addf %2, %4 : vector<2x32xf32>
    %cst_5 = arith.constant 0.000000e+00 : f32
    %6 = vector.broadcast %cst_5 : f32 to vector<2x32xf32>
    %7 = arith.maximumf %5, %6 : vector<2x32xf32>
    %c0_6 = arith.constant 0 : index
    %c0_7 = arith.constant 0 : index
    %8 = vector.load %arg3[%c0_6, %c0_7] : memref<32x32xf32, #tpu.memory_space<vmem>>, vector<32x32xf32>
    %cst_8 = arith.constant dense<0.000000e+00> : vector<2x32xf32>
    %9 = tpu.matmul %7, %8, %cst_8 {dimension_numbers = #tpu.dot_dimension_numbers<[1], [0], [0], [1], [0, 0, 1, 1], [], []>} : vector<2x32xf32>, vector<32x32xf32>, vector<2x32xf32> -> vector<2x32xf32>
    %c0_9 = arith.constant 0 : index
    %c0_10 = arith.constant 0 : index
    %10 = vector.load %arg4[%c0_9, %c0_10] : memref<1x32xf32, #tpu.memory_space<vmem>>, vector<1x32xf32>
    %11 = vector.broadcast %10 : vector<1x32xf32> to vector<2x32xf32>
    %12 = arith.addf %9, %11 : vector<2x32xf32>
    %cst_11 = arith.constant 0.000000e+00 : f32
    %13 = vector.broadcast %cst_11 : f32 to vector<2x32xf32>
    %14 = arith.maximumf %12, %13 : vector<2x32xf32>
    %c0_12 = arith.constant 0 : index
    %c0_13 = arith.constant 0 : index
    %15 = vector.load %arg5[%c0_12, %c0_13] : memref<32x16xf32, #tpu.memory_space<vmem>>, vector<32x16xf32>
    %cst_14 = arith.constant dense<0.000000e+00> : vector<2x16xf32>
    %16 = tpu.matmul %14, %15, %cst_14 {dimension_numbers = #tpu.dot_dimension_numbers<[1], [0], [0], [1], [0, 0, 1, 1], [], []>} : vector<2x32xf32>, vector<32x16xf32>, vector<2x16xf32> -> vector<2x16xf32>
    %c0_15 = arith.constant 0 : index
    %c0_16 = arith.constant 0 : index
    %17 = vector.load %arg6[%c0_15, %c0_16] : memref<1x16xf32, #tpu.memory_space<vmem>>, vector<1x16xf32>
    %18 = vector.broadcast %17 : vector<1x16xf32> to vector<2x16xf32>
    %19 = arith.addf %16, %18 : vector<2x16xf32>
    %cst_17 = arith.constant 0.000000e+00 : f32
    %20 = vector.broadcast %cst_17 : f32 to vector<2x16xf32>
    %21 = arith.maximumf %19, %20 : vector<2x16xf32>
    %c0_18 = arith.constant 0 : index
    %c0_19 = arith.constant 0 : index
    %22 = vector.load %arg7[%c0_18, %c0_19] : memref<16x8xf32, #tpu.memory_space<vmem>>, vector<16x8xf32>
    %cst_20 = arith.constant dense<0.000000e+00> : vector<2x8xf32>
    %23 = tpu.matmul %21, %22, %cst_20 {dimension_numbers = #tpu.dot_dimension_numbers<[1], [0], [0], [1], [0, 0, 1, 1], [], []>} : vector<2x16xf32>, vector<16x8xf32>, vector<2x8xf32> -> vector<2x8xf32>
    %c0_21 = arith.constant 0 : index
    %c0_22 = arith.constant 0 : index
    %24 = vector.load %arg8[%c0_21, %c0_22] : memref<1x8xf32, #tpu.memory_space<vmem>>, vector<1x8xf32>
    %25 = vector.broadcast %24 : vector<1x8xf32> to vector<2x8xf32>
    %26 = arith.addf %23, %25 : vector<2x8xf32>
    %c0_23 = arith.constant 0 : index
    %c0_24 = arith.constant 0 : index
    %27 = vector.load %arg24[%c0_23, %c0_24] : memref<2x8xf32, #tpu.memory_space<vmem>>, vector<2x8xf32>
    tpu.vector_store %arg24[%c0_23, %c0_24], %26 {strides = array<i32>} : memref<2x8xf32, #tpu.memory_space<vmem>>, vector<2x8xf32>,
    %c0_25 = arith.constant 0 : index
    %c0_26 = arith.constant 0 : index
    %28 = vector.load %arg9[%c0_25, %c0_26] : memref<16x8xf32, #tpu.memory_space<vmem>>, vector<16x8xf32>
    %c0_27 = arith.constant 0 : index
    %c0_28 = arith.constant 0 : index
    %29 = vector.load %arg10[%c0_27, %c0_28] : memref<8x128xf32, #tpu.memory_space<vmem>>, vector<8x128xf32>
    %cst_29 = arith.constant dense<0.000000e+00> : vector<16x128xf32>
    %30 = tpu.matmul %28, %29, %cst_29 {dimension_numbers = #tpu.dot_dimension_numbers<[1], [0], [0], [1], [0, 0, 1, 1], [], []>} : vector<16x8xf32>, vector<8x128xf32>, vector<16x128xf32> -> vector<16x128xf32>
    %c0_30 = arith.constant 0 : index
    %c0_31 = arith.constant 0 : index
    %31 = vector.load %arg13[%c0_30, %c0_31] : memref<1x128xf32, #tpu.memory_space<vmem>>, vector<1x128xf32>
    %32 = vector.broadcast %31 : vector<1x128xf32> to vector<16x128xf32>
    %33 = arith.addf %30, %32 : vector<16x128xf32>
    %c0_32 = arith.constant 0 : index
    %c0_33 = arith.constant 0 : index
    %34 = vector.load %arg11[%c0_32, %c0_33] : memref<16x64xf32, #tpu.memory_space<vmem>>, vector<16x64xf32>
    %c0_34 = arith.constant 0 : index
    %c0_35 = arith.constant 0 : index
    %35 = vector.load %arg12[%c0_34, %c0_35] : memref<16x64xf32, #tpu.memory_space<vmem>>, vector<16x64xf32>
    %c0_36 = arith.constant 0 : index
    %c0_37 = arith.constant 0 : index
    %c0_38 = arith.constant 0 : index
    %36 = vector.load %arg18[%c0_36, %c0_37, %c0_38] : memref<4x2x16xf32, #tpu.memory_space<vmem>>, vector<1x2x16xf32>
    %37 = vector.shape_cast %36 : vector<1x2x16xf32> to vector<2x16xf32>
    %c0_39 = arith.constant 0 : index
    %c0_40 = arith.constant 0 : index
    %c0_41 = arith.constant 0 : index
    %38 = vector.load %arg19[%c0_39, %c0_40, %c0_41] : memref<4x2x16xf32, #tpu.memory_space<vmem>>, vector<1x2x16xf32>
    %39 = vector.shape_cast %38 : vector<1x2x16xf32> to vector<2x16xf32>
    %c1 = arith.constant 1 : index
    %c0_42 = arith.constant 0 : index
    %c0_43 = arith.constant 0 : index
    %40 = vector.load %arg18[%c1, %c0_42, %c0_43] : memref<4x2x16xf32, #tpu.memory_space<vmem>>, vector<1x2x16xf32>
    %41 = vector.shape_cast %40 : vector<1x2x16xf32> to vector<2x16xf32>
    %c1_44 = arith.constant 1 : index
    %c0_45 = arith.constant 0 : index
    %c0_46 = arith.constant 0 : index
    %42 = vector.load %arg19[%c1_44, %c0_45, %c0_46] : memref<4x2x16xf32, #tpu.memory_space<vmem>>, vector<1x2x16xf32>
    %43 = vector.shape_cast %42 : vector<1x2x16xf32> to vector<2x16xf32>
    %44 = vector.extract_strided_slice %33 {offsets = [0, 0], sizes = [2, 64], strides = [1, 1]} : vector<16x128xf32> to vector<2x64xf32>
    %cst_47 = arith.constant dense<0.000000e+00> : vector<2x64xf32>
    %45 = tpu.matmul %37, %34, %cst_47 {dimension_numbers = #tpu.dot_dimension_numbers<[1], [0], [0], [1], [0, 0, 1, 1], [], []>} : vector<2x16xf32>, vector<16x64xf32>, vector<2x64xf32> -> vector<2x64xf32>
    %46 = arith.addf %44, %45 : vector<2x64xf32>
    %47 = vector.extract_strided_slice %46 {offsets = [0, 0], sizes = [2, 16], strides = [1, 1]} : vector<2x64xf32> to vector<2x16xf32>
    %48 = arith.negf %47 : vector<2x16xf32>
    %49 = math.exp %48 : vector<2x16xf32>
    %cst_48 = arith.constant 1.000000e+00 : f32
    %50 = vector.broadcast %cst_48 : f32 to vector<2x16xf32>
    %51 = arith.addf %50, %49 : vector<2x16xf32>
    %52 = arith.divf %50, %51 : vector<2x16xf32>
    %53 = vector.extract_strided_slice %46 {offsets = [0, 16], sizes = [2, 16], strides = [1, 1]} : vector<2x64xf32> to vector<2x16xf32>
    %54 = arith.negf %53 : vector<2x16xf32>
    %55 = math.exp %54 : vector<2x16xf32>
    %cst_49 = arith.constant 1.000000e+00 : f32
    %56 = vector.broadcast %cst_49 : f32 to vector<2x16xf32>
    %57 = arith.addf %56, %55 : vector<2x16xf32>
    %58 = arith.divf %56, %57 : vector<2x16xf32>
    %59 = vector.extract_strided_slice %46 {offsets = [0, 32], sizes = [2, 16], strides = [1, 1]} : vector<2x64xf32> to vector<2x16xf32>
    %60 = math.tanh %59 : vector<2x16xf32>
    %61 = vector.extract_strided_slice %46 {offsets = [0, 48], sizes = [2, 16], strides = [1, 1]} : vector<2x64xf32> to vector<2x16xf32>
    %62 = arith.negf %61 : vector<2x16xf32>
    %63 = math.exp %62 : vector<2x16xf32>
    %cst_50 = arith.constant 1.000000e+00 : f32
    %64 = vector.broadcast %cst_50 : f32 to vector<2x16xf32>
    %65 = arith.addf %64, %63 : vector<2x16xf32>
    %66 = arith.divf %64, %65 : vector<2x16xf32>
    %67 = arith.mulf %58, %39 : vector<2x16xf32>
    %68 = arith.mulf %52, %60 : vector<2x16xf32>
    %69 = arith.addf %67, %68 : vector<2x16xf32>
    %70 = math.tanh %69 : vector<2x16xf32>
    %71 = arith.mulf %66, %70 : vector<2x16xf32>
    %72 = vector.extract_strided_slice %33 {offsets = [14, 64], sizes = [2, 64], strides = [1, 1]} : vector<16x128xf32> to vector<2x64xf32>
    %cst_51 = arith.constant dense<0.000000e+00> : vector<2x64xf32>
    %73 = tpu.matmul %41, %35, %cst_51 {dimension_numbers = #tpu.dot_dimension_numbers<[1], [0], [0], [1], [0, 0, 1, 1], [], []>} : vector<2x16xf32>, vector<16x64xf32>, vector<2x64xf32> -> vector<2x64xf32>
    %74 = arith.addf %72, %73 : vector<2x64xf32>
    %75 = vector.extract_strided_slice %74 {offsets = [0, 0], sizes = [2, 16], strides = [1, 1]} : vector<2x64xf32> to vector<2x16xf32>
    %76 = arith.negf %75 : vector<2x16xf32>
    %77 = math.exp %76 : vector<2x16xf32>
    %cst_52 = arith.constant 1.000000e+00 : f32
    %78 = vector.broadcast %cst_52 : f32 to vector<2x16xf32>
    %79 = arith.addf %78, %77 : vector<2x16xf32>
    %80 = arith.divf %78, %79 : vector<2x16xf32>
    %81 = vector.extract_strided_slice %74 {offsets = [0, 16], sizes = [2, 16], strides = [1, 1]} : vector<2x64xf32> to vector<2x16xf32>
    %82 = arith.negf %81 : vector<2x16xf32>
    %83 = math.exp %82 : vector<2x16xf32>
    %cst_53 = arith.constant 1.000000e+00 : f32
    %84 = vector.broadcast %cst_53 : f32 to vector<2x16xf32>
    %85 = arith.addf %84, %83 : vector<2x16xf32>
    %86 = arith.divf %84, %85 : vector<2x16xf32>
    %87 = vector.extract_strided_slice %74 {offsets = [0, 32], sizes = [2, 16], strides = [1, 1]} : vector<2x64xf32> to vector<2x16xf32>
    %88 = math.tanh %87 : vector<2x16xf32>
    %89 = vector.extract_strided_slice %74 {offsets = [0, 48], sizes = [2, 16], strides = [1, 1]} : vector<2x64xf32> to vector<2x16xf32>
    %90 = arith.negf %89 : vector<2x16xf32>
    %91 = math.exp %90 : vector<2x16xf32>
    %cst_54 = arith.constant 1.000000e+00 : f32
    %92 = vector.broadcast %cst_54 : f32 to vector<2x16xf32>
    %93 = arith.addf %92, %91 : vector<2x16xf32>
    %94 = arith.divf %92, %93 : vector<2x16xf32>
    %95 = arith.mulf %86, %43 : vector<2x16xf32>
    %96 = arith.mulf %80, %88 : vector<2x16xf32>
    %97 = arith.addf %95, %96 : vector<2x16xf32>
    %98 = math.tanh %97 : vector<2x16xf32>
    %99 = arith.mulf %94, %98 : vector<2x16xf32>
    %100 = vector.extract_strided_slice %33 {offsets = [2, 0], sizes = [2, 64], strides = [1, 1]} : vector<16x128xf32> to vector<2x64xf32>
    %cst_55 = arith.constant dense<0.000000e+00> : vector<2x64xf32>
    %101 = tpu.matmul %71, %34, %cst_55 {dimension_numbers = #tpu.dot_dimension_numbers<[1], [0], [0], [1], [0, 0, 1, 1], [], []>} : vector<2x16xf32>, vector<16x64xf32>, vector<2x64xf32> -> vector<2x64xf32>
    %102 = arith.addf %100, %101 : vector<2x64xf32>
    %103 = vector.extract_strided_slice %102 {offsets = [0, 0], sizes = [2, 16], strides = [1, 1]} : vector<2x64xf32> to vector<2x16xf32>
    %104 = arith.negf %103 : vector<2x16xf32>
    %105 = math.exp %104 : vector<2x16xf32>
    %cst_56 = arith.constant 1.000000e+00 : f32
    %106 = vector.broadcast %cst_56 : f32 to vector<2x16xf32>
    %107 = arith.addf %106, %105 : vector<2x16xf32>
    %108 = arith.divf %106, %107 : vector<2x16xf32>
    %109 = vector.extract_strided_slice %102 {offsets = [0, 16], sizes = [2, 16], strides = [1, 1]} : vector<2x64xf32> to vector<2x16xf32>
    %110 = arith.negf %109 : vector<2x16xf32>
    %111 = math.exp %110 : vector<2x16xf32>
    %cst_57 = arith.constant 1.000000e+00 : f32
    %112 = vector.broadcast %cst_57 : f32 to vector<2x16xf32>
    %113 = arith.addf %112, %111 : vector<2x16xf32>
    %114 = arith.divf %112, %113 : vector<2x16xf32>
    %115 = vector.extract_strided_slice %102 {offsets = [0, 32], sizes = [2, 16], strides = [1, 1]} : vector<2x64xf32> to vector<2x16xf32>
    %116 = math.tanh %115 : vector<2x16xf32>
    %117 = vector.extract_strided_slice %102 {offsets = [0, 48], sizes = [2, 16], strides = [1, 1]} : vector<2x64xf32> to vector<2x16xf32>
    %118 = arith.negf %117 : vector<2x16xf32>
    %119 = math.exp %118 : vector<2x16xf32>
    %cst_58 = arith.constant 1.000000e+00 : f32
    %120 = vector.broadcast %cst_58 : f32 to vector<2x16xf32>
    %121 = arith.addf %120, %119 : vector<2x16xf32>
    %122 = arith.divf %120, %121 : vector<2x16xf32>
    %123 = arith.mulf %114, %69 : vector<2x16xf32>
    %124 = arith.mulf %108, %116 : vector<2x16xf32>
    %125 = arith.addf %123, %124 : vector<2x16xf32>
    %126 = math.tanh %125 : vector<2x16xf32>
    %127 = arith.mulf %122, %126 : vector<2x16xf32>
    %128 = vector.extract_strided_slice %33 {offsets = [12, 64], sizes = [2, 64], strides = [1, 1]} : vector<16x128xf32> to vector<2x64xf32>
    %cst_59 = arith.constant dense<0.000000e+00> : vector<2x64xf32>
    %129 = tpu.matmul %99, %35, %cst_59 {dimension_numbers = #tpu.dot_dimension_numbers<[1], [0], [0], [1], [0, 0, 1, 1], [], []>} : vector<2x16xf32>, vector<16x64xf32>, vector<2x64xf32> -> vector<2x64xf32>
    %130 = arith.addf %128, %129 : vector<2x64xf32>
    %131 = vector.extract_strided_slice %130 {offsets = [0, 0], sizes = [2, 16], strides = [1, 1]} : vector<2x64xf32> to vector<2x16xf32>
    %132 = arith.negf %131 : vector<2x16xf32>
    %133 = math.exp %132 : vector<2x16xf32>
    %cst_60 = arith.constant 1.000000e+00 : f32
    %134 = vector.broadcast %cst_60 : f32 to vector<2x16xf32>
    %135 = arith.addf %134, %133 : vector<2x16xf32>
    %136 = arith.divf %134, %135 : vector<2x16xf32>
    %137 = vector.extract_strided_slice %130 {offsets = [0, 16], sizes = [2, 16], strides = [1, 1]} : vector<2x64xf32> to vector<2x16xf32>
    %138 = arith.negf %137 : vector<2x16xf32>
    %139 = math.exp %138 : vector<2x16xf32>
    %cst_61 = arith.constant 1.000000e+00 : f32
    %140 = vector.broadcast %cst_61 : f32 to vector<2x16xf32>
    %141 = arith.addf %140, %139 : vector<2x16xf32>
    %142 = arith.divf %140, %141 : vector<2x16xf32>
    %143 = vector.extract_strided_slice %130 {offsets = [0, 32], sizes = [2, 16], strides = [1, 1]} : vector<2x64xf32> to vector<2x16xf32>
    %144 = math.tanh %143 : vector<2x16xf32>
    %145 = vector.extract_strided_slice %130 {offsets = [0, 48], sizes = [2, 16], strides = [1, 1]} : vector<2x64xf32> to vector<2x16xf32>
    %146 = arith.negf %145 : vector<2x16xf32>
    %147 = math.exp %146 : vector<2x16xf32>
    %cst_62 = arith.constant 1.000000e+00 : f32
    %148 = vector.broadcast %cst_62 : f32 to vector<2x16xf32>
    %149 = arith.addf %148, %147 : vector<2x16xf32>
    %150 = arith.divf %148, %149 : vector<2x16xf32>
    %151 = arith.mulf %142, %97 : vector<2x16xf32>
    %152 = arith.mulf %136, %144 : vector<2x16xf32>
    %153 = arith.addf %151, %152 : vector<2x16xf32>
    %154 = math.tanh %153 : vector<2x16xf32>
    %155 = arith.mulf %150, %154 : vector<2x16xf32>
    %156 = vector.extract_strided_slice %33 {offsets = [4, 0], sizes = [2, 64], strides = [1, 1]} : vector<16x128xf32> to vector<2x64xf32>
    %cst_63 = arith.constant dense<0.000000e+00> : vector<2x64xf32>
    %157 = tpu.matmul %127, %34, %cst_63 {dimension_numbers = #tpu.dot_dimension_numbers<[1], [0], [0], [1], [0, 0, 1, 1], [], []>} : vector<2x16xf32>, vector<16x64xf32>, vector<2x64xf32> -> vector<2x64xf32>
    %158 = arith.addf %156, %157 : vector<2x64xf32>
    %159 = vector.extract_strided_slice %158 {offsets = [0, 0], sizes = [2, 16], strides = [1, 1]} : vector<2x64xf32> to vector<2x16xf32>
    %160 = arith.negf %159 : vector<2x16xf32>
    %161 = math.exp %160 : vector<2x16xf32>
    %cst_64 = arith.constant 1.000000e+00 : f32
    %162 = vector.broadcast %cst_64 : f32 to vector<2x16xf32>
    %163 = arith.addf %162, %161 : vector<2x16xf32>
    %164 = arith.divf %162, %163 : vector<2x16xf32>
    %165 = vector.extract_strided_slice %158 {offsets = [0, 16], sizes = [2, 16], strides = [1, 1]} : vector<2x64xf32> to vector<2x16xf32>
    %166 = arith.negf %165 : vector<2x16xf32>
    %167 = math.exp %166 : vector<2x16xf32>
    %cst_65 = arith.constant 1.000000e+00 : f32
    %168 = vector.broadcast %cst_65 : f32 to vector<2x16xf32>
    %169 = arith.addf %168, %167 : vector<2x16xf32>
    %170 = arith.divf %168, %169 : vector<2x16xf32>
    %171 = vector.extract_strided_slice %158 {offsets = [0, 32], sizes = [2, 16], strides = [1, 1]} : vector<2x64xf32> to vector<2x16xf32>
    %172 = math.tanh %171 : vector<2x16xf32>
    %173 = vector.extract_strided_slice %158 {offsets = [0, 48], sizes = [2, 16], strides = [1, 1]} : vector<2x64xf32> to vector<2x16xf32>
    %174 = arith.negf %173 : vector<2x16xf32>
    %175 = math.exp %174 : vector<2x16xf32>
    %cst_66 = arith.constant 1.000000e+00 : f32
    %176 = vector.broadcast %cst_66 : f32 to vector<2x16xf32>
    %177 = arith.addf %176, %175 : vector<2x16xf32>
    %178 = arith.divf %176, %177 : vector<2x16xf32>
    %179 = arith.mulf %170, %125 : vector<2x16xf32>
    %180 = arith.mulf %164, %172 : vector<2x16xf32>
    %181 = arith.addf %179, %180 : vector<2x16xf32>
    %182 = math.tanh %181 : vector<2x16xf32>
    %183 = arith.mulf %178, %182 : vector<2x16xf32>
    %184 = vector.extract_strided_slice %33 {offsets = [10, 64], sizes = [2, 64], strides = [1, 1]} : vector<16x128xf32> to vector<2x64xf32>
    %cst_67 = arith.constant dense<0.000000e+00> : vector<2x64xf32>
    %185 = tpu.matmul %155, %35, %cst_67 {dimension_numbers = #tpu.dot_dimension_numbers<[1], [0], [0], [1], [0, 0, 1, 1], [], []>} : vector<2x16xf32>, vector<16x64xf32>, vector<2x64xf32> -> vector<2x64xf32>
    %186 = arith.addf %184, %185 : vector<2x64xf32>
    %187 = vector.extract_strided_slice %186 {offsets = [0, 0], sizes = [2, 16], strides = [1, 1]} : vector<2x64xf32> to vector<2x16xf32>
    %188 = arith.negf %187 : vector<2x16xf32>
    %189 = math.exp %188 : vector<2x16xf32>
    %cst_68 = arith.constant 1.000000e+00 : f32
    %190 = vector.broadcast %cst_68 : f32 to vector<2x16xf32>
    %191 = arith.addf %190, %189 : vector<2x16xf32>
    %192 = arith.divf %190, %191 : vector<2x16xf32>
    %193 = vector.extract_strided_slice %186 {offsets = [0, 16], sizes = [2, 16], strides = [1, 1]} : vector<2x64xf32> to vector<2x16xf32>
    %194 = arith.negf %193 : vector<2x16xf32>
    %195 = math.exp %194 : vector<2x16xf32>
    %cst_69 = arith.constant 1.000000e+00 : f32
    %196 = vector.broadcast %cst_69 : f32 to vector<2x16xf32>
    %197 = arith.addf %196, %195 : vector<2x16xf32>
    %198 = arith.divf %196, %197 : vector<2x16xf32>
    %199 = vector.extract_strided_slice %186 {offsets = [0, 32], sizes = [2, 16], strides = [1, 1]} : vector<2x64xf32> to vector<2x16xf32>
    %200 = math.tanh %199 : vector<2x16xf32>
    %201 = vector.extract_strided_slice %186 {offsets = [0, 48], sizes = [2, 16], strides = [1, 1]} : vector<2x64xf32> to vector<2x16xf32>
    %202 = arith.negf %201 : vector<2x16xf32>
    %203 = math.exp %202 : vector<2x16xf32>
    %cst_70 = arith.constant 1.000000e+00 : f32
    %204 = vector.broadcast %cst_70 : f32 to vector<2x16xf32>
    %205 = arith.addf %204, %203 : vector<2x16xf32>
    %206 = arith.divf %204, %205 : vector<2x16xf32>
    %207 = arith.mulf %198, %153 : vector<2x16xf32>
    %208 = arith.mulf %192, %200 : vector<2x16xf32>
    %209 = arith.addf %207, %208 : vector<2x16xf32>
    %210 = math.tanh %209 : vector<2x16xf32>
    %211 = arith.mulf %206, %210 : vector<2x16xf32>
    %212 = vector.extract_strided_slice %33 {offsets = [6, 0], sizes = [2, 64], strides = [1, 1]} : vector<16x128xf32> to vector<2x64xf32>
    %cst_71 = arith.constant dense<0.000000e+00> : vector<2x64xf32>
    %213 = tpu.matmul %183, %34, %cst_71 {dimension_numbers = #tpu.dot_dimension_numbers<[1], [0], [0], [1], [0, 0, 1, 1], [], []>} : vector<2x16xf32>, vector<16x64xf32>, vector<2x64xf32> -> vector<2x64xf32>
    %214 = arith.addf %212, %213 : vector<2x64xf32>
    %215 = vector.extract_strided_slice %214 {offsets = [0, 0], sizes = [2, 16], strides = [1, 1]} : vector<2x64xf32> to vector<2x16xf32>
    %216 = arith.negf %215 : vector<2x16xf32>
    %217 = math.exp %216 : vector<2x16xf32>
    %cst_72 = arith.constant 1.000000e+00 : f32
    %218 = vector.broadcast %cst_72 : f32 to vector<2x16xf32>
    %219 = arith.addf %218, %217 : vector<2x16xf32>
    %220 = arith.divf %218, %219 : vector<2x16xf32>
    %221 = vector.extract_strided_slice %214 {offsets = [0, 16], sizes = [2, 16], strides = [1, 1]} : vector<2x64xf32> to vector<2x16xf32>
    %222 = arith.negf %221 : vector<2x16xf32>
    %223 = math.exp %222 : vector<2x16xf32>
    %cst_73 = arith.constant 1.000000e+00 : f32
    %224 = vector.broadcast %cst_73 : f32 to vector<2x16xf32>
    %225 = arith.addf %224, %223 : vector<2x16xf32>
    %226 = arith.divf %224, %225 : vector<2x16xf32>
    %227 = vector.extract_strided_slice %214 {offsets = [0, 32], sizes = [2, 16], strides = [1, 1]} : vector<2x64xf32> to vector<2x16xf32>
    %228 = math.tanh %227 : vector<2x16xf32>
    %229 = vector.extract_strided_slice %214 {offsets = [0, 48], sizes = [2, 16], strides = [1, 1]} : vector<2x64xf32> to vector<2x16xf32>
    %230 = arith.negf %229 : vector<2x16xf32>
    %231 = math.exp %230 : vector<2x16xf32>
    %cst_74 = arith.constant 1.000000e+00 : f32
    %232 = vector.broadcast %cst_74 : f32 to vector<2x16xf32>
    %233 = arith.addf %232, %231 : vector<2x16xf32>
    %234 = arith.divf %232, %233 : vector<2x16xf32>
    %235 = arith.mulf %226, %181 : vector<2x16xf32>
    %236 = arith.mulf %220, %228 : vector<2x16xf32>
    %237 = arith.addf %235, %236 : vector<2x16xf32>
    %238 = math.tanh %237 : vector<2x16xf32>
    %239 = arith.mulf %234, %238 : vector<2x16xf32>
    %240 = vector.extract_strided_slice %33 {offsets = [8, 64], sizes = [2, 64], strides = [1, 1]} : vector<16x128xf32> to vector<2x64xf32>
    %cst_75 = arith.constant dense<0.000000e+00> : vector<2x64xf32>
    %241 = tpu.matmul %211, %35, %cst_75 {dimension_numbers = #tpu.dot_dimension_numbers<[1], [0], [0], [1], [0, 0, 1, 1], [], []>} : vector<2x16xf32>, vector<16x64xf32>, vector<2x64xf32> -> vector<2x64xf32>
    %242 = arith.addf %240, %241 : vector<2x64xf32>
    %243 = vector.extract_strided_slice %242 {offsets = [0, 0], sizes = [2, 16], strides = [1, 1]} : vector<2x64xf32> to vector<2x16xf32>
    %244 = arith.negf %243 : vector<2x16xf32>
    %245 = math.exp %244 : vector<2x16xf32>
    %cst_76 = arith.constant 1.000000e+00 : f32
    %246 = vector.broadcast %cst_76 : f32 to vector<2x16xf32>
    %247 = arith.addf %246, %245 : vector<2x16xf32>
    %248 = arith.divf %246, %247 : vector<2x16xf32>
    %249 = vector.extract_strided_slice %242 {offsets = [0, 16], sizes = [2, 16], strides = [1, 1]} : vector<2x64xf32> to vector<2x16xf32>
    %250 = arith.negf %249 : vector<2x16xf32>
    %251 = math.exp %250 : vector<2x16xf32>
    %cst_77 = arith.constant 1.000000e+00 : f32
    %252 = vector.broadcast %cst_77 : f32 to vector<2x16xf32>
    %253 = arith.addf %252, %251 : vector<2x16xf32>
    %254 = arith.divf %252, %253 : vector<2x16xf32>
    %255 = vector.extract_strided_slice %242 {offsets = [0, 32], sizes = [2, 16], strides = [1, 1]} : vector<2x64xf32> to vector<2x16xf32>
    %256 = math.tanh %255 : vector<2x16xf32>
    %257 = vector.extract_strided_slice %242 {offsets = [0, 48], sizes = [2, 16], strides = [1, 1]} : vector<2x64xf32> to vector<2x16xf32>
    %258 = arith.negf %257 : vector<2x16xf32>
    %259 = math.exp %258 : vector<2x16xf32>
    %cst_78 = arith.constant 1.000000e+00 : f32
    %260 = vector.broadcast %cst_78 : f32 to vector<2x16xf32>
    %261 = arith.addf %260, %259 : vector<2x16xf32>
    %262 = arith.divf %260, %261 : vector<2x16xf32>
    %263 = arith.mulf %254, %209 : vector<2x16xf32>
    %264 = arith.mulf %248, %256 : vector<2x16xf32>
    %265 = arith.addf %263, %264 : vector<2x16xf32>
    %266 = math.tanh %265 : vector<2x16xf32>
    %267 = arith.mulf %262, %266 : vector<2x16xf32>
    %268 = vector.extract_strided_slice %33 {offsets = [8, 0], sizes = [2, 64], strides = [1, 1]} : vector<16x128xf32> to vector<2x64xf32>
    %cst_79 = arith.constant dense<0.000000e+00> : vector<2x64xf32>
    %269 = tpu.matmul %239, %34, %cst_79 {dimension_numbers = #tpu.dot_dimension_numbers<[1], [0], [0], [1], [0, 0, 1, 1], [], []>} : vector<2x16xf32>, vector<16x64xf32>, vector<2x64xf32> -> vector<2x64xf32>
    %270 = arith.addf %268, %269 : vector<2x64xf32>
    %271 = vector.extract_strided_slice %270 {offsets = [0, 0], sizes = [2, 16], strides = [1, 1]} : vector<2x64xf32> to vector<2x16xf32>
    %272 = arith.negf %271 : vector<2x16xf32>
    %273 = math.exp %272 : vector<2x16xf32>
    %cst_80 = arith.constant 1.000000e+00 : f32
    %274 = vector.broadcast %cst_80 : f32 to vector<2x16xf32>
    %275 = arith.addf %274, %273 : vector<2x16xf32>
    %276 = arith.divf %274, %275 : vector<2x16xf32>
    %277 = vector.extract_strided_slice %270 {offsets = [0, 16], sizes = [2, 16], strides = [1, 1]} : vector<2x64xf32> to vector<2x16xf32>
    %278 = arith.negf %277 : vector<2x16xf32>
    %279 = math.exp %278 : vector<2x16xf32>
    %cst_81 = arith.constant 1.000000e+00 : f32
    %280 = vector.broadcast %cst_81 : f32 to vector<2x16xf32>
    %281 = arith.addf %280, %279 : vector<2x16xf32>
    %282 = arith.divf %280, %281 : vector<2x16xf32>
    %283 = vector.extract_strided_slice %270 {offsets = [0, 32], sizes = [2, 16], strides = [1, 1]} : vector<2x64xf32> to vector<2x16xf32>
    %284 = math.tanh %283 : vector<2x16xf32>
    %285 = vector.extract_strided_slice %270 {offsets = [0, 48], sizes = [2, 16], strides = [1, 1]} : vector<2x64xf32> to vector<2x16xf32>
    %286 = arith.negf %285 : vector<2x16xf32>
    %287 = math.exp %286 : vector<2x16xf32>
    %cst_82 = arith.constant 1.000000e+00 : f32
    %288 = vector.broadcast %cst_82 : f32 to vector<2x16xf32>
    %289 = arith.addf %288, %287 : vector<2x16xf32>
    %290 = arith.divf %288, %289 : vector<2x16xf32>
    %291 = arith.mulf %282, %237 : vector<2x16xf32>
    %292 = arith.mulf %276, %284 : vector<2x16xf32>
    %293 = arith.addf %291, %292 : vector<2x16xf32>
    %294 = math.tanh %293 : vector<2x16xf32>
    %295 = arith.mulf %290, %294 : vector<2x16xf32>
    %296 = vector.extract_strided_slice %33 {offsets = [6, 64], sizes = [2, 64], strides = [1, 1]} : vector<16x128xf32> to vector<2x64xf32>
    %cst_83 = arith.constant dense<0.000000e+00> : vector<2x64xf32>
    %297 = tpu.matmul %267, %35, %cst_83 {dimension_numbers = #tpu.dot_dimension_numbers<[1], [0], [0], [1], [0, 0, 1, 1], [], []>} : vector<2x16xf32>, vector<16x64xf32>, vector<2x64xf32> -> vector<2x64xf32>
    %298 = arith.addf %296, %297 : vector<2x64xf32>
    %299 = vector.extract_strided_slice %298 {offsets = [0, 0], sizes = [2, 16], strides = [1, 1]} : vector<2x64xf32> to vector<2x16xf32>
    %300 = arith.negf %299 : vector<2x16xf32>
    %301 = math.exp %300 : vector<2x16xf32>
    %cst_84 = arith.constant 1.000000e+00 : f32
    %302 = vector.broadcast %cst_84 : f32 to vector<2x16xf32>
    %303 = arith.addf %302, %301 : vector<2x16xf32>
    %304 = arith.divf %302, %303 : vector<2x16xf32>
    %305 = vector.extract_strided_slice %298 {offsets = [0, 16], sizes = [2, 16], strides = [1, 1]} : vector<2x64xf32> to vector<2x16xf32>
    %306 = arith.negf %305 : vector<2x16xf32>
    %307 = math.exp %306 : vector<2x16xf32>
    %cst_85 = arith.constant 1.000000e+00 : f32
    %308 = vector.broadcast %cst_85 : f32 to vector<2x16xf32>
    %309 = arith.addf %308, %307 : vector<2x16xf32>
    %310 = arith.divf %308, %309 : vector<2x16xf32>
    %311 = vector.extract_strided_slice %298 {offsets = [0, 32], sizes = [2, 16], strides = [1, 1]} : vector<2x64xf32> to vector<2x16xf32>
    %312 = math.tanh %311 : vector<2x16xf32>
    %313 = vector.extract_strided_slice %298 {offsets = [0, 48], sizes = [2, 16], strides = [1, 1]} : vector<2x64xf32> to vector<2x16xf32>
    %314 = arith.negf %313 : vector<2x16xf32>
    %315 = math.exp %314 : vector<2x16xf32>
    %cst_86 = arith.constant 1.000000e+00 : f32
    %316 = vector.broadcast %cst_86 : f32 to vector<2x16xf32>
    %317 = arith.addf %316, %315 : vector<2x16xf32>
    %318 = arith.divf %316, %317 : vector<2x16xf32>
    %319 = arith.mulf %310, %265 : vector<2x16xf32>
    %320 = arith.mulf %304, %312 : vector<2x16xf32>
    %321 = arith.addf %319, %320 : vector<2x16xf32>
    %322 = math.tanh %321 : vector<2x16xf32>
    %323 = arith.mulf %318, %322 : vector<2x16xf32>
    %324 = vector.extract_strided_slice %33 {offsets = [10, 0], sizes = [2, 64], strides = [1, 1]} : vector<16x128xf32> to vector<2x64xf32>
    %cst_87 = arith.constant dense<0.000000e+00> : vector<2x64xf32>
    %325 = tpu.matmul %295, %34, %cst_87 {dimension_numbers = #tpu.dot_dimension_numbers<[1], [0], [0], [1], [0, 0, 1, 1], [], []>} : vector<2x16xf32>, vector<16x64xf32>, vector<2x64xf32> -> vector<2x64xf32>
    %326 = arith.addf %324, %325 : vector<2x64xf32>
    %327 = vector.extract_strided_slice %326 {offsets = [0, 0], sizes = [2, 16], strides = [1, 1]} : vector<2x64xf32> to vector<2x16xf32>
    %328 = arith.negf %327 : vector<2x16xf32>
    %329 = math.exp %328 : vector<2x16xf32>
    %cst_88 = arith.constant 1.000000e+00 : f32
    %330 = vector.broadcast %cst_88 : f32 to vector<2x16xf32>
    %331 = arith.addf %330, %329 : vector<2x16xf32>
    %332 = arith.divf %330, %331 : vector<2x16xf32>
    %333 = vector.extract_strided_slice %326 {offsets = [0, 16], sizes = [2, 16], strides = [1, 1]} : vector<2x64xf32> to vector<2x16xf32>
    %334 = arith.negf %333 : vector<2x16xf32>
    %335 = math.exp %334 : vector<2x16xf32>
    %cst_89 = arith.constant 1.000000e+00 : f32
    %336 = vector.broadcast %cst_89 : f32 to vector<2x16xf32>
    %337 = arith.addf %336, %335 : vector<2x16xf32>
    %338 = arith.divf %336, %337 : vector<2x16xf32>
    %339 = vector.extract_strided_slice %326 {offsets = [0, 32], sizes = [2, 16], strides = [1, 1]} : vector<2x64xf32> to vector<2x16xf32>
    %340 = math.tanh %339 : vector<2x16xf32>
    %341 = vector.extract_strided_slice %326 {offsets = [0, 48], sizes = [2, 16], strides = [1, 1]} : vector<2x64xf32> to vector<2x16xf32>
    %342 = arith.negf %341 : vector<2x16xf32>
    %343 = math.exp %342 : vector<2x16xf32>
    %cst_90 = arith.constant 1.000000e+00 : f32
    %344 = vector.broadcast %cst_90 : f32 to vector<2x16xf32>
    %345 = arith.addf %344, %343 : vector<2x16xf32>
    %346 = arith.divf %344, %345 : vector<2x16xf32>
    %347 = arith.mulf %338, %293 : vector<2x16xf32>
    %348 = arith.mulf %332, %340 : vector<2x16xf32>
    %349 = arith.addf %347, %348 : vector<2x16xf32>
    %350 = math.tanh %349 : vector<2x16xf32>
    %351 = arith.mulf %346, %350 : vector<2x16xf32>
    %352 = vector.extract_strided_slice %33 {offsets = [4, 64], sizes = [2, 64], strides = [1, 1]} : vector<16x128xf32> to vector<2x64xf32>
    %cst_91 = arith.constant dense<0.000000e+00> : vector<2x64xf32>
    %353 = tpu.matmul %323, %35, %cst_91 {dimension_numbers = #tpu.dot_dimension_numbers<[1], [0], [0], [1], [0, 0, 1, 1], [], []>} : vector<2x16xf32>, vector<16x64xf32>, vector<2x64xf32> -> vector<2x64xf32>
    %354 = arith.addf %352, %353 : vector<2x64xf32>
    %355 = vector.extract_strided_slice %354 {offsets = [0, 0], sizes = [2, 16], strides = [1, 1]} : vector<2x64xf32> to vector<2x16xf32>
    %356 = arith.negf %355 : vector<2x16xf32>
    %357 = math.exp %356 : vector<2x16xf32>
    %cst_92 = arith.constant 1.000000e+00 : f32
    %358 = vector.broadcast %cst_92 : f32 to vector<2x16xf32>
    %359 = arith.addf %358, %357 : vector<2x16xf32>
    %360 = arith.divf %358, %359 : vector<2x16xf32>
    %361 = vector.extract_strided_slice %354 {offsets = [0, 16], sizes = [2, 16], strides = [1, 1]} : vector<2x64xf32> to vector<2x16xf32>
    %362 = arith.negf %361 : vector<2x16xf32>
    %363 = math.exp %362 : vector<2x16xf32>
    %cst_93 = arith.constant 1.000000e+00 : f32
    %364 = vector.broadcast %cst_93 : f32 to vector<2x16xf32>
    %365 = arith.addf %364, %363 : vector<2x16xf32>
    %366 = arith.divf %364, %365 : vector<2x16xf32>
    %367 = vector.extract_strided_slice %354 {offsets = [0, 32], sizes = [2, 16], strides = [1, 1]} : vector<2x64xf32> to vector<2x16xf32>
    %368 = math.tanh %367 : vector<2x16xf32>
    %369 = vector.extract_strided_slice %354 {offsets = [0, 48], sizes = [2, 16], strides = [1, 1]} : vector<2x64xf32> to vector<2x16xf32>
    %370 = arith.negf %369 : vector<2x16xf32>
    %371 = math.exp %370 : vector<2x16xf32>
    %cst_94 = arith.constant 1.000000e+00 : f32
    %372 = vector.broadcast %cst_94 : f32 to vector<2x16xf32>
    %373 = arith.addf %372, %371 : vector<2x16xf32>
    %374 = arith.divf %372, %373 : vector<2x16xf32>
    %375 = arith.mulf %366, %321 : vector<2x16xf32>
    %376 = arith.mulf %360, %368 : vector<2x16xf32>
    %377 = arith.addf %375, %376 : vector<2x16xf32>
    %378 = math.tanh %377 : vector<2x16xf32>
    %379 = arith.mulf %374, %378 : vector<2x16xf32>
    %380 = vector.extract_strided_slice %33 {offsets = [12, 0], sizes = [2, 64], strides = [1, 1]} : vector<16x128xf32> to vector<2x64xf32>
    %cst_95 = arith.constant dense<0.000000e+00> : vector<2x64xf32>
    %381 = tpu.matmul %351, %34, %cst_95 {dimension_numbers = #tpu.dot_dimension_numbers<[1], [0], [0], [1], [0, 0, 1, 1], [], []>} : vector<2x16xf32>, vector<16x64xf32>, vector<2x64xf32> -> vector<2x64xf32>
    %382 = arith.addf %380, %381 : vector<2x64xf32>
    %383 = vector.extract_strided_slice %382 {offsets = [0, 0], sizes = [2, 16], strides = [1, 1]} : vector<2x64xf32> to vector<2x16xf32>
    %384 = arith.negf %383 : vector<2x16xf32>
    %385 = math.exp %384 : vector<2x16xf32>
    %cst_96 = arith.constant 1.000000e+00 : f32
    %386 = vector.broadcast %cst_96 : f32 to vector<2x16xf32>
    %387 = arith.addf %386, %385 : vector<2x16xf32>
    %388 = arith.divf %386, %387 : vector<2x16xf32>
    %389 = vector.extract_strided_slice %382 {offsets = [0, 16], sizes = [2, 16], strides = [1, 1]} : vector<2x64xf32> to vector<2x16xf32>
    %390 = arith.negf %389 : vector<2x16xf32>
    %391 = math.exp %390 : vector<2x16xf32>
    %cst_97 = arith.constant 1.000000e+00 : f32
    %392 = vector.broadcast %cst_97 : f32 to vector<2x16xf32>
    %393 = arith.addf %392, %391 : vector<2x16xf32>
    %394 = arith.divf %392, %393 : vector<2x16xf32>
    %395 = vector.extract_strided_slice %382 {offsets = [0, 32], sizes = [2, 16], strides = [1, 1]} : vector<2x64xf32> to vector<2x16xf32>
    %396 = math.tanh %395 : vector<2x16xf32>
    %397 = vector.extract_strided_slice %382 {offsets = [0, 48], sizes = [2, 16], strides = [1, 1]} : vector<2x64xf32> to vector<2x16xf32>
    %398 = arith.negf %397 : vector<2x16xf32>
    %399 = math.exp %398 : vector<2x16xf32>
    %cst_98 = arith.constant 1.000000e+00 : f32
    %400 = vector.broadcast %cst_98 : f32 to vector<2x16xf32>
    %401 = arith.addf %400, %399 : vector<2x16xf32>
    %402 = arith.divf %400, %401 : vector<2x16xf32>
    %403 = arith.mulf %394, %349 : vector<2x16xf32>
    %404 = arith.mulf %388, %396 : vector<2x16xf32>
    %405 = arith.addf %403, %404 : vector<2x16xf32>
    %406 = math.tanh %405 : vector<2x16xf32>
    %407 = arith.mulf %402, %406 : vector<2x16xf32>
    %408 = vector.extract_strided_slice %33 {offsets = [2, 64], sizes = [2, 64], strides = [1, 1]} : vector<16x128xf32> to vector<2x64xf32>
    %cst_99 = arith.constant dense<0.000000e+00> : vector<2x64xf32>
    %409 = tpu.matmul %379, %35, %cst_99 {dimension_numbers = #tpu.dot_dimension_numbers<[1], [0], [0], [1], [0, 0, 1, 1], [], []>} : vector<2x16xf32>, vector<16x64xf32>, vector<2x64xf32> -> vector<2x64xf32>
    %410 = arith.addf %408, %409 : vector<2x64xf32>
    %411 = vector.extract_strided_slice %410 {offsets = [0, 0], sizes = [2, 16], strides = [1, 1]} : vector<2x64xf32> to vector<2x16xf32>
    %412 = arith.negf %411 : vector<2x16xf32>
    %413 = math.exp %412 : vector<2x16xf32>
    %cst_100 = arith.constant 1.000000e+00 : f32
    %414 = vector.broadcast %cst_100 : f32 to vector<2x16xf32>
    %415 = arith.addf %414, %413 : vector<2x16xf32>
    %416 = arith.divf %414, %415 : vector<2x16xf32>
    %417 = vector.extract_strided_slice %410 {offsets = [0, 16], sizes = [2, 16], strides = [1, 1]} : vector<2x64xf32> to vector<2x16xf32>
    %418 = arith.negf %417 : vector<2x16xf32>
    %419 = math.exp %418 : vector<2x16xf32>
    %cst_101 = arith.constant 1.000000e+00 : f32
    %420 = vector.broadcast %cst_101 : f32 to vector<2x16xf32>
    %421 = arith.addf %420, %419 : vector<2x16xf32>
    %422 = arith.divf %420, %421 : vector<2x16xf32>
    %423 = vector.extract_strided_slice %410 {offsets = [0, 32], sizes = [2, 16], strides = [1, 1]} : vector<2x64xf32> to vector<2x16xf32>
    %424 = math.tanh %423 : vector<2x16xf32>
    %425 = vector.extract_strided_slice %410 {offsets = [0, 48], sizes = [2, 16], strides = [1, 1]} : vector<2x64xf32> to vector<2x16xf32>
    %426 = arith.negf %425 : vector<2x16xf32>
    %427 = math.exp %426 : vector<2x16xf32>
    %cst_102 = arith.constant 1.000000e+00 : f32
    %428 = vector.broadcast %cst_102 : f32 to vector<2x16xf32>
    %429 = arith.addf %428, %427 : vector<2x16xf32>
    %430 = arith.divf %428, %429 : vector<2x16xf32>
    %431 = arith.mulf %422, %377 : vector<2x16xf32>
    %432 = arith.mulf %416, %424 : vector<2x16xf32>
    %433 = arith.addf %431, %432 : vector<2x16xf32>
    %434 = math.tanh %433 : vector<2x16xf32>
    %435 = arith.mulf %430, %434 : vector<2x16xf32>
    %436 = vector.extract_strided_slice %33 {offsets = [14, 0], sizes = [2, 64], strides = [1, 1]} : vector<16x128xf32> to vector<2x64xf32>
    %cst_103 = arith.constant dense<0.000000e+00> : vector<2x64xf32>
    %437 = tpu.matmul %407, %34, %cst_103 {dimension_numbers = #tpu.dot_dimension_numbers<[1], [0], [0], [1], [0, 0, 1, 1], [], []>} : vector<2x16xf32>, vector<16x64xf32>, vector<2x64xf32> -> vector<2x64xf32>
    %438 = arith.addf %436, %437 : vector<2x64xf32>
    %439 = vector.extract_strided_slice %438 {offsets = [0, 0], sizes = [2, 16], strides = [1, 1]} : vector<2x64xf32> to vector<2x16xf32>
    %440 = arith.negf %439 : vector<2x16xf32>
    %441 = math.exp %440 : vector<2x16xf32>
    %cst_104 = arith.constant 1.000000e+00 : f32
    %442 = vector.broadcast %cst_104 : f32 to vector<2x16xf32>
    %443 = arith.addf %442, %441 : vector<2x16xf32>
    %444 = arith.divf %442, %443 : vector<2x16xf32>
    %445 = vector.extract_strided_slice %438 {offsets = [0, 16], sizes = [2, 16], strides = [1, 1]} : vector<2x64xf32> to vector<2x16xf32>
    %446 = arith.negf %445 : vector<2x16xf32>
    %447 = math.exp %446 : vector<2x16xf32>
    %cst_105 = arith.constant 1.000000e+00 : f32
    %448 = vector.broadcast %cst_105 : f32 to vector<2x16xf32>
    %449 = arith.addf %448, %447 : vector<2x16xf32>
    %450 = arith.divf %448, %449 : vector<2x16xf32>
    %451 = vector.extract_strided_slice %438 {offsets = [0, 32], sizes = [2, 16], strides = [1, 1]} : vector<2x64xf32> to vector<2x16xf32>
    %452 = math.tanh %451 : vector<2x16xf32>
    %453 = vector.extract_strided_slice %438 {offsets = [0, 48], sizes = [2, 16], strides = [1, 1]} : vector<2x64xf32> to vector<2x16xf32>
    %454 = arith.negf %453 : vector<2x16xf32>
    %455 = math.exp %454 : vector<2x16xf32>
    %cst_106 = arith.constant 1.000000e+00 : f32
    %456 = vector.broadcast %cst_106 : f32 to vector<2x16xf32>
    %457 = arith.addf %456, %455 : vector<2x16xf32>
    %458 = arith.divf %456, %457 : vector<2x16xf32>
    %459 = arith.mulf %450, %405 : vector<2x16xf32>
    %460 = arith.mulf %444, %452 : vector<2x16xf32>
    %461 = arith.addf %459, %460 : vector<2x16xf32>
    %462 = math.tanh %461 : vector<2x16xf32>
    %463 = arith.mulf %458, %462 : vector<2x16xf32>
    %464 = vector.extract_strided_slice %33 {offsets = [0, 64], sizes = [2, 64], strides = [1, 1]} : vector<16x128xf32> to vector<2x64xf32>
    %cst_107 = arith.constant dense<0.000000e+00> : vector<2x64xf32>
    %465 = tpu.matmul %435, %35, %cst_107 {dimension_numbers = #tpu.dot_dimension_numbers<[1], [0], [0], [1], [0, 0, 1, 1], [], []>} : vector<2x16xf32>, vector<16x64xf32>, vector<2x64xf32> -> vector<2x64xf32>
    %466 = arith.addf %464, %465 : vector<2x64xf32>
    %467 = vector.extract_strided_slice %466 {offsets = [0, 0], sizes = [2, 16], strides = [1, 1]} : vector<2x64xf32> to vector<2x16xf32>
    %468 = arith.negf %467 : vector<2x16xf32>
    %469 = math.exp %468 : vector<2x16xf32>
    %cst_108 = arith.constant 1.000000e+00 : f32
    %470 = vector.broadcast %cst_108 : f32 to vector<2x16xf32>
    %471 = arith.addf %470, %469 : vector<2x16xf32>
    %472 = arith.divf %470, %471 : vector<2x16xf32>
    %473 = vector.extract_strided_slice %466 {offsets = [0, 16], sizes = [2, 16], strides = [1, 1]} : vector<2x64xf32> to vector<2x16xf32>
    %474 = arith.negf %473 : vector<2x16xf32>
    %475 = math.exp %474 : vector<2x16xf32>
    %cst_109 = arith.constant 1.000000e+00 : f32
    %476 = vector.broadcast %cst_109 : f32 to vector<2x16xf32>
    %477 = arith.addf %476, %475 : vector<2x16xf32>
    %478 = arith.divf %476, %477 : vector<2x16xf32>
    %479 = vector.extract_strided_slice %466 {offsets = [0, 32], sizes = [2, 16], strides = [1, 1]} : vector<2x64xf32> to vector<2x16xf32>
    %480 = math.tanh %479 : vector<2x16xf32>
    %481 = vector.extract_strided_slice %466 {offsets = [0, 48], sizes = [2, 16], strides = [1, 1]} : vector<2x64xf32> to vector<2x16xf32>
    %482 = arith.negf %481 : vector<2x16xf32>
    %483 = math.exp %482 : vector<2x16xf32>
    %cst_110 = arith.constant 1.000000e+00 : f32
    %484 = vector.broadcast %cst_110 : f32 to vector<2x16xf32>
    %485 = arith.addf %484, %483 : vector<2x16xf32>
    %486 = arith.divf %484, %485 : vector<2x16xf32>
    %487 = arith.mulf %478, %433 : vector<2x16xf32>
    %488 = arith.mulf %472, %480 : vector<2x16xf32>
    %489 = arith.addf %487, %488 : vector<2x16xf32>
    %490 = math.tanh %489 : vector<2x16xf32>
    %491 = arith.mulf %486, %490 : vector<2x16xf32>
    %492 = tpu.concatenate %71, %491 in 1 : vector<2x16xf32>, vector<2x16xf32> -> vector<2x32xf32>
    %493 = tpu.concatenate %127, %435 in 1 : vector<2x16xf32>, vector<2x16xf32> -> vector<2x32xf32>
    %494 = tpu.concatenate %183, %379 in 1 : vector<2x16xf32>, vector<2x16xf32> -> vector<2x32xf32>
    %495 = tpu.concatenate %239, %323 in 1 : vector<2x16xf32>, vector<2x16xf32> -> vector<2x32xf32>
    %496 = tpu.concatenate %295, %267 in 1 : vector<2x16xf32>, vector<2x16xf32> -> vector<2x32xf32>
    %497 = tpu.concatenate %351, %211 in 1 : vector<2x16xf32>, vector<2x16xf32> -> vector<2x32xf32>
    %498 = tpu.concatenate %407, %155 in 1 : vector<2x16xf32>, vector<2x16xf32> -> vector<2x32xf32>
    %499 = tpu.concatenate %463, %99 in 1 : vector<2x16xf32>, vector<2x16xf32> -> vector<2x32xf32>
    %500 = tpu.concatenate %492, %493, %494, %495, %496, %497, %498, %499 in 0 : vector<2x32xf32>, vector<2x32xf32>, vector<2x32xf32>, vector<2x32xf32>, vector<2x32xf32>, vector<2x32xf32>, vector<2x32xf32>, vector<2x32xf32> -> vector<16x32xf32>
    %c0_111 = arith.constant 0 : index
    %c0_112 = arith.constant 0 : index
    %501 = vector.load %arg14[%c0_111, %c0_112] : memref<32x128xf32, #tpu.memory_space<vmem>>, vector<32x128xf32>
    %cst_113 = arith.constant dense<0.000000e+00> : vector<16x128xf32>
    %502 = tpu.matmul %500, %501, %cst_113 {dimension_numbers = #tpu.dot_dimension_numbers<[1], [0], [0], [1], [0, 0, 1, 1], [], []>} : vector<16x32xf32>, vector<32x128xf32>, vector<16x128xf32> -> vector<16x128xf32>
    %c0_114 = arith.constant 0 : index
    %c0_115 = arith.constant 0 : index
    %503 = vector.load %arg17[%c0_114, %c0_115] : memref<1x128xf32, #tpu.memory_space<vmem>>, vector<1x128xf32>
    %504 = vector.broadcast %503 : vector<1x128xf32> to vector<16x128xf32>
    %505 = arith.addf %502, %504 : vector<16x128xf32>
    %c0_116 = arith.constant 0 : index
    %c0_117 = arith.constant 0 : index
    %506 = vector.load %arg15[%c0_116, %c0_117] : memref<16x64xf32, #tpu.memory_space<vmem>>, vector<16x64xf32>
    %c0_118 = arith.constant 0 : index
    %c0_119 = arith.constant 0 : index
    %507 = vector.load %arg16[%c0_118, %c0_119] : memref<16x64xf32, #tpu.memory_space<vmem>>, vector<16x64xf32>
    %c2 = arith.constant 2 : index
    %c0_120 = arith.constant 0 : index
    %c0_121 = arith.constant 0 : index
    %508 = vector.load %arg18[%c2, %c0_120, %c0_121] : memref<4x2x16xf32, #tpu.memory_space<vmem>>, vector<1x2x16xf32>
    %509 = vector.shape_cast %508 : vector<1x2x16xf32> to vector<2x16xf32>
    %c2_122 = arith.constant 2 : index
    %c0_123 = arith.constant 0 : index
    %c0_124 = arith.constant 0 : index
    %510 = vector.load %arg19[%c2_122, %c0_123, %c0_124] : memref<4x2x16xf32, #tpu.memory_space<vmem>>, vector<1x2x16xf32>
    %511 = vector.shape_cast %510 : vector<1x2x16xf32> to vector<2x16xf32>
    %c3 = arith.constant 3 : index
    %c0_125 = arith.constant 0 : index
    %c0_126 = arith.constant 0 : index
    %512 = vector.load %arg18[%c3, %c0_125, %c0_126] : memref<4x2x16xf32, #tpu.memory_space<vmem>>, vector<1x2x16xf32>
    %513 = vector.shape_cast %512 : vector<1x2x16xf32> to vector<2x16xf32>
    %c3_127 = arith.constant 3 : index
    %c0_128 = arith.constant 0 : index
    %c0_129 = arith.constant 0 : index
    %514 = vector.load %arg19[%c3_127, %c0_128, %c0_129] : memref<4x2x16xf32, #tpu.memory_space<vmem>>, vector<1x2x16xf32>
    %515 = vector.shape_cast %514 : vector<1x2x16xf32> to vector<2x16xf32>
    %516 = vector.extract_strided_slice %505 {offsets = [0, 0], sizes = [2, 64], strides = [1, 1]} : vector<16x128xf32> to vector<2x64xf32>
    %cst_130 = arith.constant dense<0.000000e+00> : vector<2x64xf32>
    %517 = tpu.matmul %509, %506, %cst_130 {dimension_numbers = #tpu.dot_dimension_numbers<[1], [0], [0], [1], [0, 0, 1, 1], [], []>} : vector<2x16xf32>, vector<16x64xf32>, vector<2x64xf32> -> vector<2x64xf32>
    %518 = arith.addf %516, %517 : vector<2x64xf32>
    %519 = vector.extract_strided_slice %518 {offsets = [0, 0], sizes = [2, 16], strides = [1, 1]} : vector<2x64xf32> to vector<2x16xf32>
    %520 = arith.negf %519 : vector<2x16xf32>
    %521 = math.exp %520 : vector<2x16xf32>
    %cst_131 = arith.constant 1.000000e+00 : f32
    %522 = vector.broadcast %cst_131 : f32 to vector<2x16xf32>
    %523 = arith.addf %522, %521 : vector<2x16xf32>
    %524 = arith.divf %522, %523 : vector<2x16xf32>
    %525 = vector.extract_strided_slice %518 {offsets = [0, 16], sizes = [2, 16], strides = [1, 1]} : vector<2x64xf32> to vector<2x16xf32>
    %526 = arith.negf %525 : vector<2x16xf32>
    %527 = math.exp %526 : vector<2x16xf32>
    %cst_132 = arith.constant 1.000000e+00 : f32
    %528 = vector.broadcast %cst_132 : f32 to vector<2x16xf32>
    %529 = arith.addf %528, %527 : vector<2x16xf32>
    %530 = arith.divf %528, %529 : vector<2x16xf32>
    %531 = vector.extract_strided_slice %518 {offsets = [0, 32], sizes = [2, 16], strides = [1, 1]} : vector<2x64xf32> to vector<2x16xf32>
    %532 = math.tanh %531 : vector<2x16xf32>
    %533 = vector.extract_strided_slice %518 {offsets = [0, 48], sizes = [2, 16], strides = [1, 1]} : vector<2x64xf32> to vector<2x16xf32>
    %534 = arith.negf %533 : vector<2x16xf32>
    %535 = math.exp %534 : vector<2x16xf32>
    %cst_133 = arith.constant 1.000000e+00 : f32
    %536 = vector.broadcast %cst_133 : f32 to vector<2x16xf32>
    %537 = arith.addf %536, %535 : vector<2x16xf32>
    %538 = arith.divf %536, %537 : vector<2x16xf32>
    %539 = arith.mulf %530, %511 : vector<2x16xf32>
    %540 = arith.mulf %524, %532 : vector<2x16xf32>
    %541 = arith.addf %539, %540 : vector<2x16xf32>
    %542 = math.tanh %541 : vector<2x16xf32>
    %543 = arith.mulf %538, %542 : vector<2x16xf32>
    %544 = vector.extract_strided_slice %505 {offsets = [2, 0], sizes = [2, 64], strides = [1, 1]} : vector<16x128xf32> to vector<2x64xf32>
    %cst_134 = arith.constant dense<0.000000e+00> : vector<2x64xf32>
    %545 = tpu.matmul %543, %506, %cst_134 {dimension_numbers = #tpu.dot_dimension_numbers<[1], [0], [0], [1], [0, 0, 1, 1], [], []>} : vector<2x16xf32>, vector<16x64xf32>, vector<2x64xf32> -> vector<2x64xf32>
    %546 = arith.addf %544, %545 : vector<2x64xf32>
    %547 = vector.extract_strided_slice %546 {offsets = [0, 0], sizes = [2, 16], strides = [1, 1]} : vector<2x64xf32> to vector<2x16xf32>
    %548 = arith.negf %547 : vector<2x16xf32>
    %549 = math.exp %548 : vector<2x16xf32>
    %cst_135 = arith.constant 1.000000e+00 : f32
    %550 = vector.broadcast %cst_135 : f32 to vector<2x16xf32>
    %551 = arith.addf %550, %549 : vector<2x16xf32>
    %552 = arith.divf %550, %551 : vector<2x16xf32>
    %553 = vector.extract_strided_slice %546 {offsets = [0, 16], sizes = [2, 16], strides = [1, 1]} : vector<2x64xf32> to vector<2x16xf32>
    %554 = arith.negf %553 : vector<2x16xf32>
    %555 = math.exp %554 : vector<2x16xf32>
    %cst_136 = arith.constant 1.000000e+00 : f32
    %556 = vector.broadcast %cst_136 : f32 to vector<2x16xf32>
    %557 = arith.addf %556, %555 : vector<2x16xf32>
    %558 = arith.divf %556, %557 : vector<2x16xf32>
    %559 = vector.extract_strided_slice %546 {offsets = [0, 32], sizes = [2, 16], strides = [1, 1]} : vector<2x64xf32> to vector<2x16xf32>
    %560 = math.tanh %559 : vector<2x16xf32>
    %561 = vector.extract_strided_slice %546 {offsets = [0, 48], sizes = [2, 16], strides = [1, 1]} : vector<2x64xf32> to vector<2x16xf32>
    %562 = arith.negf %561 : vector<2x16xf32>
    %563 = math.exp %562 : vector<2x16xf32>
    %cst_137 = arith.constant 1.000000e+00 : f32
    %564 = vector.broadcast %cst_137 : f32 to vector<2x16xf32>
    %565 = arith.addf %564, %563 : vector<2x16xf32>
    %566 = arith.divf %564, %565 : vector<2x16xf32>
    %567 = arith.mulf %558, %541 : vector<2x16xf32>
    %568 = arith.mulf %552, %560 : vector<2x16xf32>
    %569 = arith.addf %567, %568 : vector<2x16xf32>
    %570 = math.tanh %569 : vector<2x16xf32>
    %571 = arith.mulf %566, %570 : vector<2x16xf32>
    %572 = vector.extract_strided_slice %505 {offsets = [4, 0], sizes = [2, 64], strides = [1, 1]} : vector<16x128xf32> to vector<2x64xf32>
    %cst_138 = arith.constant dense<0.000000e+00> : vector<2x64xf32>
    %573 = tpu.matmul %571, %506, %cst_138 {dimension_numbers = #tpu.dot_dimension_numbers<[1], [0], [0], [1], [0, 0, 1, 1], [], []>} : vector<2x16xf32>, vector<16x64xf32>, vector<2x64xf32> -> vector<2x64xf32>
    %574 = arith.addf %572, %573 : vector<2x64xf32>
    %575 = vector.extract_strided_slice %574 {offsets = [0, 0], sizes = [2, 16], strides = [1, 1]} : vector<2x64xf32> to vector<2x16xf32>
    %576 = arith.negf %575 : vector<2x16xf32>
    %577 = math.exp %576 : vector<2x16xf32>
    %cst_139 = arith.constant 1.000000e+00 : f32
    %578 = vector.broadcast %cst_139 : f32 to vector<2x16xf32>
    %579 = arith.addf %578, %577 : vector<2x16xf32>
    %580 = arith.divf %578, %579 : vector<2x16xf32>
    %581 = vector.extract_strided_slice %574 {offsets = [0, 16], sizes = [2, 16], strides = [1, 1]} : vector<2x64xf32> to vector<2x16xf32>
    %582 = arith.negf %581 : vector<2x16xf32>
    %583 = math.exp %582 : vector<2x16xf32>
    %cst_140 = arith.constant 1.000000e+00 : f32
    %584 = vector.broadcast %cst_140 : f32 to vector<2x16xf32>
    %585 = arith.addf %584, %583 : vector<2x16xf32>
    %586 = arith.divf %584, %585 : vector<2x16xf32>
    %587 = vector.extract_strided_slice %574 {offsets = [0, 32], sizes = [2, 16], strides = [1, 1]} : vector<2x64xf32> to vector<2x16xf32>
    %588 = math.tanh %587 : vector<2x16xf32>
    %589 = vector.extract_strided_slice %574 {offsets = [0, 48], sizes = [2, 16], strides = [1, 1]} : vector<2x64xf32> to vector<2x16xf32>
    %590 = arith.negf %589 : vector<2x16xf32>
    %591 = math.exp %590 : vector<2x16xf32>
    %cst_141 = arith.constant 1.000000e+00 : f32
    %592 = vector.broadcast %cst_141 : f32 to vector<2x16xf32>
    %593 = arith.addf %592, %591 : vector<2x16xf32>
    %594 = arith.divf %592, %593 : vector<2x16xf32>
    %595 = arith.mulf %586, %569 : vector<2x16xf32>
    %596 = arith.mulf %580, %588 : vector<2x16xf32>
    %597 = arith.addf %595, %596 : vector<2x16xf32>
    %598 = math.tanh %597 : vector<2x16xf32>
    %599 = arith.mulf %594, %598 : vector<2x16xf32>
    %600 = vector.extract_strided_slice %505 {offsets = [6, 0], sizes = [2, 64], strides = [1, 1]} : vector<16x128xf32> to vector<2x64xf32>
    %cst_142 = arith.constant dense<0.000000e+00> : vector<2x64xf32>
    %601 = tpu.matmul %599, %506, %cst_142 {dimension_numbers = #tpu.dot_dimension_numbers<[1], [0], [0], [1], [0, 0, 1, 1], [], []>} : vector<2x16xf32>, vector<16x64xf32>, vector<2x64xf32> -> vector<2x64xf32>
    %602 = arith.addf %600, %601 : vector<2x64xf32>
    %603 = vector.extract_strided_slice %602 {offsets = [0, 0], sizes = [2, 16], strides = [1, 1]} : vector<2x64xf32> to vector<2x16xf32>
    %604 = arith.negf %603 : vector<2x16xf32>
    %605 = math.exp %604 : vector<2x16xf32>
    %cst_143 = arith.constant 1.000000e+00 : f32
    %606 = vector.broadcast %cst_143 : f32 to vector<2x16xf32>
    %607 = arith.addf %606, %605 : vector<2x16xf32>
    %608 = arith.divf %606, %607 : vector<2x16xf32>
    %609 = vector.extract_strided_slice %602 {offsets = [0, 16], sizes = [2, 16], strides = [1, 1]} : vector<2x64xf32> to vector<2x16xf32>
    %610 = arith.negf %609 : vector<2x16xf32>
    %611 = math.exp %610 : vector<2x16xf32>
    %cst_144 = arith.constant 1.000000e+00 : f32
    %612 = vector.broadcast %cst_144 : f32 to vector<2x16xf32>
    %613 = arith.addf %612, %611 : vector<2x16xf32>
    %614 = arith.divf %612, %613 : vector<2x16xf32>
    %615 = vector.extract_strided_slice %602 {offsets = [0, 32], sizes = [2, 16], strides = [1, 1]} : vector<2x64xf32> to vector<2x16xf32>
    %616 = math.tanh %615 : vector<2x16xf32>
    %617 = vector.extract_strided_slice %602 {offsets = [0, 48], sizes = [2, 16], strides = [1, 1]} : vector<2x64xf32> to vector<2x16xf32>
    %618 = arith.negf %617 : vector<2x16xf32>
    %619 = math.exp %618 : vector<2x16xf32>
    %cst_145 = arith.constant 1.000000e+00 : f32
    %620 = vector.broadcast %cst_145 : f32 to vector<2x16xf32>
    %621 = arith.addf %620, %619 : vector<2x16xf32>
    %622 = arith.divf %620, %621 : vector<2x16xf32>
    %623 = arith.mulf %614, %597 : vector<2x16xf32>
    %624 = arith.mulf %608, %616 : vector<2x16xf32>
    %625 = arith.addf %623, %624 : vector<2x16xf32>
    %626 = math.tanh %625 : vector<2x16xf32>
    %627 = arith.mulf %622, %626 : vector<2x16xf32>
    %628 = vector.extract_strided_slice %505 {offsets = [8, 0], sizes = [2, 64], strides = [1, 1]} : vector<16x128xf32> to vector<2x64xf32>
    %cst_146 = arith.constant dense<0.000000e+00> : vector<2x64xf32>
    %629 = tpu.matmul %627, %506, %cst_146 {dimension_numbers = #tpu.dot_dimension_numbers<[1], [0], [0], [1], [0, 0, 1, 1], [], []>} : vector<2x16xf32>, vector<16x64xf32>, vector<2x64xf32> -> vector<2x64xf32>
    %630 = arith.addf %628, %629 : vector<2x64xf32>
    %631 = vector.extract_strided_slice %630 {offsets = [0, 0], sizes = [2, 16], strides = [1, 1]} : vector<2x64xf32> to vector<2x16xf32>
    %632 = arith.negf %631 : vector<2x16xf32>
    %633 = math.exp %632 : vector<2x16xf32>
    %cst_147 = arith.constant 1.000000e+00 : f32
    %634 = vector.broadcast %cst_147 : f32 to vector<2x16xf32>
    %635 = arith.addf %634, %633 : vector<2x16xf32>
    %636 = arith.divf %634, %635 : vector<2x16xf32>
    %637 = vector.extract_strided_slice %630 {offsets = [0, 16], sizes = [2, 16], strides = [1, 1]} : vector<2x64xf32> to vector<2x16xf32>
    %638 = arith.negf %637 : vector<2x16xf32>
    %639 = math.exp %638 : vector<2x16xf32>
    %cst_148 = arith.constant 1.000000e+00 : f32
    %640 = vector.broadcast %cst_148 : f32 to vector<2x16xf32>
    %641 = arith.addf %640, %639 : vector<2x16xf32>
    %642 = arith.divf %640, %641 : vector<2x16xf32>
    %643 = vector.extract_strided_slice %630 {offsets = [0, 32], sizes = [2, 16], strides = [1, 1]} : vector<2x64xf32> to vector<2x16xf32>
    %644 = math.tanh %643 : vector<2x16xf32>
    %645 = vector.extract_strided_slice %630 {offsets = [0, 48], sizes = [2, 16], strides = [1, 1]} : vector<2x64xf32> to vector<2x16xf32>
    %646 = arith.negf %645 : vector<2x16xf32>
    %647 = math.exp %646 : vector<2x16xf32>
    %cst_149 = arith.constant 1.000000e+00 : f32
    %648 = vector.broadcast %cst_149 : f32 to vector<2x16xf32>
    %649 = arith.addf %648, %647 : vector<2x16xf32>
    %650 = arith.divf %648, %649 : vector<2x16xf32>
    %651 = arith.mulf %642, %625 : vector<2x16xf32>
    %652 = arith.mulf %636, %644 : vector<2x16xf32>
    %653 = arith.addf %651, %652 : vector<2x16xf32>
    %654 = math.tanh %653 : vector<2x16xf32>
    %655 = arith.mulf %650, %654 : vector<2x16xf32>
    %656 = vector.extract_strided_slice %505 {offsets = [10, 0], sizes = [2, 64], strides = [1, 1]} : vector<16x128xf32> to vector<2x64xf32>
    %cst_150 = arith.constant dense<0.000000e+00> : vector<2x64xf32>
    %657 = tpu.matmul %655, %506, %cst_150 {dimension_numbers = #tpu.dot_dimension_numbers<[1], [0], [0], [1], [0, 0, 1, 1], [], []>} : vector<2x16xf32>, vector<16x64xf32>, vector<2x64xf32> -> vector<2x64xf32>
    %658 = arith.addf %656, %657 : vector<2x64xf32>
    %659 = vector.extract_strided_slice %658 {offsets = [0, 0], sizes = [2, 16], strides = [1, 1]} : vector<2x64xf32> to vector<2x16xf32>
    %660 = arith.negf %659 : vector<2x16xf32>
    %661 = math.exp %660 : vector<2x16xf32>
    %cst_151 = arith.constant 1.000000e+00 : f32
    %662 = vector.broadcast %cst_151 : f32 to vector<2x16xf32>
    %663 = arith.addf %662, %661 : vector<2x16xf32>
    %664 = arith.divf %662, %663 : vector<2x16xf32>
    %665 = vector.extract_strided_slice %658 {offsets = [0, 16], sizes = [2, 16], strides = [1, 1]} : vector<2x64xf32> to vector<2x16xf32>
    %666 = arith.negf %665 : vector<2x16xf32>
    %667 = math.exp %666 : vector<2x16xf32>
    %cst_152 = arith.constant 1.000000e+00 : f32
    %668 = vector.broadcast %cst_152 : f32 to vector<2x16xf32>
    %669 = arith.addf %668, %667 : vector<2x16xf32>
    %670 = arith.divf %668, %669 : vector<2x16xf32>
    %671 = vector.extract_strided_slice %658 {offsets = [0, 32], sizes = [2, 16], strides = [1, 1]} : vector<2x64xf32> to vector<2x16xf32>
    %672 = math.tanh %671 : vector<2x16xf32>
    %673 = vector.extract_strided_slice %658 {offsets = [0, 48], sizes = [2, 16], strides = [1, 1]} : vector<2x64xf32> to vector<2x16xf32>
    %674 = arith.negf %673 : vector<2x16xf32>
    %675 = math.exp %674 : vector<2x16xf32>
    %cst_153 = arith.constant 1.000000e+00 : f32
    %676 = vector.broadcast %cst_153 : f32 to vector<2x16xf32>
    %677 = arith.addf %676, %675 : vector<2x16xf32>
    %678 = arith.divf %676, %677 : vector<2x16xf32>
    %679 = arith.mulf %670, %653 : vector<2x16xf32>
    %680 = arith.mulf %664, %672 : vector<2x16xf32>
    %681 = arith.addf %679, %680 : vector<2x16xf32>
    %682 = math.tanh %681 : vector<2x16xf32>
    %683 = arith.mulf %678, %682 : vector<2x16xf32>
    %684 = vector.extract_strided_slice %505 {offsets = [12, 0], sizes = [2, 64], strides = [1, 1]} : vector<16x128xf32> to vector<2x64xf32>
    %cst_154 = arith.constant dense<0.000000e+00> : vector<2x64xf32>
    %685 = tpu.matmul %683, %506, %cst_154 {dimension_numbers = #tpu.dot_dimension_numbers<[1], [0], [0], [1], [0, 0, 1, 1], [], []>} : vector<2x16xf32>, vector<16x64xf32>, vector<2x64xf32> -> vector<2x64xf32>
    %686 = arith.addf %684, %685 : vector<2x64xf32>
    %687 = vector.extract_strided_slice %686 {offsets = [0, 0], sizes = [2, 16], strides = [1, 1]} : vector<2x64xf32> to vector<2x16xf32>
    %688 = arith.negf %687 : vector<2x16xf32>
    %689 = math.exp %688 : vector<2x16xf32>
    %cst_155 = arith.constant 1.000000e+00 : f32
    %690 = vector.broadcast %cst_155 : f32 to vector<2x16xf32>
    %691 = arith.addf %690, %689 : vector<2x16xf32>
    %692 = arith.divf %690, %691 : vector<2x16xf32>
    %693 = vector.extract_strided_slice %686 {offsets = [0, 16], sizes = [2, 16], strides = [1, 1]} : vector<2x64xf32> to vector<2x16xf32>
    %694 = arith.negf %693 : vector<2x16xf32>
    %695 = math.exp %694 : vector<2x16xf32>
    %cst_156 = arith.constant 1.000000e+00 : f32
    %696 = vector.broadcast %cst_156 : f32 to vector<2x16xf32>
    %697 = arith.addf %696, %695 : vector<2x16xf32>
    %698 = arith.divf %696, %697 : vector<2x16xf32>
    %699 = vector.extract_strided_slice %686 {offsets = [0, 32], sizes = [2, 16], strides = [1, 1]} : vector<2x64xf32> to vector<2x16xf32>
    %700 = math.tanh %699 : vector<2x16xf32>
    %701 = vector.extract_strided_slice %686 {offsets = [0, 48], sizes = [2, 16], strides = [1, 1]} : vector<2x64xf32> to vector<2x16xf32>
    %702 = arith.negf %701 : vector<2x16xf32>
    %703 = math.exp %702 : vector<2x16xf32>
    %cst_157 = arith.constant 1.000000e+00 : f32
    %704 = vector.broadcast %cst_157 : f32 to vector<2x16xf32>
    %705 = arith.addf %704, %703 : vector<2x16xf32>
    %706 = arith.divf %704, %705 : vector<2x16xf32>
    %707 = arith.mulf %698, %681 : vector<2x16xf32>
    %708 = arith.mulf %692, %700 : vector<2x16xf32>
    %709 = arith.addf %707, %708 : vector<2x16xf32>
    %710 = math.tanh %709 : vector<2x16xf32>
    %711 = arith.mulf %706, %710 : vector<2x16xf32>
    %712 = vector.extract_strided_slice %505 {offsets = [14, 0], sizes = [2, 64], strides = [1, 1]} : vector<16x128xf32> to vector<2x64xf32>
    %cst_158 = arith.constant dense<0.000000e+00> : vector<2x64xf32>
    %713 = tpu.matmul %711, %506, %cst_158 {dimension_numbers = #tpu.dot_dimension_numbers<[1], [0], [0], [1], [0, 0, 1, 1], [], []>} : vector<2x16xf32>, vector<16x64xf32>, vector<2x64xf32> -> vector<2x64xf32>
    %714 = arith.addf %712, %713 : vector<2x64xf32>
    %715 = vector.extract_strided_slice %714 {offsets = [0, 0], sizes = [2, 16], strides = [1, 1]} : vector<2x64xf32> to vector<2x16xf32>
    %716 = arith.negf %715 : vector<2x16xf32>
    %717 = math.exp %716 : vector<2x16xf32>
    %cst_159 = arith.constant 1.000000e+00 : f32
    %718 = vector.broadcast %cst_159 : f32 to vector<2x16xf32>
    %719 = arith.addf %718, %717 : vector<2x16xf32>
    %720 = arith.divf %718, %719 : vector<2x16xf32>
    %721 = vector.extract_strided_slice %714 {offsets = [0, 16], sizes = [2, 16], strides = [1, 1]} : vector<2x64xf32> to vector<2x16xf32>
    %722 = arith.negf %721 : vector<2x16xf32>
    %723 = math.exp %722 : vector<2x16xf32>
    %cst_160 = arith.constant 1.000000e+00 : f32
    %724 = vector.broadcast %cst_160 : f32 to vector<2x16xf32>
    %725 = arith.addf %724, %723 : vector<2x16xf32>
    %726 = arith.divf %724, %725 : vector<2x16xf32>
    %727 = vector.extract_strided_slice %714 {offsets = [0, 32], sizes = [2, 16], strides = [1, 1]} : vector<2x64xf32> to vector<2x16xf32>
    %728 = math.tanh %727 : vector<2x16xf32>
    %729 = vector.extract_strided_slice %714 {offsets = [0, 48], sizes = [2, 16], strides = [1, 1]} : vector<2x64xf32> to vector<2x16xf32>
    %730 = arith.negf %729 : vector<2x16xf32>
    %731 = math.exp %730 : vector<2x16xf32>
    %cst_161 = arith.constant 1.000000e+00 : f32
    %732 = vector.broadcast %cst_161 : f32 to vector<2x16xf32>
    %733 = arith.addf %732, %731 : vector<2x16xf32>
    %734 = arith.divf %732, %733 : vector<2x16xf32>
    %735 = arith.mulf %726, %709 : vector<2x16xf32>
    %736 = arith.mulf %720, %728 : vector<2x16xf32>
    %737 = arith.addf %735, %736 : vector<2x16xf32>
    %738 = math.tanh %737 : vector<2x16xf32>
    %739 = arith.mulf %734, %738 : vector<2x16xf32>
    %740 = vector.extract_strided_slice %505 {offsets = [14, 64], sizes = [2, 64], strides = [1, 1]} : vector<16x128xf32> to vector<2x64xf32>
    %cst_162 = arith.constant dense<0.000000e+00> : vector<2x64xf32>
    %741 = tpu.matmul %513, %507, %cst_162 {dimension_numbers = #tpu.dot_dimension_numbers<[1], [0], [0], [1], [0, 0, 1, 1], [], []>} : vector<2x16xf32>, vector<16x64xf32>, vector<2x64xf32> -> vector<2x64xf32>
    %742 = arith.addf %740, %741 : vector<2x64xf32>
    %743 = vector.extract_strided_slice %742 {offsets = [0, 0], sizes = [2, 16], strides = [1, 1]} : vector<2x64xf32> to vector<2x16xf32>
    %744 = arith.negf %743 : vector<2x16xf32>
    %745 = math.exp %744 : vector<2x16xf32>
    %cst_163 = arith.constant 1.000000e+00 : f32
    %746 = vector.broadcast %cst_163 : f32 to vector<2x16xf32>
    %747 = arith.addf %746, %745 : vector<2x16xf32>
    %748 = arith.divf %746, %747 : vector<2x16xf32>
    %749 = vector.extract_strided_slice %742 {offsets = [0, 16], sizes = [2, 16], strides = [1, 1]} : vector<2x64xf32> to vector<2x16xf32>
    %750 = arith.negf %749 : vector<2x16xf32>
    %751 = math.exp %750 : vector<2x16xf32>
    %cst_164 = arith.constant 1.000000e+00 : f32
    %752 = vector.broadcast %cst_164 : f32 to vector<2x16xf32>
    %753 = arith.addf %752, %751 : vector<2x16xf32>
    %754 = arith.divf %752, %753 : vector<2x16xf32>
    %755 = vector.extract_strided_slice %742 {offsets = [0, 32], sizes = [2, 16], strides = [1, 1]} : vector<2x64xf32> to vector<2x16xf32>
    %756 = math.tanh %755 : vector<2x16xf32>
    %757 = vector.extract_strided_slice %742 {offsets = [0, 48], sizes = [2, 16], strides = [1, 1]} : vector<2x64xf32> to vector<2x16xf32>
    %758 = arith.negf %757 : vector<2x16xf32>
    %759 = math.exp %758 : vector<2x16xf32>
    %cst_165 = arith.constant 1.000000e+00 : f32
    %760 = vector.broadcast %cst_165 : f32 to vector<2x16xf32>
    %761 = arith.addf %760, %759 : vector<2x16xf32>
    %762 = arith.divf %760, %761 : vector<2x16xf32>
    %763 = arith.mulf %754, %515 : vector<2x16xf32>
    %764 = arith.mulf %748, %756 : vector<2x16xf32>
    %765 = arith.addf %763, %764 : vector<2x16xf32>
    %766 = math.tanh %765 : vector<2x16xf32>
    %767 = arith.mulf %762, %766 : vector<2x16xf32>
    %768 = tpu.concatenate %739, %767 in 1 : vector<2x16xf32>, vector<2x16xf32> -> vector<2x32xf32>
    %cst_166 = arith.constant 0.000000e+00 : f32
    %769 = vector.broadcast %cst_166 : f32 to vector<2x32xf32>
    %770 = arith.maximumf %768, %769 : vector<2x32xf32>
    %c0_167 = arith.constant 0 : index
    %c0_168 = arith.constant 0 : index
    %771 = vector.load %arg20[%c0_167, %c0_168] : memref<32x16xf32, #tpu.memory_space<vmem>>, vector<32x16xf32>
    %cst_169 = arith.constant dense<0.000000e+00> : vector<2x16xf32>
    %772 = tpu.matmul %770, %771, %cst_169 {dimension_numbers = #tpu.dot_dimension_numbers<[1], [0], [0], [1], [0, 0, 1, 1], [], []>} : vector<2x32xf32>, vector<32x16xf32>, vector<2x16xf32> -> vector<2x16xf32>
    %c0_170 = arith.constant 0 : index
    %c0_171 = arith.constant 0 : index
    %773 = vector.load %arg21[%c0_170, %c0_171] : memref<1x16xf32, #tpu.memory_space<vmem>>, vector<1x16xf32>
    %774 = vector.broadcast %773 : vector<1x16xf32> to vector<2x16xf32>
    %775 = arith.addf %772, %774 : vector<2x16xf32>
    %cst_172 = arith.constant 0.000000e+00 : f32
    %776 = vector.broadcast %cst_172 : f32 to vector<2x16xf32>
    %777 = arith.maximumf %775, %776 : vector<2x16xf32>
    %c0_173 = arith.constant 0 : index
    %c0_174 = arith.constant 0 : index
    %778 = vector.load %arg22[%c0_173, %c0_174] : memref<16x8xf32, #tpu.memory_space<vmem>>, vector<16x8xf32>
    %cst_175 = arith.constant dense<0.000000e+00> : vector<2x8xf32>
    %779 = tpu.matmul %777, %778, %cst_175 {dimension_numbers = #tpu.dot_dimension_numbers<[1], [0], [0], [1], [0, 0, 1, 1], [], []>} : vector<2x16xf32>, vector<16x8xf32>, vector<2x8xf32> -> vector<2x8xf32>
    %c0_176 = arith.constant 0 : index
    %c0_177 = arith.constant 0 : index
    %780 = vector.load %arg23[%c0_176, %c0_177] : memref<1x8xf32, #tpu.memory_space<vmem>>, vector<1x8xf32>
    %781 = vector.broadcast %780 : vector<1x8xf32> to vector<2x8xf32>
    %782 = arith.addf %779, %781 : vector<2x8xf32>
    %c0_178 = arith.constant 0 : index
    %c0_179 = arith.constant 0 : index
    %783 = vector.load %arg25[%c0_178, %c0_179] : memref<2x8xf32, #tpu.memory_space<vmem>>, vector<2x8xf32>
    tpu.vector_store %arg25[%c0_178, %c0_179], %782 {strides = array<i32>} : memref<2x8xf32, #tpu.memory_space<vmem>>, vector<2x8xf32>,
    return
  }
}

</mosaic_0001>

<llo_original>
// kernel: psiamese_forward.3
$region0: #{psiamese_forward.3}
  #allocation0 [shape = 'u32[]', space=smem, size = 0x4, offset = 0x4, fixed_abs, tag = 'smem constant byte address 0x4 - core index']
  #allocation1 [shape = 'u32[144,128]{1,0:T(1,128)}', space=vmem, size = 0x12000, scoped, tag = 'internal scratch']
  %s0 = inlined_call_operand.vmem [shape: f32[2,32], index: 0, kind: input, shape index: {}]
  %s1 = inlined_call_operand.vmem [shape: f32[32,32], index: 1, kind: input, shape index: {}]
  %s2 = inlined_call_operand.vmem [shape: f32[1,32], index: 2, kind: input, shape index: {}]
  %s3 = inlined_call_operand.vmem [shape: f32[32,32], index: 3, kind: input, shape index: {}]
  %s4 = inlined_call_operand.vmem [shape: f32[1,32], index: 4, kind: input, shape index: {}]
  %s5 = inlined_call_operand.vmem [shape: f32[32,16], index: 5, kind: input, shape index: {}]
  %s6 = inlined_call_operand.vmem [shape: f32[1,16], index: 6, kind: input, shape index: {}]
  %s7 = inlined_call_operand.vmem [shape: f32[16,8], index: 7, kind: input, shape index: {}]
  %s8 = inlined_call_operand.vmem [shape: f32[1,8], index: 8, kind: input, shape index: {}]
  %s9 = inlined_call_operand.vmem [shape: f32[16,8], index: 9, kind: input, shape index: {}]
  %s10 = inlined_call_operand.vmem [shape: f32[8,128], index: 10, kind: input, shape index: {}]
  %s11 = inlined_call_operand.vmem [shape: f32[16,64], index: 11, kind: input, shape index: {}]
  %s12 = inlined_call_operand.vmem [shape: f32[16,64], index: 12, kind: input, shape index: {}]
  %s13 = inlined_call_operand.vmem [shape: f32[1,128], index: 13, kind: input, shape index: {}]
  %s14 = inlined_call_operand.vmem [shape: f32[32,128], index: 14, kind: input, shape index: {}]
  %s15 = inlined_call_operand.vmem [shape: f32[16,64], index: 15, kind: input, shape index: {}]
  %s16 = inlined_call_operand.vmem [shape: f32[16,64], index: 16, kind: input, shape index: {}]
  %s17 = inlined_call_operand.vmem [shape: f32[1,128], index: 17, kind: input, shape index: {}]
  %s18 = inlined_call_operand.vmem [shape: f32[4,2,16], index: 18, kind: input, shape index: {}]
  %s19 = inlined_call_operand.vmem [shape: f32[4,2,16], index: 19, kind: input, shape index: {}]
  %s20 = inlined_call_operand.vmem [shape: f32[32,16], index: 20, kind: input, shape index: {}]
  %s21 = inlined_call_operand.vmem [shape: f32[1,16], index: 21, kind: input, shape index: {}]
  %s22 = inlined_call_operand.vmem [shape: f32[16,8], index: 22, kind: input, shape index: {}]
  %s23 = inlined_call_operand.vmem [shape: f32[1,8], index: 23, kind: input, shape index: {}]
  %s24 = inlined_call_operand.hbm [shape: f32[2,8], index: 24, kind: output, shape index: {0}]
  %s25 = inlined_call_operand.hbm [shape: f32[2,8], index: 25, kind: output, shape index: {1}]
  %26 = xla_tuple %s24, %s25
  %s27 = sld [smem:[#allocation0]]
  $region114: #{psiamese_forward.3} parent=0
    _
  %s29 = ssub.s32 1, %s27
  %s30 = scalar_select 0, %s29, %s27
  $region1: #{psiamese_forward.3} parent=0
    #allocation2 [shape = 'u8[1024]{0}', space=vmem, size = 0x400, scoped, tag = 'output window, operand 0, single buffered']
    #allocation3 [shape = 's32[1]{0}', space=sflag, size = 0x4, scoped, tag = 'scoped memory for psiamese_forward.3']
    #allocation4 [shape = 'u8[1024]{0}', space=vmem, size = 0x400, scoped, tag = 'output window, operand 1, single buffered']
    #allocation5 [shape = 's32[1]{0}', space=sflag, size = 0x4, scoped, tag = 'scoped memory for psiamese_forward.3']
    %31 = vsyncpa [#allocation3], 0
    %32 = vsyncpa [#allocation5], 0
    // Predicated region
    $region2: #{psiamese_forward.3} parent=1 // pred_check
      _
    $region3: #{psiamese_forward.3} parent=1 // pred_check_branch
      %34 = sbr.rel (0) target = $region5
    $region4: #{psiamese_forward.3} parent=1 // pred_region
      _
    $region5: #{psiamese_forward.3} parent=1 // pred_fallthru
      _
    // Predicated region
    $region6: #{psiamese_forward.3} parent=1 // pred_check
      _
    $region7: #{psiamese_forward.3} parent=1 // pred_check_branch
      %36 = sbr.rel (0) target = $region9
    $region8: #{psiamese_forward.3} parent=1 // pred_region
      _
    $region9: #{psiamese_forward.3} parent=1 // pred_fallthru
      _
    // Predicated region
    $region10: #{psiamese_forward.3} parent=1 // pred_check
      _
    $region11: #{psiamese_forward.3} parent=1 // pred_check_branch
      %38 = sbr.rel (0) target = $region13
    $region12: #{psiamese_forward.3} parent=1 // pred_region
      _
    $region13: #{psiamese_forward.3} parent=1 // pred_fallthru
      _
    // Predicated region
    $region14: #{psiamese_forward.3} parent=1 // pred_check
      _
    $region15: #{psiamese_forward.3} parent=1 // pred_check_branch
      %40 = sbr.rel (0) target = $region17
    $region16: #{psiamese_forward.3} parent=1 // pred_region
      _
    $region17: #{psiamese_forward.3} parent=1 // pred_fallthru
      _
    // Predicated region
    $region18: #{psiamese_forward.3} parent=1 // pred_check
      _
    $region19: #{psiamese_forward.3} parent=1 // pred_check_branch
      %42 = sbr.rel (0) target = $region21
    $region20: #{psiamese_forward.3} parent=1 // pred_region
      _
    $region21: #{psiamese_forward.3} parent=1 // pred_fallthru
      _
    // Predicated region
    $region22: #{psiamese_forward.3} parent=1 // pred_check
      _
    $region23: #{psiamese_forward.3} parent=1 // pred_check_branch
      %44 = sbr.rel (0) target = $region25
    $region24: #{psiamese_forward.3} parent=1 // pred_region
      _
    $region25: #{psiamese_forward.3} parent=1 // pred_fallthru
      _
    // Predicated region
    $region26: #{psiamese_forward.3} parent=1 // pred_check
      _
    $region27: #{psiamese_forward.3} parent=1 // pred_check_branch
      %46 = sbr.rel (0) target = $region29
    $region28: #{psiamese_forward.3} parent=1 // pred_region
      _
    $region29: #{psiamese_forward.3} parent=1 // pred_fallthru
      _
    // Predicated region
    $region30: #{psiamese_forward.3} parent=1 // pred_check
      _
    $region31: #{psiamese_forward.3} parent=1 // pred_check_branch
      %48 = sbr.rel (0) target = $region33
    $region32: #{psiamese_forward.3} parent=1 // pred_region
      _
    $region33: #{psiamese_forward.3} parent=1 // pred_fallthru
      _
    // Predicated region
    $region34: #{psiamese_forward.3} parent=1 // pred_check
      _
    $region35: #{psiamese_forward.3} parent=1 // pred_check_branch
      %50 = sbr.rel (0) target = $region37
    $region36: #{psiamese_forward.3} parent=1 // pred_region
      _
    $region37: #{psiamese_forward.3} parent=1 // pred_fallthru
      _
    // Predicated region
    $region38: #{psiamese_forward.3} parent=1 // pred_check
      _
    $region39: #{psiamese_forward.3} parent=1 // pred_check_branch
      %52 = sbr.rel (0) target = $region41
    $region40: #{psiamese_forward.3} parent=1 // pred_region
      _
    $region41: #{psiamese_forward.3} parent=1 // pred_fallthru
      _
    // Predicated region
    $region42: #{psiamese_forward.3} parent=1 // pred_check
      _
    $region43: #{psiamese_forward.3} parent=1 // pred_check_branch
      %54 = sbr.rel (0) target = $region45
    $region44: #{psiamese_forward.3} parent=1 // pred_region
      _
    $region45: #{psiamese_forward.3} parent=1 // pred_fallthru
      _
    // Predicated region
    $region46: #{psiamese_forward.3} parent=1 // pred_check
      _
    $region47: #{psiamese_forward.3} parent=1 // pred_check_branch
      %56 = sbr.rel (0) target = $region49
    $region48: #{psiamese_forward.3} parent=1 // pred_region
      _
    $region49: #{psiamese_forward.3} parent=1 // pred_fallthru
      _
    // Predicated region
    $region50: #{psiamese_forward.3} parent=1 // pred_check
      _
    $region51: #{psiamese_forward.3} parent=1 // pred_check_branch
      %58 = sbr.rel (0) target = $region53
    $region52: #{psiamese_forward.3} parent=1 // pred_region
      _
    $region53: #{psiamese_forward.3} parent=1 // pred_fallthru
      _
    // Predicated region
    $region54: #{psiamese_forward.3} parent=1 // pred_check
      _
    $region55: #{psiamese_forward.3} parent=1 // pred_check_branch
      %60 = sbr.rel (0) target = $region57
    $region56: #{psiamese_forward.3} parent=1 // pred_region
      _
    $region57: #{psiamese_forward.3} parent=1 // pred_fallthru
      _
    // Predicated region
    $region58: #{psiamese_forward.3} parent=1 // pred_check
      _
    $region59: #{psiamese_forward.3} parent=1 // pred_check_branch
      %62 = sbr.rel (0) target = $region61
    $region60: #{psiamese_forward.3} parent=1 // pred_region
      _
    $region61: #{psiamese_forward.3} parent=1 // pred_fallthru
      _
    // Predicated region
    $region62: #{psiamese_forward.3} parent=1 // pred_check
      _
    $region63: #{psiamese_forward.3} parent=1 // pred_check_branch
      %64 = sbr.rel (0) target = $region65
    $region64: #{psiamese_forward.3} parent=1 // pred_region
      _
    $region65: #{psiamese_forward.3} parent=1 // pred_fallthru
      _
    // Predicated region
    $region66: #{psiamese_forward.3} parent=1 // pred_check
      _
    $region67: #{psiamese_forward.3} parent=1 // pred_check_branch
      %66 = sbr.rel (0) target = $region69
    $region68: #{psiamese_forward.3} parent=1 // pred_region
      _
    $region69: #{psiamese_forward.3} parent=1 // pred_fallthru
      _
    // Predicated region
    $region70: #{psiamese_forward.3} parent=1 // pred_check
      _
    $region71: #{psiamese_forward.3} parent=1 // pred_check_branch
      %68 = sbr.rel (0) target = $region73
    $region72: #{psiamese_forward.3} parent=1 // pred_region
      _
    $region73: #{psiamese_forward.3} parent=1 // pred_fallthru
      _
    // Predicated region
    $region74: #{psiamese_forward.3} parent=1 // pred_check
      _
    $region75: #{psiamese_forward.3} parent=1 // pred_check_branch
      %70 = sbr.rel (0) target = $region77
    $region76: #{psiamese_forward.3} parent=1 // pred_region
      _
    $region77: #{psiamese_forward.3} parent=1 // pred_fallthru
      _
    // Predicated region
    $region78: #{psiamese_forward.3} parent=1 // pred_check
      _
    $region79: #{psiamese_forward.3} parent=1 // pred_check_branch
      %72 = sbr.rel (0) target = $region81
    $region80: #{psiamese_forward.3} parent=1 // pred_region
      _
    $region81: #{psiamese_forward.3} parent=1 // pred_fallthru
      _
    // Predicated region
    $region82: #{psiamese_forward.3} parent=1 // pred_check
      _
    $region83: #{psiamese_forward.3} parent=1 // pred_check_branch
      %74 = sbr.rel (0) target = $region85
    $region84: #{psiamese_forward.3} parent=1 // pred_region
      _
    $region85: #{psiamese_forward.3} parent=1 // pred_fallthru
      _
    // Predicated region
    $region86: #{psiamese_forward.3} parent=1 // pred_check
      _
    $region87: #{psiamese_forward.3} parent=1 // pred_check_branch
      %76 = sbr.rel (0) target = $region89
    $region88: #{psiamese_forward.3} parent=1 // pred_region
      _
    $region89: #{psiamese_forward.3} parent=1 // pred_fallthru
      _
    // Predicated region
    $region90: #{psiamese_forward.3} parent=1 // pred_check
      _
    $region91: #{psiamese_forward.3} parent=1 // pred_check_branch
      %78 = sbr.rel (0) target = $region93
    $region92: #{psiamese_forward.3} parent=1 // pred_region
      _
    $region93: #{psiamese_forward.3} parent=1 // pred_fallthru
      _
    // Predicated region
    $region94: #{psiamese_forward.3} parent=1 // pred_check
      _
    $region95: #{psiamese_forward.3} parent=1 // pred_check_branch
      %80 = sbr.rel (0) target = $region97
    $region96: #{psiamese_forward.3} parent=1 // pred_region
      _
    $region97: #{psiamese_forward.3} parent=1 // pred_fallthru
      _
    %v81 = vld [vmem:[%s0] sm:$0x3]
    %v82 = vld [vmem:[%s1] sm:$0xff]
    %v83 = vld [vmem:[%s1 + $0x8] sm:$0xff]
    %v84 = vld [vmem:[%s1 + $0x10] sm:$0xff]
    %v85 = vld [vmem:[%s1 + $0x18] sm:$0xff]
    %v86 = vld [vmem:[%s2] sm:$0x1]
    %v88 = vlaneseq
    %v89 = vshrl.u32 %v88, 7
    %v90 = vsub.s32 0, %v89
    %v91 = vrot.slane %v86, %v90
    %vm93 = vcmask 261120
    %v95 = vsel %vm93, %v81, 0
    %97 = vmatprep.subr.mxu0 0.0
    %98 = vmatpush1.msra.mxu0 %v82
    %99 = vmatprep.subr.mxu0 0.0
    %100 = vmatpush1.msra.mxu0 %v83
    %101 = vmatprep.subr.mxu0 0.0
    %102 = vmatpush1.msra.mxu0 %v84
    %103 = vmatprep.subr.mxu0 0.0
    %104 = vmatpush1.msra.mxu0 %v85
    %105 = vmatprep.subr.mxu0 0.0
    %106 = vmatpush1.msra.mxu0 0.0
    %107 = vmatprep.subr.mxu0 0.0
    %108 = vmatpush1.msra.mxu0 0.0
    %109 = vmatprep.subr.mxu0 0.0
    %110 = vmatpush1.msra.mxu0 0.0
    %111 = vmatprep.subr.mxu0 0.0
    %112 = vmatpush1.msra.mxu0 0.0
    %113 = vmatprep.subr.mxu0 0.0
    %114 = vmatpush1.msra.mxu0 0.0
    %115 = vmatprep.subr.mxu0 0.0
    %116 = vmatpush1.msra.mxu0 0.0
    %117 = vmatprep.subr.mxu0 0.0
    %118 = vmatpush1.msra.mxu0 0.0
    %119 = vmatprep.subr.mxu0 0.0
    %120 = vmatpush1.msra.mxu0 0.0
    %121 = vmatprep.subr.mxu0 0.0
    %122 = vmatpush1.msra.mxu0 0.0
    %123 = vmatprep.subr.mxu0 0.0
    %124 = vmatpush1.msra.mxu0 0.0
    %125 = vmatprep.subr.mxu0 0.0
    %126 = vmatpush1.msra.mxu0 0.0
    %127 = vmatprep.subr.mxu0 0.0
    %128 = vmatpush1.msra.mxu0 0.0
    %129 = vmatprep.subr.mxu0 0.0
    %130 = vmatpush1.msra.mxu0 0.0
    %131 = vmatprep.subr.mxu0 0.0
    %132 = vmatpush1.msra.mxu0 0.0
    %133 = vmatprep.subr.mxu0 0.0
    %134 = vmatpush1.msra.mxu0 0.0
    %135 = vmatprep.subr.mxu0 0.0
    %136 = vmatpush1.msra.mxu0 0.0
    %137 = vmatprep.subr.mxu0 0.0
    %138 = vmatpush1.msra.mxu0 0.0
    %139 = vmatprep.subr.mxu0 0.0
    %140 = vmatpush1.msra.mxu0 0.0
    %141 = vmatprep.subr.mxu0 0.0
    %142 = vmatpush1.msra.mxu0 0.0
    %143 = vmatprep.subr.mxu0 0.0
    %144 = vmatpush1.msra.mxu0 0.0
    %145 = vmatprep.subr.mxu0 0.0
    %146 = vmatpush1.msra.mxu0 0.0
    %147 = vmatprep.subr.mxu0 0.0
    %148 = vmatpush1.msra.mxu0 0.0
    %149 = vmatprep.subr.mxu0 0.0
    %150 = vmatpush1.msra.mxu0 0.0
    %151 = vmatprep.subr.mxu0 0.0
    %152 = vmatpush1.msra.mxu0 0.0
    %153 = vmatprep.subr.mxu0 0.0
    %154 = vmatpush1.msra.mxu0 0.0
    %155 = vmatprep.subr.mxu0 0.0
    %156 = vmatpush1.msra.mxu0 0.0
    %157 = vmatprep.subr.mxu0 0.0
    %158 = vmatpush1.msra.mxu0 0.0
    %159 = vmatprep.subr.mxu0 0.0
    %160 = vmatpush1.msra.mxu0 0.0
    %161 = vmatprep.mubr.f32.mxu0 0.0
    %162 = vmatmul.mubr.f32.gmra.mrb[0].mxu0 %v95
    %v163 = vpop.f32.mrb[0].mxu0
    %v164 = vadd.f32 %v91, %v163
    %v165 = vpop.f32.mrb[0].mxu0
    %166 = vdwg.mxu0
    %v167 = vmax.f32 %v164, 0.0
    %v168 = vld [vmem:[%s3] sm:$0xff]
    %v169 = vld [vmem:[%s3 + $0x8] sm:$0xff]
    %v170 = vld [vmem:[%s3 + $0x10] sm:$0xff]
    %v171 = vld [vmem:[%s3 + $0x18] sm:$0xff]
    %v172 = vld [vmem:[%s4] sm:$0x1]
    %v174 = vlaneseq
    %v175 = vshrl.u32 %v174, 7
    %v176 = vsub.s32 0, %v175
    %v177 = vrot.slane %v172, %v176
    %v180 = vsel %vm93, %v167, 0
    %182 = vmatprep.subr.mxu0 0.0
    %183 = vmatpush1.msra.mxu0 %v168
    %184 = vmatprep.subr.mxu0 0.0
    %185 = vmatpush1.msra.mxu0 %v169
    %186 = vmatprep.subr.mxu0 0.0
    %187 = vmatpush1.msra.mxu0 %v170
    %188 = vmatprep.subr.mxu0 0.0
    %189 = vmatpush1.msra.mxu0 %v171
    %190 = vmatprep.subr.mxu0 0.0
    %191 = vmatpush1.msra.mxu0 0.0
    %192 = vmatprep.subr.mxu0 0.0
    %193 = vmatpush1.msra.mxu0 0.0
    %194 = vmatprep.subr.mxu0 0.0
    %195 = vmatpush1.msra.mxu0 0.0
    %196 = vmatprep.subr.mxu0 0.0
    %197 = vmatpush1.msra.mxu0 0.0
    %198 = vmatprep.subr.mxu0 0.0
    %199 = vmatpush1.msra.mxu0 0.0
    %200 = vmatprep.subr.mxu0 0.0
    %201 = vmatpush1.msra.mxu0 0.0
    %202 = vmatprep.subr.mxu0 0.0
    %203 = vmatpush1.msra.mxu0 0.0
    %204 = vmatprep.subr.mxu0 0.0
    %205 = vmatpush1.msra.mxu0 0.0
    %206 = vmatprep.subr.mxu0 0.0
    %207 = vmatpush1.msra.mxu0 0.0
    %208 = vmatprep.subr.mxu0 0.0
    %209 = vmatpush1.msra.mxu0 0.0
    %210 = vmatprep.subr.mxu0 0.0
    %211 = vmatpush1.msra.mxu0 0.0
    %212 = vmatprep.subr.mxu0 0.0
    %213 = vmatpush1.msra.mxu0 0.0
    %214 = vmatprep.subr.mxu0 0.0
    %215 = vmatpush1.msra.mxu0 0.0
    %216 = vmatprep.subr.mxu0 0.0
    %217 = vmatpush1.msra.mxu0 0.0
    %218 = vmatprep.subr.mxu0 0.0
    %219 = vmatpush1.msra.mxu0 0.0
    %220 = vmatprep.subr.mxu0 0.0
    %221 = vmatpush1.msra.mxu0 0.0
    %222 = vmatprep.subr.mxu0 0.0
    %223 = vmatpush1.msra.mxu0 0.0
    %224 = vmatprep.subr.mxu0 0.0
    %225 = vmatpush1.msra.mxu0 0.0
    %226 = vmatprep.subr.mxu0 0.0
    %227 = vmatpush1.msra.mxu0 0.0
    %228 = vmatprep.subr.mxu0 0.0
    %229 = vmatpush1.msra.mxu0 0.0
    %230 = vmatprep.subr.mxu0 0.0
    %231 = vmatpush1.msra.mxu0 0.0
    %232 = vmatprep.subr.mxu0 0.0
    %233 = vmatpush1.msra.mxu0 0.0
    %234 = vmatprep.subr.mxu0 0.0
    %235 = vmatpush1.msra.mxu0 0.0
    %236 = vmatprep.subr.mxu0 0.0
    %237 = vmatpush1.msra.mxu0 0.0
    %238 = vmatprep.subr.mxu0 0.0
    %239 = vmatpush1.msra.mxu0 0.0
    %240 = vmatprep.subr.mxu0 0.0
    %241 = vmatpush1.msra.mxu0 0.0
    %242 = vmatprep.subr.mxu0 0.0
    %243 = vmatpush1.msra.mxu0 0.0
    %244 = vmatprep.subr.mxu0 0.0
    %245 = vmatpush1.msra.mxu0 0.0
    %246 = vmatprep.mubr.f32.mxu0 0.0
    %247 = vmatmul.mubr.f32.gmra.mrb[0].mxu0 %v180
    %v248 = vpop.f32.mrb[0].mxu0
    %v249 = vadd.f32 %v177, %v248
    %v250 = vpop.f32.mrb[0].mxu0
    %251 = vdwg.mxu0
    %v252 = vmax.f32 %v249, 0.0
    %v253 = vld [vmem:[%s5] sm:$0xff]
    %v254 = vld [vmem:[%s5 + $0x8] sm:$0xff]
    %v255 = vld [vmem:[%s5 + $0x10] sm:$0xff]
    %v256 = vld [vmem:[%s5 + $0x18] sm:$0xff]
    %v257 = vld [vmem:[%s6] sm:$0x1]
    %v259 = vlaneseq
    %v260 = vshrl.u32 %v259, 7
    %v261 = vsub.s32 0, %v260
    %v262 = vrot.slane %v257, %v261
    %v265 = vsel %vm93, %v252, 0
    %267 = vmatprep.subr.mxu0 0.0
    %268 = vmatpush1.msra.mxu0 %v253
    %269 = vmatprep.subr.mxu0 0.0
    %270 = vmatpush1.msra.mxu0 %v254
    %271 = vmatprep.subr.mxu0 0.0
    %272 = vmatpush1.msra.mxu0 %v255
    %273 = vmatprep.subr.mxu0 0.0
    %274 = vmatpush1.msra.mxu0 %v256
    %275 = vmatprep.subr.mxu0 0.0
    %276 = vmatpush1.msra.mxu0 0.0
    %277 = vmatprep.subr.mxu0 0.0
    %278 = vmatpush1.msra.mxu0 0.0
    %279 = vmatprep.subr.mxu0 0.0
    %280 = vmatpush1.msra.mxu0 0.0
    %281 = vmatprep.subr.mxu0 0.0
    %282 = vmatpush1.msra.mxu0 0.0
    %283 = vmatprep.subr.mxu0 0.0
    %284 = vmatpush1.msra.mxu0 0.0
    %285 = vmatprep.subr.mxu0 0.0
    %286 = vmatpush1.msra.mxu0 0.0
    %287 = vmatprep.subr.mxu0 0.0
    %288 = vmatpush1.msra.mxu0 0.0
    %289 = vmatprep.subr.mxu0 0.0
    %290 = vmatpush1.msra.mxu0 0.0
    %291 = vmatprep.subr.mxu0 0.0
    %292 = vmatpush1.msra.mxu0 0.0
    %293 = vmatprep.subr.mxu0 0.0
    %294 = vmatpush1.msra.mxu0 0.0
    %295 = vmatprep.subr.mxu0 0.0
    %296 = vmatpush1.msra.mxu0 0.0
    %297 = vmatprep.subr.mxu0 0.0
    %298 = vmatpush1.msra.mxu0 0.0
    %299 = vmatprep.subr.mxu0 0.0
    %300 = vmatpush1.msra.mxu0 0.0
    %301 = vmatprep.subr.mxu0 0.0
    %302 = vmatpush1.msra.mxu0 0.0
    %303 = vmatprep.subr.mxu0 0.0
    %304 = vmatpush1.msra.mxu0 0.0
    %305 = vmatprep.subr.mxu0 0.0
    %306 = vmatpush1.msra.mxu0 0.0
    %307 = vmatprep.subr.mxu0 0.0
    %308 = vmatpush1.msra.mxu0 0.0
    %309 = vmatprep.subr.mxu0 0.0
    %310 = vmatpush1.msra.mxu0 0.0
    %311 = vmatprep.subr.mxu0 0.0
    %312 = vmatpush1.msra.mxu0 0.0
    %313 = vmatprep.subr.mxu0 0.0
    %314 = vmatpush1.msra.mxu0 0.0
    %315 = vmatprep.subr.mxu0 0.0
    %316 = vmatpush1.msra.mxu0 0.0
    %317 = vmatprep.subr.mxu0 0.0
    %318 = vmatpush1.msra.mxu0 0.0
    %319 = vmatprep.subr.mxu0 0.0
    %320 = vmatpush1.msra.mxu0 0.0
    %321 = vmatprep.subr.mxu0 0.0
    %322 = vmatpush1.msra.mxu0 0.0
    %323 = vmatprep.subr.mxu0 0.0
    %324 = vmatpush1.msra.mxu0 0.0
    %325 = vmatprep.subr.mxu0 0.0
    %326 = vmatpush1.msra.mxu0 0.0
    %327 = vmatprep.subr.mxu0 0.0
    %328 = vmatpush1.msra.mxu0 0.0
    %329 = vmatprep.subr.mxu0 0.0
    %330 = vmatpush1.msra.mxu0 0.0
    %331 = vmatprep.mubr.f32.mxu0 0.0
    %332 = vmatmul.mubr.f32.gmra.mrb[0].mxu0 %v265
    %v333 = vpop.f32.mrb[0].mxu0
    %v334 = vadd.f32 %v262, %v333
    %v335 = vpop.f32.mrb[0].mxu0
    %336 = vdwg.mxu0
    %v337 = vmax.f32 %v334, 0.0
    %v338 = vld [vmem:[%s7] sm:$0xff]
    %v339 = vld [vmem:[%s7 + $0x8] sm:$0xff]
    %v340 = vld [vmem:[%s8] sm:$0x1]
    %v342 = vlaneseq
    %v343 = vshrl.u32 %v342, 7
    %v344 = vsub.s32 0, %v343
    %v345 = vrot.slane %v340, %v344
    %vm347 = vcmask 130048
    %v349 = vsel %vm347, %v337, 0
    %351 = vmatprep.subr.mxu0 0.0
    %352 = vmatpush1.msra.mxu0 %v338
    %353 = vmatprep.subr.mxu0 0.0
    %354 = vmatpush1.msra.mxu0 %v339
    %355 = vmatprep.subr.mxu0 0.0
    %356 = vmatpush1.msra.mxu0 0.0
    %357 = vmatprep.subr.mxu0 0.0
    %358 = vmatpush1.msra.mxu0 0.0
    %359 = vmatprep.subr.mxu0 0.0
    %360 = vmatpush1.msra.mxu0 0.0
    %361 = vmatprep.subr.mxu0 0.0
    %362 = vmatpush1.msra.mxu0 0.0
    %363 = vmatprep.subr.mxu0 0.0
    %364 = vmatpush1.msra.mxu0 0.0
    %365 = vmatprep.subr.mxu0 0.0
    %366 = vmatpush1.msra.mxu0 0.0
    %367 = vmatprep.subr.mxu0 0.0
    %368 = vmatpush1.msra.mxu0 0.0
    %369 = vmatprep.subr.mxu0 0.0
    %370 = vmatpush1.msra.mxu0 0.0
    %371 = vmatprep.subr.mxu0 0.0
    %372 = vmatpush1.msra.mxu0 0.0
    %373 = vmatprep.subr.mxu0 0.0
    %374 = vmatpush1.msra.mxu0 0.0
    %375 = vmatprep.subr.mxu0 0.0
    %376 = vmatpush1.msra.mxu0 0.0
    %377 = vmatprep.subr.mxu0 0.0
    %378 = vmatpush1.msra.mxu0 0.0
    %379 = vmatprep.subr.mxu0 0.0
    %380 = vmatpush1.msra.mxu0 0.0
    %381 = vmatprep.subr.mxu0 0.0
    %382 = vmatpush1.msra.mxu0 0.0
    %383 = vmatprep.subr.mxu0 0.0
    %384 = vmatpush1.msra.mxu0 0.0
    %385 = vmatprep.subr.mxu0 0.0
    %386 = vmatpush1.msra.mxu0 0.0
    %387 = vmatprep.subr.mxu0 0.0
    %388 = vmatpush1.msra.mxu0 0.0
    %389 = vmatprep.subr.mxu0 0.0
    %390 = vmatpush1.msra.mxu0 0.0
    %391 = vmatprep.subr.mxu0 0.0
    %392 = vmatpush1.msra.mxu0 0.0
    %393 = vmatprep.subr.mxu0 0.0
    %394 = vmatpush1.msra.mxu0 0.0
    %395 = vmatprep.subr.mxu0 0.0
    %396 = vmatpush1.msra.mxu0 0.0
    %397 = vmatprep.subr.mxu0 0.0
    %398 = vmatpush1.msra.mxu0 0.0
    %399 = vmatprep.subr.mxu0 0.0
    %400 = vmatpush1.msra.mxu0 0.0
    %401 = vmatprep.subr.mxu0 0.0
    %402 = vmatpush1.msra.mxu0 0.0
    %403 = vmatprep.subr.mxu0 0.0
    %404 = vmatpush1.msra.mxu0 0.0
    %405 = vmatprep.subr.mxu0 0.0
    %406 = vmatpush1.msra.mxu0 0.0
    %407 = vmatprep.subr.mxu0 0.0
    %408 = vmatpush1.msra.mxu0 0.0
    %409 = vmatprep.subr.mxu0 0.0
    %410 = vmatpush1.msra.mxu0 0.0
    %411 = vmatprep.subr.mxu0 0.0
    %412 = vmatpush1.msra.mxu0 0.0
    %413 = vmatprep.subr.mxu0 0.0
    %414 = vmatpush1.msra.mxu0 0.0
    %415 = vmatprep.mubr.f32.mxu0 0.0
    %416 = vmatmul.mubr.f32.gmra.mrb[0].mxu0 %v349
    %v417 = vpop.f32.mrb[0].mxu0
    %v418 = vadd.f32 %v345, %v417
    %v419 = vpop.f32.mrb[0].mxu0
    %420 = vdwg.mxu0
    %vm421 = vcmask 58368
    %422 = vst.msk [vmem:[#allocation2] sm:$0x3] %vm421, %v418
    %v423 = vld [vmem:[%s9] sm:$0xff]
    %v424 = vld [vmem:[%s9 + $0x8] sm:$0xff]
    %v425 = vld [vmem:[%s10] sm:$0xff]
    %v426 = vld [vmem:[%s13] sm:$0x1]
    %v428 = vlaneseq
    %v429 = vshrl.u32 %v428, 7
    %v430 = vsub.s32 0, %v429
    %v431 = vrot.slane %v426, %v430
    %vm433 = vcmask 64512
    %v435 = vsel %vm433, %v423, 0
    %v438 = vsel %vm433, %v424, 0
    %440 = vmatprep.subr.mxu0 0.0
    %441 = vmatpush1.msra.mxu0 %v425
    %442 = vmatprep.subr.mxu0 0.0
    %443 = vmatpush1.msra.mxu0 0.0
    %444 = vmatprep.subr.mxu0 0.0
    %445 = vmatpush1.msra.mxu0 0.0
    %446 = vmatprep.subr.mxu0 0.0
    %447 = vmatpush1.msra.mxu0 0.0
    %448 = vmatprep.subr.mxu0 0.0
    %449 = vmatpush1.msra.mxu0 0.0
    %450 = vmatprep.subr.mxu0 0.0
    %451 = vmatpush1.msra.mxu0 0.0
    %452 = vmatprep.subr.mxu0 0.0
    %453 = vmatpush1.msra.mxu0 0.0
    %454 = vmatprep.subr.mxu0 0.0
    %455 = vmatpush1.msra.mxu0 0.0
    %456 = vmatprep.subr.mxu0 0.0
    %457 = vmatpush1.msra.mxu0 0.0
    %458 = vmatprep.subr.mxu0 0.0
    %459 = vmatpush1.msra.mxu0 0.0
    %460 = vmatprep.subr.mxu0 0.0
    %461 = vmatpush1.msra.mxu0 0.0
    %462 = vmatprep.subr.mxu0 0.0
    %463 = vmatpush1.msra.mxu0 0.0
    %464 = vmatprep.subr.mxu0 0.0
    %465 = vmatpush1.msra.mxu0 0.0
    %466 = vmatprep.subr.mxu0 0.0
    %467 = vmatpush1.msra.mxu0 0.0
    %468 = vmatprep.subr.mxu0 0.0
    %469 = vmatpush1.msra.mxu0 0.0
    %470 = vmatprep.subr.mxu0 0.0
    %471 = vmatpush1.msra.mxu0 0.0
    %472 = vmatprep.subr.mxu0 0.0
    %473 = vmatpush1.msra.mxu0 0.0
    %474 = vmatprep.subr.mxu0 0.0
    %475 = vmatpush1.msra.mxu0 0.0
    %476 = vmatprep.subr.mxu0 0.0
    %477 = vmatpush1.msra.mxu0 0.0
    %478 = vmatprep.subr.mxu0 0.0
    %479 = vmatpush1.msra.mxu0 0.0
    %480 = vmatprep.subr.mxu0 0.0
    %481 = vmatpush1.msra.mxu0 0.0
    %482 = vmatprep.subr.mxu0 0.0
    %483 = vmatpush1.msra.mxu0 0.0
    %484 = vmatprep.subr.mxu0 0.0
    %485 = vmatpush1.msra.mxu0 0.0
    %486 = vmatprep.subr.mxu0 0.0
    %487 = vmatpush1.msra.mxu0 0.0
    %488 = vmatprep.subr.mxu0 0.0
    %489 = vmatpush1.msra.mxu0 0.0
    %490 = vmatprep.subr.mxu0 0.0
    %491 = vmatpush1.msra.mxu0 0.0
    %492 = vmatprep.subr.mxu0 0.0
    %493 = vmatpush1.msra.mxu0 0.0
    %494 = vmatprep.subr.mxu0 0.0
    %495 = vmatpush1.msra.mxu0 0.0
    %496 = vmatprep.subr.mxu0 0.0
    %497 = vmatpush1.msra.mxu0 0.0
    %498 = vmatprep.subr.mxu0 0.0
    %499 = vmatpush1.msra.mxu0 0.0
    %500 = vmatprep.subr.mxu0 0.0
    %501 = vmatpush1.msra.mxu0 0.0
    %502 = vmatprep.subr.mxu0 0.0
    %503 = vmatpush1.msra.mxu0 0.0
    %504 = vmatprep.mubr.f32.mxu0 0.0
    %505 = vmatmul.mubr.f32.gmra.mrb[0].mxu0 %v435
    %v506 = vpop.f32.mrb[0].mxu0
    %v507 = vadd.f32 %v431, %v506
    %v508 = vpop.f32.mrb[0].mxu0
    %509 = vmatprep.mubr.f32.mxu0 0.0
    %510 = vmatmul.mubr.f32.gmra.mrb[0].mxu0 %v438
    %v511 = vpop.f32.mrb[0].mxu0
    %v512 = vadd.f32 %v431, %v511
    %v513 = vpop.f32.mrb[0].mxu0
    %514 = vdwg.mxu0
    %v515 = vld [vmem:[%s11] sm:$0xff]
    %v516 = vld [vmem:[%s11 + $0x8] sm:$0xff]
    %v517 = vld [vmem:[%s12] sm:$0xff]
    %v518 = vld [vmem:[%s12 + $0x8] sm:$0xff]
    %v519 = vld [vmem:[%s18] sm:$0x3]
    %v520 = vld [vmem:[%s19] sm:$0x3]
    %s521 = scalar_lea.vmem %s18, 2
    %v522 = vld [vmem:[%s521] sm:$0x3]
    %s523 = scalar_lea.vmem %s19, 2
    %v524 = vld [vmem:[%s523] sm:$0x3]
    %v526 = vsel %vm347, %v519, 0
    %528 = vmatprep.subr.mxu0 0.0
    %529 = vmatpush1.msra.mxu0 %v515
    %530 = vmatprep.subr.mxu0 0.0
    %531 = vmatpush1.msra.mxu0 %v516
    %532 = vmatprep.subr.mxu0 0.0
    %533 = vmatpush1.msra.mxu0 0.0
    %534 = vmatprep.subr.mxu0 0.0
    %535 = vmatpush1.msra.mxu0 0.0
    %536 = vmatprep.subr.mxu0 0.0
    %537 = vmatpush1.msra.mxu0 0.0
    %538 = vmatprep.subr.mxu0 0.0
    %539 = vmatpush1.msra.mxu0 0.0
    %540 = vmatprep.subr.mxu0 0.0
    %541 = vmatpush1.msra.mxu0 0.0
    %542 = vmatprep.subr.mxu0 0.0
    %543 = vmatpush1.msra.mxu0 0.0
    %544 = vmatprep.subr.mxu0 0.0
    %545 = vmatpush1.msra.mxu0 0.0
    %546 = vmatprep.subr.mxu0 0.0
    %547 = vmatpush1.msra.mxu0 0.0
    %548 = vmatprep.subr.mxu0 0.0
    %549 = vmatpush1.msra.mxu0 0.0
    %550 = vmatprep.subr.mxu0 0.0
    %551 = vmatpush1.msra.mxu0 0.0
    %552 = vmatprep.subr.mxu0 0.0
    %553 = vmatpush1.msra.mxu0 0.0
    %554 = vmatprep.subr.mxu0 0.0
    %555 = vmatpush1.msra.mxu0 0.0
    %556 = vmatprep.subr.mxu0 0.0
    %557 = vmatpush1.msra.mxu0 0.0
    %558 = vmatprep.subr.mxu0 0.0
    %559 = vmatpush1.msra.mxu0 0.0
    %560 = vmatprep.subr.mxu0 0.0
    %561 = vmatpush1.msra.mxu0 0.0
    %562 = vmatprep.subr.mxu0 0.0
    %563 = vmatpush1.msra.mxu0 0.0
    %564 = vmatprep.subr.mxu0 0.0
    %565 = vmatpush1.msra.mxu0 0.0
    %566 = vmatprep.subr.mxu0 0.0
    %567 = vmatpush1.msra.mxu0 0.0
    %568 = vmatprep.subr.mxu0 0.0
    %569 = vmatpush1.msra.mxu0 0.0
    %570 = vmatprep.subr.mxu0 0.0
    %571 = vmatpush1.msra.mxu0 0.0
    %572 = vmatprep.subr.mxu0 0.0
    %573 = vmatpush1.msra.mxu0 0.0
    %574 = vmatprep.subr.mxu0 0.0
    %575 = vmatpush1.msra.mxu0 0.0
    %576 = vmatprep.subr.mxu0 0.0
    %577 = vmatpush1.msra.mxu0 0.0
    %578 = vmatprep.subr.mxu0 0.0
    %579 = vmatpush1.msra.mxu0 0.0
    %580 = vmatprep.subr.mxu0 0.0
    %581 = vmatpush1.msra.mxu0 0.0
    %582 = vmatprep.subr.mxu0 0.0
    %583 = vmatpush1.msra.mxu0 0.0
    %584 = vmatprep.subr.mxu0 0.0
    %585 = vmatpush1.msra.mxu0 0.0
    %586 = vmatprep.subr.mxu0 0.0
    %587 = vmatpush1.msra.mxu0 0.0
    %588 = vmatprep.subr.mxu0 0.0
    %589 = vmatpush1.msra.mxu0 0.0
    %590 = vmatprep.subr.mxu0 0.0
    %591 = vmatpush1.msra.mxu0 0.0
    %592 = vmatprep.mubr.f32.mxu0 0.0
    %593 = vmatmul.mubr.f32.gmra.mrb[0].mxu0 %v526
    %v594 = vpop.f32.mrb[0].mxu0
    %v595 = vadd.f32 0.0, %v594
    %v596 = vpop.f32.mrb[0].mxu0
    %597 = vdwg.mxu0
    %v598 = vadd.f32 %v507, %v595
    %v599 = vxor.u32 %v598, 2147483648
    %v600 = vmul.f32 %v599, 1.442695
    %v601 = vpow.pop %v600
    %v602 = vadd.f32 %v601, 1.0
    %v603 = vrcp.pop %v602
    %v604 = vmul.f32 1.0, %v603
    %v605 = vtanh.pop %v598
    %607 = vrot.lane.b32.xlu0 %v520, 16
    %v608 = vpop.permute.xlu0 %607
    %v610 = vmul.f32 %v604, %v608
    %612 = vrot.lane.b32.xlu0 %v605, 96
    %v613 = vpop.permute.xlu0 %612
    %v615 = vmul.f32 %v604, %v613
    %617 = vrot.lane.b32.xlu0 %v615, 16
    %v618 = vpop.permute.xlu0 %617
    %v620 = vadd.f32 %v610, %v618
    %v621 = vtanh.pop %v620
    %623 = vrot.lane.b32.xlu0 %v621, 32
    %v624 = vpop.permute.xlu0 %623
    %v626 = vmul.f32 %v604, %v624
    %v628 = vsel %vm347, %v522, 0
    %630 = vmatprep.subr.mxu0 0.0
    %631 = vmatpush1.msra.mxu0 %v517
    %632 = vmatprep.subr.mxu0 0.0
    %633 = vmatpush1.msra.mxu0 %v518
    %634 = vmatprep.subr.mxu0 0.0
    %635 = vmatpush1.msra.mxu0 0.0
    %636 = vmatprep.subr.mxu0 0.0
    %637 = vmatpush1.msra.mxu0 0.0
    %638 = vmatprep.subr.mxu0 0.0
    %639 = vmatpush1.msra.mxu0 0.0
    %640 = vmatprep.subr.mxu0 0.0
    %641 = vmatpush1.msra.mxu0 0.0
    %642 = vmatprep.subr.mxu0 0.0
    %643 = vmatpush1.msra.mxu0 0.0
    %644 = vmatprep.subr.mxu0 0.0
    %645 = vmatpush1.msra.mxu0 0.0
    %646 = vmatprep.subr.mxu0 0.0
    %647 = vmatpush1.msra.mxu0 0.0
    %648 = vmatprep.subr.mxu0 0.0
    %649 = vmatpush1.msra.mxu0 0.0
    %650 = vmatprep.subr.mxu0 0.0
    %651 = vmatpush1.msra.mxu0 0.0
    %652 = vmatprep.subr.mxu0 0.0
    %653 = vmatpush1.msra.mxu0 0.0
    %654 = vmatprep.subr.mxu0 0.0
    %655 = vmatpush1.msra.mxu0 0.0
    %656 = vmatprep.subr.mxu0 0.0
    %657 = vmatpush1.msra.mxu0 0.0
    %658 = vmatprep.subr.mxu0 0.0
    %659 = vmatpush1.msra.mxu0 0.0
    %660 = vmatprep.subr.mxu0 0.0
    %661 = vmatpush1.msra.mxu0 0.0
    %662 = vmatprep.subr.mxu0 0.0
    %663 = vmatpush1.msra.mxu0 0.0
    %664 = vmatprep.subr.mxu0 0.0
    %665 = vmatpush1.msra.mxu0 0.0
    %666 = vmatprep.subr.mxu0 0.0
    %667 = vmatpush1.msra.mxu0 0.0
    %668 = vmatprep.subr.mxu0 0.0
    %669 = vmatpush1.msra.mxu0 0.0
    %670 = vmatprep.subr.mxu0 0.0
    %671 = vmatpush1.msra.mxu0 0.0
    %672 = vmatprep.subr.mxu0 0.0
    %673 = vmatpush1.msra.mxu0 0.0
    %674 = vmatprep.subr.mxu0 0.0
    %675 = vmatpush1.msra.mxu0 0.0
    %676 = vmatprep.subr.mxu0 0.0
    %677 = vmatpush1.msra.mxu0 0.0
    %678 = vmatprep.subr.mxu0 0.0
    %679 = vmatpush1.msra.mxu0 0.0
    %680 = vmatprep.subr.mxu0 0.0
    %681 = vmatpush1.msra.mxu0 0.0
    %682 = vmatprep.subr.mxu0 0.0
    %683 = vmatpush1.msra.mxu0 0.0
    %684 = vmatprep.subr.mxu0 0.0
    %685 = vmatpush1.msra.mxu0 0.0
    %686 = vmatprep.subr.mxu0 0.0
    %687 = vmatpush1.msra.mxu0 0.0
    %688 = vmatprep.subr.mxu0 0.0
    %689 = vmatpush1.msra.mxu0 0.0
    %690 = vmatprep.subr.mxu0 0.0
    %691 = vmatpush1.msra.mxu0 0.0
    %692 = vmatprep.subr.mxu0 0.0
    %693 = vmatpush1.msra.mxu0 0.0
    %694 = vmatprep.mubr.f32.mxu0 0.0
    %695 = vmatmul.mubr.f32.gmra.mrb[0].mxu0 %v628
    %v696 = vpop.f32.mrb[0].mxu0
    %v697 = vadd.f32 0.0, %v696
    %v698 = vpop.f32.mrb[0].mxu0
    %699 = vdwg.mxu0
    %v701 = vrot.slane %v697, 2
    %702 = vrot.lane.b32.xlu0 %v701, 64
    %v703 = vpop.permute.xlu0 %702
    %v705 = vadd.f32 %v512, %v703
    %v706 = vxor.u32 %v705, 2147483648
    %v707 = vmul.f32 %v706, 1.442695
    %v708 = vpow.pop %v707
    %v709 = vadd.f32 %v708, 1.0
    %v710 = vrcp.pop %v709
    %v711 = vmul.f32 1.0, %v710
    %v712 = vtanh.pop %v705
    %v714 = vrot.slane %v524, 2
    %715 = vrot.lane.b32.xlu0 %v714, 80
    %v716 = vpop.permute.xlu0 %715
    %v718 = vmul.f32 %v711, %v716
    %720 = vrot.lane.b32.xlu0 %v712, 96
    %v721 = vpop.permute.xlu0 %720
    %v723 = vmul.f32 %v711, %v721
    %725 = vrot.lane.b32.xlu0 %v723, 16
    %v726 = vpop.permute.xlu0 %725
    %v728 = vadd.f32 %v718, %v726
    %v729 = vtanh.pop %v728
    %731 = vrot.lane.b32.xlu0 %v729, 32
    %v732 = vpop.permute.xlu0 %731
    %v734 = vmul.f32 %v711, %v732
    %736 = vrot.lane.b32.xlu0 %v626, 80
    %v737 = vpop.permute.xlu0 %736
    %v738 = vsel %vm347, %v737, 0
    %740 = vmatprep.subr.mxu0 0.0
    %741 = vmatpush1.msra.mxu0 %v515
    %742 = vmatprep.subr.mxu0 0.0
    %743 = vmatpush1.msra.mxu0 %v516
    %744 = vmatprep.subr.mxu0 0.0
    %745 = vmatpush1.msra.mxu0 0.0
    %746 = vmatprep.subr.mxu0 0.0
    %747 = vmatpush1.msra.mxu0 0.0
    %748 = vmatprep.subr.mxu0 0.0
    %749 = vmatpush1.msra.mxu0 0.0
    %750 = vmatprep.subr.mxu0 0.0
    %751 = vmatpush1.msra.mxu0 0.0
    %752 = vmatprep.subr.mxu0 0.0
    %753 = vmatpush1.msra.mxu0 0.0
    %754 = vmatprep.subr.mxu0 0.0
    %755 = vmatpush1.msra.mxu0 0.0
    %756 = vmatprep.subr.mxu0 0.0
    %757 = vmatpush1.msra.mxu0 0.0
    %758 = vmatprep.subr.mxu0 0.0
    %759 = vmatpush1.msra.mxu0 0.0
    %760 = vmatprep.subr.mxu0 0.0
    %761 = vmatpush1.msra.mxu0 0.0
    %762 = vmatprep.subr.mxu0 0.0
    %763 = vmatpush1.msra.mxu0 0.0
    %764 = vmatprep.subr.mxu0 0.0
    %765 = vmatpush1.msra.mxu0 0.0
    %766 = vmatprep.subr.mxu0 0.0
    %767 = vmatpush1.msra.mxu0 0.0
    %768 = vmatprep.subr.mxu0 0.0
    %769 = vmatpush1.msra.mxu0 0.0
    %770 = vmatprep.subr.mxu0 0.0
    %771 = vmatpush1.msra.mxu0 0.0
    %772 = vmatprep.subr.mxu0 0.0
    %773 = vmatpush1.msra.mxu0 0.0
    %774 = vmatprep.subr.mxu0 0.0
    %775 = vmatpush1.msra.mxu0 0.0
    %776 = vmatprep.subr.mxu0 0.0
    %777 = vmatpush1.msra.mxu0 0.0
    %778 = vmatprep.subr.mxu0 0.0
    %779 = vmatpush1.msra.mxu0 0.0
    %780 = vmatprep.subr.mxu0 0.0
    %781 = vmatpush1.msra.mxu0 0.0
    %782 = vmatprep.subr.mxu0 0.0
    %783 = vmatpush1.msra.mxu0 0.0
    %784 = vmatprep.subr.mxu0 0.0
    %785 = vmatpush1.msra.mxu0 0.0
    %786 = vmatprep.subr.mxu0 0.0
    %787 = vmatpush1.msra.mxu0 0.0
    %788 = vmatprep.subr.mxu0 0.0
    %789 = vmatpush1.msra.mxu0 0.0
    %790 = vmatprep.subr.mxu0 0.0
    %791 = vmatpush1.msra.mxu0 0.0
    %792 = vmatprep.subr.mxu0 0.0
    %793 = vmatpush1.msra.mxu0 0.0
    %794 = vmatprep.subr.mxu0 0.0
    %795 = vmatpush1.msra.mxu0 0.0
    %796 = vmatprep.subr.mxu0 0.0
    %797 = vmatpush1.msra.mxu0 0.0
    %798 = vmatprep.subr.mxu0 0.0
    %799 = vmatpush1.msra.mxu0 0.0
    %800 = vmatprep.subr.mxu0 0.0
    %801 = vmatpush1.msra.mxu0 0.0
    %802 = vmatprep.subr.mxu0 0.0
    %803 = vmatpush1.msra.mxu0 0.0
    %804 = vmatprep.mubr.f32.mxu0 0.0
    %805 = vmatmul.mubr.f32.gmra.mrb[0].mxu0 %v738
    %v806 = vpop.f32.mrb[0].mxu0
    %v807 = vadd.f32 0.0, %v806
    %v808 = vpop.f32.mrb[0].mxu0
    %809 = vdwg.mxu0
    %v811 = vrot.slane %v807, 6
    %v813 = vadd.f32 %v507, %v811
    %v814 = vxor.u32 %v813, 2147483648
    %v815 = vmul.f32 %v814, 1.442695
    %v816 = vpow.pop %v815
    %v817 = vadd.f32 %v816, 1.0
    %v818 = vrcp.pop %v817
    %v819 = vmul.f32 1.0, %v818
    %v820 = vtanh.pop %v813
    %v822 = vrot.slane %v620, 6
    %v824 = vmul.f32 %v819, %v822
    %826 = vrot.lane.b32.xlu0 %v820, 96
    %v827 = vpop.permute.xlu0 %826
    %v829 = vmul.f32 %v819, %v827
    %831 = vrot.lane.b32.xlu0 %v829, 16
    %v832 = vpop.permute.xlu0 %831
    %v834 = vadd.f32 %v824, %v832
    %v835 = vtanh.pop %v834
    %837 = vrot.lane.b32.xlu0 %v835, 32
    %v838 = vpop.permute.xlu0 %837
    %v840 = vmul.f32 %v819, %v838
    %v842 = vrot.slane %v734, 6
    %843 = vrot.lane.b32.xlu0 %v842, 16
    %v844 = vpop.permute.xlu0 %843
    %v845 = vsel %vm347, %v844, 0
    %847 = vmatprep.subr.mxu0 0.0
    %848 = vmatpush1.msra.mxu0 %v517
    %849 = vmatprep.subr.mxu0 0.0
    %850 = vmatpush1.msra.mxu0 %v518
    %851 = vmatprep.subr.mxu0 0.0
    %852 = vmatpush1.msra.mxu0 0.0
    %853 = vmatprep.subr.mxu0 0.0
    %854 = vmatpush1.msra.mxu0 0.0
    %855 = vmatprep.subr.mxu0 0.0
    %856 = vmatpush1.msra.mxu0 0.0
    %857 = vmatprep.subr.mxu0 0.0
    %858 = vmatpush1.msra.mxu0 0.0
    %859 = vmatprep.subr.mxu0 0.0
    %860 = vmatpush1.msra.mxu0 0.0
    %861 = vmatprep.subr.mxu0 0.0
    %862 = vmatpush1.msra.mxu0 0.0
    %863 = vmatprep.subr.mxu0 0.0
    %864 = vmatpush1.msra.mxu0 0.0
    %865 = vmatprep.subr.mxu0 0.0
    %866 = vmatpush1.msra.mxu0 0.0
    %867 = vmatprep.subr.mxu0 0.0
    %868 = vmatpush1.msra.mxu0 0.0
    %869 = vmatprep.subr.mxu0 0.0
    %870 = vmatpush1.msra.mxu0 0.0
    %871 = vmatprep.subr.mxu0 0.0
    %872 = vmatpush1.msra.mxu0 0.0
    %873 = vmatprep.subr.mxu0 0.0
    %874 = vmatpush1.msra.mxu0 0.0
    %875 = vmatprep.subr.mxu0 0.0
    %876 = vmatpush1.msra.mxu0 0.0
    %877 = vmatprep.subr.mxu0 0.0
    %878 = vmatpush1.msra.mxu0 0.0
    %879 = vmatprep.subr.mxu0 0.0
    %880 = vmatpush1.msra.mxu0 0.0
    %881 = vmatprep.subr.mxu0 0.0
    %882 = vmatpush1.msra.mxu0 0.0
    %883 = vmatprep.subr.mxu0 0.0
    %884 = vmatpush1.msra.mxu0 0.0
    %885 = vmatprep.subr.mxu0 0.0
    %886 = vmatpush1.msra.mxu0 0.0
    %887 = vmatprep.subr.mxu0 0.0
    %888 = vmatpush1.msra.mxu0 0.0
    %889 = vmatprep.subr.mxu0 0.0
    %890 = vmatpush1.msra.mxu0 0.0
    %891 = vmatprep.subr.mxu0 0.0
    %892 = vmatpush1.msra.mxu0 0.0
    %893 = vmatprep.subr.mxu0 0.0
    %894 = vmatpush1.msra.mxu0 0.0
    %895 = vmatprep.subr.mxu0 0.0
    %896 = vmatpush1.msra.mxu0 0.0
    %897 = vmatprep.subr.mxu0 0.0
    %898 = vmatpush1.msra.mxu0 0.0
    %899 = vmatprep.subr.mxu0 0.0
    %900 = vmatpush1.msra.mxu0 0.0
    %901 = vmatprep.subr.mxu0 0.0
    %902 = vmatpush1.msra.mxu0 0.0
    %903 = vmatprep.subr.mxu0 0.0
    %904 = vmatpush1.msra.mxu0 0.0
    %905 = vmatprep.subr.mxu0 0.0
    %906 = vmatpush1.msra.mxu0 0.0
    %907 = vmatprep.subr.mxu0 0.0
    %908 = vmatpush1.msra.mxu0 0.0
    %909 = vmatprep.subr.mxu0 0.0
    %910 = vmatpush1.msra.mxu0 0.0
    %911 = vmatprep.mubr.f32.mxu0 0.0
    %912 = vmatmul.mubr.f32.gmra.mrb[0].mxu0 %v845
    %v913 = vpop.f32.mrb[0].mxu0
    %v914 = vadd.f32 0.0, %v913
    %v915 = vpop.f32.mrb[0].mxu0
    %916 = vdwg.mxu0
    %v918 = vrot.slane %v914, 4
    %919 = vrot.lane.b32.xlu0 %v918, 64
    %v920 = vpop.permute.xlu0 %919
    %v922 = vadd.f32 %v512, %v920
    %v923 = vxor.u32 %v922, 2147483648
    %v924 = vmul.f32 %v923, 1.442695
    %v925 = vpow.pop %v924
    %v926 = vadd.f32 %v925, 1.0
    %v927 = vrcp.pop %v926
    %v928 = vmul.f32 1.0, %v927
    %v929 = vtanh.pop %v922
    %v931 = vrot.slane %v728, 2
    %v933 = vmul.f32 %v928, %v931
    %935 = vrot.lane.b32.xlu0 %v929, 96
    %v936 = vpop.permute.xlu0 %935
    %v938 = vmul.f32 %v928, %v936
    %940 = vrot.lane.b32.xlu0 %v938, 16
    %v941 = vpop.permute.xlu0 %940
    %v943 = vadd.f32 %v933, %v941
    %v944 = vtanh.pop %v943
    %946 = vrot.lane.b32.xlu0 %v944, 32
    %v947 = vpop.permute.xlu0 %946
    %v949 = vmul.f32 %v928, %v947
    %v951 = vrot.slane %v840, 2
    %952 = vrot.lane.b32.xlu0 %v951, 80
    %v953 = vpop.permute.xlu0 %952
    %v954 = vsel %vm347, %v953, 0
    %956 = vmatprep.subr.mxu0 0.0
    %957 = vmatpush1.msra.mxu0 %v515
    %958 = vmatprep.subr.mxu0 0.0
    %959 = vmatpush1.msra.mxu0 %v516
    %960 = vmatprep.subr.mxu0 0.0
    %961 = vmatpush1.msra.mxu0 0.0
    %962 = vmatprep.subr.mxu0 0.0
    %963 = vmatpush1.msra.mxu0 0.0
    %964 = vmatprep.subr.mxu0 0.0
    %965 = vmatpush1.msra.mxu0 0.0
    %966 = vmatprep.subr.mxu0 0.0
    %967 = vmatpush1.msra.mxu0 0.0
    %968 = vmatprep.subr.mxu0 0.0
    %969 = vmatpush1.msra.mxu0 0.0
    %970 = vmatprep.subr.mxu0 0.0
    %971 = vmatpush1.msra.mxu0 0.0
    %972 = vmatprep.subr.mxu0 0.0
    %973 = vmatpush1.msra.mxu0 0.0
    %974 = vmatprep.subr.mxu0 0.0
    %975 = vmatpush1.msra.mxu0 0.0
    %976 = vmatprep.subr.mxu0 0.0
    %977 = vmatpush1.msra.mxu0 0.0
    %978 = vmatprep.subr.mxu0 0.0
    %979 = vmatpush1.msra.mxu0 0.0
    %980 = vmatprep.subr.mxu0 0.0
    %981 = vmatpush1.msra.mxu0 0.0
    %982 = vmatprep.subr.mxu0 0.0
    %983 = vmatpush1.msra.mxu0 0.0
    %984 = vmatprep.subr.mxu0 0.0
    %985 = vmatpush1.msra.mxu0 0.0
    %986 = vmatprep.subr.mxu0 0.0
    %987 = vmatpush1.msra.mxu0 0.0
    %988 = vmatprep.subr.mxu0 0.0
    %989 = vmatpush1.msra.mxu0 0.0
    %990 = vmatprep.subr.mxu0 0.0
    %991 = vmatpush1.msra.mxu0 0.0
    %992 = vmatprep.subr.mxu0 0.0
    %993 = vmatpush1.msra.mxu0 0.0
    %994 = vmatprep.subr.mxu0 0.0
    %995 = vmatpush1.msra.mxu0 0.0
    %996 = vmatprep.subr.mxu0 0.0
    %997 = vmatpush1.msra.mxu0 0.0
    %998 = vmatprep.subr.mxu0 0.0
    %999 = vmatpush1.msra.mxu0 0.0
    %1000 = vmatprep.subr.mxu0 0.0
    %1001 = vmatpush1.msra.mxu0 0.0
    %1002 = vmatprep.subr.mxu0 0.0
    %1003 = vmatpush1.msra.mxu0 0.0
    %1004 = vmatprep.subr.mxu0 0.0
    %1005 = vmatpush1.msra.mxu0 0.0
    %1006 = vmatprep.subr.mxu0 0.0
    %1007 = vmatpush1.msra.mxu0 0.0
    %1008 = vmatprep.subr.mxu0 0.0
    %1009 = vmatpush1.msra.mxu0 0.0
    %1010 = vmatprep.subr.mxu0 0.0
    %1011 = vmatpush1.msra.mxu0 0.0
    %1012 = vmatprep.subr.mxu0 0.0
    %1013 = vmatpush1.msra.mxu0 0.0
    %1014 = vmatprep.subr.mxu0 0.0
    %1015 = vmatpush1.msra.mxu0 0.0
    %1016 = vmatprep.subr.mxu0 0.0
    %1017 = vmatpush1.msra.mxu0 0.0
    %1018 = vmatprep.subr.mxu0 0.0
    %1019 = vmatpush1.msra.mxu0 0.0
    %1020 = vmatprep.mubr.f32.mxu0 0.0
    %1021 = vmatmul.mubr.f32.gmra.mrb[0].mxu0 %v954
    %v1022 = vpop.f32.mrb[0].mxu0
    %v1023 = vadd.f32 0.0, %v1022
    %v1024 = vpop.f32.mrb[0].mxu0
    %1025 = vdwg.mxu0
    %v1027 = vrot.slane %v1023, 4
    %v1029 = vadd.f32 %v507, %v1027
    %v1030 = vxor.u32 %v1029, 2147483648
    %v1031 = vmul.f32 %v1030, 1.442695
    %v1032 = vpow.pop %v1031
    %v1033 = vadd.f32 %v1032, 1.0
    %v1034 = vrcp.pop %v1033
    %v1035 = vmul.f32 1.0, %v1034
    %v1036 = vtanh.pop %v1029
    %v1038 = vrot.slane %v834, 6
    %v1040 = vmul.f32 %v1035, %v1038
    %1042 = vrot.lane.b32.xlu0 %v1036, 96
    %v1043 = vpop.permute.xlu0 %1042
    %v1045 = vmul.f32 %v1035, %v1043
    %1047 = vrot.lane.b32.xlu0 %v1045, 16
    %v1048 = vpop.permute.xlu0 %1047
    %v1050 = vadd.f32 %v1040, %v1048
    %v1051 = vtanh.pop %v1050
    %1053 = vrot.lane.b32.xlu0 %v1051, 32
    %v1054 = vpop.permute.xlu0 %1053
    %v1056 = vmul.f32 %v1035, %v1054
    %v1058 = vrot.slane %v949, 4
    %1059 = vrot.lane.b32.xlu0 %v1058, 16
    %v1060 = vpop.permute.xlu0 %1059
    %v1061 = vsel %vm347, %v1060, 0
    %1063 = vmatprep.subr.mxu0 0.0
    %1064 = vmatpush1.msra.mxu0 %v517
    %1065 = vmatprep.subr.mxu0 0.0
    %1066 = vmatpush1.msra.mxu0 %v518
    %1067 = vmatprep.subr.mxu0 0.0
    %1068 = vmatpush1.msra.mxu0 0.0
    %1069 = vmatprep.subr.mxu0 0.0
    %1070 = vmatpush1.msra.mxu0 0.0
    %1071 = vmatprep.subr.mxu0 0.0
    %1072 = vmatpush1.msra.mxu0 0.0
    %1073 = vmatprep.subr.mxu0 0.0
    %1074 = vmatpush1.msra.mxu0 0.0
    %1075 = vmatprep.subr.mxu0 0.0
    %1076 = vmatpush1.msra.mxu0 0.0
    %1077 = vmatprep.subr.mxu0 0.0
    %1078 = vmatpush1.msra.mxu0 0.0
    %1079 = vmatprep.subr.mxu0 0.0
    %1080 = vmatpush1.msra.mxu0 0.0
    %1081 = vmatprep.subr.mxu0 0.0
    %1082 = vmatpush1.msra.mxu0 0.0
    %1083 = vmatprep.subr.mxu0 0.0
    %1084 = vmatpush1.msra.mxu0 0.0
    %1085 = vmatprep.subr.mxu0 0.0
    %1086 = vmatpush1.msra.mxu0 0.0
    %1087 = vmatprep.subr.mxu0 0.0
    %1088 = vmatpush1.msra.mxu0 0.0
    %1089 = vmatprep.subr.mxu0 0.0
    %1090 = vmatpush1.msra.mxu0 0.0
    %1091 = vmatprep.subr.mxu0 0.0
    %1092 = vmatpush1.msra.mxu0 0.0
    %1093 = vmatprep.subr.mxu0 0.0
    %1094 = vmatpush1.msra.mxu0 0.0
    %1095 = vmatprep.subr.mxu0 0.0
    %1096 = vmatpush1.msra.mxu0 0.0
    %1097 = vmatprep.subr.mxu0 0.0
    %1098 = vmatpush1.msra.mxu0 0.0
    %1099 = vmatprep.subr.mxu0 0.0
    %1100 = vmatpush1.msra.mxu0 0.0
    %1101 = vmatprep.subr.mxu0 0.0
    %1102 = vmatpush1.msra.mxu0 0.0
    %1103 = vmatprep.subr.mxu0 0.0
    %1104 = vmatpush1.msra.mxu0 0.0
    %1105 = vmatprep.subr.mxu0 0.0
    %1106 = vmatpush1.msra.mxu0 0.0
    %1107 = vmatprep.subr.mxu0 0.0
    %1108 = vmatpush1.msra.mxu0 0.0
    %1109 = vmatprep.subr.mxu0 0.0
    %1110 = vmatpush1.msra.mxu0 0.0
    %1111 = vmatprep.subr.mxu0 0.0
    %1112 = vmatpush1.msra.mxu0 0.0
    %1113 = vmatprep.subr.mxu0 0.0
    %1114 = vmatpush1.msra.mxu0 0.0
    %1115 = vmatprep.subr.mxu0 0.0
    %1116 = vmatpush1.msra.mxu0 0.0
    %1117 = vmatprep.subr.mxu0 0.0
    %1118 = vmatpush1.msra.mxu0 0.0
    %1119 = vmatprep.subr.mxu0 0.0
    %1120 = vmatpush1.msra.mxu0 0.0
    %1121 = vmatprep.subr.mxu0 0.0
    %1122 = vmatpush1.msra.mxu0 0.0
    %1123 = vmatprep.subr.mxu0 0.0
    %1124 = vmatpush1.msra.mxu0 0.0
    %1125 = vmatprep.subr.mxu0 0.0
    %1126 = vmatpush1.msra.mxu0 0.0
    %1127 = vmatprep.mubr.f32.mxu0 0.0
    %1128 = vmatmul.mubr.f32.gmra.mrb[0].mxu0 %v1061
    %v1129 = vpop.f32.mrb[0].mxu0
    %v1130 = vadd.f32 0.0, %v1129
    %v1131 = vpop.f32.mrb[0].mxu0
    %1132 = vdwg.mxu0
    %v1134 = vrot.slane %v1130, 6
    %1135 = vrot.lane.b32.xlu0 %v1134, 64
    %v1136 = vpop.permute.xlu0 %1135
    %v1138 = vadd.f32 %v512, %v1136
    %v1139 = vxor.u32 %v1138, 2147483648
    %v1140 = vmul.f32 %v1139, 1.442695
    %v1141 = vpow.pop %v1140
    %v1142 = vadd.f32 %v1141, 1.0
    %v1143 = vrcp.pop %v1142
    %v1144 = vmul.f32 1.0, %v1143
    %v1145 = vtanh.pop %v1138
    %v1147 = vrot.slane %v943, 2
    %v1149 = vmul.f32 %v1144, %v1147
    %1151 = vrot.lane.b32.xlu0 %v1145, 96
    %v1152 = vpop.permute.xlu0 %1151
    %v1154 = vmul.f32 %v1144, %v1152
    %1156 = vrot.lane.b32.xlu0 %v1154, 16
    %v1157 = vpop.permute.xlu0 %1156
    %v1159 = vadd.f32 %v1149, %v1157
    %v1160 = vtanh.pop %v1159
    %1162 = vrot.lane.b32.xlu0 %v1160, 32
    %v1163 = vpop.permute.xlu0 %1162
    %v1165 = vmul.f32 %v1144, %v1163
    %v1167 = vrot.slane %v1056, 4
    %1168 = vrot.lane.b32.xlu0 %v1167, 80
    %v1169 = vpop.permute.xlu0 %1168
    %v1170 = vsel %vm347, %v1169, 0
    %1172 = vmatprep.subr.mxu0 0.0
    %1173 = vmatpush1.msra.mxu0 %v515
    %1174 = vmatprep.subr.mxu0 0.0
    %1175 = vmatpush1.msra.mxu0 %v516
    %1176 = vmatprep.subr.mxu0 0.0
    %1177 = vmatpush1.msra.mxu0 0.0
    %1178 = vmatprep.subr.mxu0 0.0
    %1179 = vmatpush1.msra.mxu0 0.0
    %1180 = vmatprep.subr.mxu0 0.0
    %1181 = vmatpush1.msra.mxu0 0.0
    %1182 = vmatprep.subr.mxu0 0.0
    %1183 = vmatpush1.msra.mxu0 0.0
    %1184 = vmatprep.subr.mxu0 0.0
    %1185 = vmatpush1.msra.mxu0 0.0
    %1186 = vmatprep.subr.mxu0 0.0
    %1187 = vmatpush1.msra.mxu0 0.0
    %1188 = vmatprep.subr.mxu0 0.0
    %1189 = vmatpush1.msra.mxu0 0.0
    %1190 = vmatprep.subr.mxu0 0.0
    %1191 = vmatpush1.msra.mxu0 0.0
    %1192 = vmatprep.subr.mxu0 0.0
    %1193 = vmatpush1.msra.mxu0 0.0
    %1194 = vmatprep.subr.mxu0 0.0
    %1195 = vmatpush1.msra.mxu0 0.0
    %1196 = vmatprep.subr.mxu0 0.0
    %1197 = vmatpush1.msra.mxu0 0.0
    %1198 = vmatprep.subr.mxu0 0.0
    %1199 = vmatpush1.msra.mxu0 0.0
    %1200 = vmatprep.subr.mxu0 0.0
    %1201 = vmatpush1.msra.mxu0 0.0
    %1202 = vmatprep.subr.mxu0 0.0
    %1203 = vmatpush1.msra.mxu0 0.0
    %1204 = vmatprep.subr.mxu0 0.0
    %1205 = vmatpush1.msra.mxu0 0.0
    %1206 = vmatprep.subr.mxu0 0.0
    %1207 = vmatpush1.msra.mxu0 0.0
    %1208 = vmatprep.subr.mxu0 0.0
    %1209 = vmatpush1.msra.mxu0 0.0
    %1210 = vmatprep.subr.mxu0 0.0
    %1211 = vmatpush1.msra.mxu0 0.0
    %1212 = vmatprep.subr.mxu0 0.0
    %1213 = vmatpush1.msra.mxu0 0.0
    %1214 = vmatprep.subr.mxu0 0.0
    %1215 = vmatpush1.msra.mxu0 0.0
    %1216 = vmatprep.subr.mxu0 0.0
    %1217 = vmatpush1.msra.mxu0 0.0
    %1218 = vmatprep.subr.mxu0 0.0
    %1219 = vmatpush1.msra.mxu0 0.0
    %1220 = vmatprep.subr.mxu0 0.0
    %1221 = vmatpush1.msra.mxu0 0.0
    %1222 = vmatprep.subr.mxu0 0.0
    %1223 = vmatpush1.msra.mxu0 0.0
    %1224 = vmatprep.subr.mxu0 0.0
    %1225 = vmatpush1.msra.mxu0 0.0
    %1226 = vmatprep.subr.mxu0 0.0
    %1227 = vmatpush1.msra.mxu0 0.0
    %1228 = vmatprep.subr.mxu0 0.0
    %1229 = vmatpush1.msra.mxu0 0.0
    %1230 = vmatprep.subr.mxu0 0.0
    %1231 = vmatpush1.msra.mxu0 0.0
    %1232 = vmatprep.subr.mxu0 0.0
    %1233 = vmatpush1.msra.mxu0 0.0
    %1234 = vmatprep.subr.mxu0 0.0
    %1235 = vmatpush1.msra.mxu0 0.0
    %1236 = vmatprep.mubr.f32.mxu0 0.0
    %1237 = vmatmul.mubr.f32.gmra.mrb[0].mxu0 %v1170
    %v1238 = vpop.f32.mrb[0].mxu0
    %v1239 = vadd.f32 0.0, %v1238
    %v1240 = vpop.f32.mrb[0].mxu0
    %1241 = vdwg.mxu0
    %v1243 = vrot.slane %v1239, 2
    %v1245 = vadd.f32 %v507, %v1243
    %v1246 = vxor.u32 %v1245, 2147483648
    %v1247 = vmul.f32 %v1246, 1.442695
    %v1248 = vpow.pop %v1247
    %v1249 = vadd.f32 %v1248, 1.0
    %v1250 = vrcp.pop %v1249
    %v1251 = vmul.f32 1.0, %v1250
    %v1252 = vtanh.pop %v1245
    %v1254 = vrot.slane %v1050, 6
    %v1256 = vmul.f32 %v1251, %v1254
    %1258 = vrot.lane.b32.xlu0 %v1252, 96
    %v1259 = vpop.permute.xlu0 %1258
    %v1261 = vmul.f32 %v1251, %v1259
    %1263 = vrot.lane.b32.xlu0 %v1261, 16
    %v1264 = vpop.permute.xlu0 %1263
    %v1266 = vadd.f32 %v1256, %v1264
    %v1267 = vtanh.pop %v1266
    %1269 = vrot.lane.b32.xlu0 %v1267, 32
    %v1270 = vpop.permute.xlu0 %1269
    %v1272 = vmul.f32 %v1251, %v1270
    %v1274 = vrot.slane %v1165, 2
    %1275 = vrot.lane.b32.xlu0 %v1274, 16
    %v1276 = vpop.permute.xlu0 %1275
    %v1277 = vsel %vm347, %v1276, 0
    %1279 = vmatprep.subr.mxu0 0.0
    %1280 = vmatpush1.msra.mxu0 %v517
    %1281 = vmatprep.subr.mxu0 0.0
    %1282 = vmatpush1.msra.mxu0 %v518
    %1283 = vmatprep.subr.mxu0 0.0
    %1284 = vmatpush1.msra.mxu0 0.0
    %1285 = vmatprep.subr.mxu0 0.0
    %1286 = vmatpush1.msra.mxu0 0.0
    %1287 = vmatprep.subr.mxu0 0.0
    %1288 = vmatpush1.msra.mxu0 0.0
    %1289 = vmatprep.subr.mxu0 0.0
    %1290 = vmatpush1.msra.mxu0 0.0
    %1291 = vmatprep.subr.mxu0 0.0
    %1292 = vmatpush1.msra.mxu0 0.0
    %1293 = vmatprep.subr.mxu0 0.0
    %1294 = vmatpush1.msra.mxu0 0.0
    %1295 = vmatprep.subr.mxu0 0.0
    %1296 = vmatpush1.msra.mxu0 0.0
    %1297 = vmatprep.subr.mxu0 0.0
    %1298 = vmatpush1.msra.mxu0 0.0
    %1299 = vmatprep.subr.mxu0 0.0
    %1300 = vmatpush1.msra.mxu0 0.0
    %1301 = vmatprep.subr.mxu0 0.0
    %1302 = vmatpush1.msra.mxu0 0.0
    %1303 = vmatprep.subr.mxu0 0.0
    %1304 = vmatpush1.msra.mxu0 0.0
    %1305 = vmatprep.subr.mxu0 0.0
    %1306 = vmatpush1.msra.mxu0 0.0
    %1307 = vmatprep.subr.mxu0 0.0
    %1308 = vmatpush1.msra.mxu0 0.0
    %1309 = vmatprep.subr.mxu0 0.0
    %1310 = vmatpush1.msra.mxu0 0.0
    %1311 = vmatprep.subr.mxu0 0.0
    %1312 = vmatpush1.msra.mxu0 0.0
    %1313 = vmatprep.subr.mxu0 0.0
    %1314 = vmatpush1.msra.mxu0 0.0
    %1315 = vmatprep.subr.mxu0 0.0
    %1316 = vmatpush1.msra.mxu0 0.0
    %1317 = vmatprep.subr.mxu0 0.0
    %1318 = vmatpush1.msra.mxu0 0.0
    %1319 = vmatprep.subr.mxu0 0.0
    %1320 = vmatpush1.msra.mxu0 0.0
    %1321 = vmatprep.subr.mxu0 0.0
    %1322 = vmatpush1.msra.mxu0 0.0
    %1323 = vmatprep.subr.mxu0 0.0
    %1324 = vmatpush1.msra.mxu0 0.0
    %1325 = vmatprep.subr.mxu0 0.0
    %1326 = vmatpush1.msra.mxu0 0.0
    %1327 = vmatprep.subr.mxu0 0.0
    %1328 = vmatpush1.msra.mxu0 0.0
    %1329 = vmatprep.subr.mxu0 0.0
    %1330 = vmatpush1.msra.mxu0 0.0
    %1331 = vmatprep.subr.mxu0 0.0
    %1332 = vmatpush1.msra.mxu0 0.0
    %1333 = vmatprep.subr.mxu0 0.0
    %1334 = vmatpush1.msra.mxu0 0.0
    %1335 = vmatprep.subr.mxu0 0.0
    %1336 = vmatpush1.msra.mxu0 0.0
    %1337 = vmatprep.subr.mxu0 0.0
    %1338 = vmatpush1.msra.mxu0 0.0
    %1339 = vmatprep.subr.mxu0 0.0
    %1340 = vmatpush1.msra.mxu0 0.0
    %1341 = vmatprep.subr.mxu0 0.0
    %1342 = vmatpush1.msra.mxu0 0.0
    %1343 = vmatprep.mubr.f32.mxu0 0.0
    %1344 = vmatmul.mubr.f32.gmra.mrb[0].mxu0 %v1277
    %v1345 = vpop.f32.mrb[0].mxu0
    %v1346 = vadd.f32 0.0, %v1345
    %v1347 = vpop.f32.mrb[0].mxu0
    %1348 = vdwg.mxu0
    %1350 = vrot.lane.b32.xlu0 %v1346, 64
    %v1351 = vpop.permute.xlu0 %1350
    %v1353 = vadd.f32 %v512, %v1351
    %v1354 = vxor.u32 %v1353, 2147483648
    %v1355 = vmul.f32 %v1354, 1.442695
    %v1356 = vpow.pop %v1355
    %v1357 = vadd.f32 %v1356, 1.0
    %v1358 = vrcp.pop %v1357
    %v1359 = vmul.f32 1.0, %v1358
    %v1360 = vtanh.pop %v1353
    %v1362 = vrot.slane %v1159, 2
    %v1364 = vmul.f32 %v1359, %v1362
    %1366 = vrot.lane.b32.xlu0 %v1360, 96
    %v1367 = vpop.permute.xlu0 %1366
    %v1369 = vmul.f32 %v1359, %v1367
    %1371 = vrot.lane.b32.xlu0 %v1369, 16
    %v1372 = vpop.permute.xlu0 %1371
    %v1374 = vadd.f32 %v1364, %v1372
    %v1375 = vtanh.pop %v1374
    %1377 = vrot.lane.b32.xlu0 %v1375, 32
    %v1378 = vpop.permute.xlu0 %1377
    %v1380 = vmul.f32 %v1359, %v1378
    %v1382 = vrot.slane %v1272, 6
    %1383 = vrot.lane.b32.xlu0 %v1382, 80
    %v1384 = vpop.permute.xlu0 %1383
    %v1385 = vsel %vm347, %v1384, 0
    %1387 = vmatprep.subr.mxu0 0.0
    %1388 = vmatpush1.msra.mxu0 %v515
    %1389 = vmatprep.subr.mxu0 0.0
    %1390 = vmatpush1.msra.mxu0 %v516
    %1391 = vmatprep.subr.mxu0 0.0
    %1392 = vmatpush1.msra.mxu0 0.0
    %1393 = vmatprep.subr.mxu0 0.0
    %1394 = vmatpush1.msra.mxu0 0.0
    %1395 = vmatprep.subr.mxu0 0.0
    %1396 = vmatpush1.msra.mxu0 0.0
    %1397 = vmatprep.subr.mxu0 0.0
    %1398 = vmatpush1.msra.mxu0 0.0
    %1399 = vmatprep.subr.mxu0 0.0
    %1400 = vmatpush1.msra.mxu0 0.0
    %1401 = vmatprep.subr.mxu0 0.0
    %1402 = vmatpush1.msra.mxu0 0.0
    %1403 = vmatprep.subr.mxu0 0.0
    %1404 = vmatpush1.msra.mxu0 0.0
    %1405 = vmatprep.subr.mxu0 0.0
    %1406 = vmatpush1.msra.mxu0 0.0
    %1407 = vmatprep.subr.mxu0 0.0
    %1408 = vmatpush1.msra.mxu0 0.0
    %1409 = vmatprep.subr.mxu0 0.0
    %1410 = vmatpush1.msra.mxu0 0.0
    %1411 = vmatprep.subr.mxu0 0.0
    %1412 = vmatpush1.msra.mxu0 0.0
    %1413 = vmatprep.subr.mxu0 0.0
    %1414 = vmatpush1.msra.mxu0 0.0
    %1415 = vmatprep.subr.mxu0 0.0
    %1416 = vmatpush1.msra.mxu0 0.0
    %1417 = vmatprep.subr.mxu0 0.0
    %1418 = vmatpush1.msra.mxu0 0.0
    %1419 = vmatprep.subr.mxu0 0.0
    %1420 = vmatpush1.msra.mxu0 0.0
    %1421 = vmatprep.subr.mxu0 0.0
    %1422 = vmatpush1.msra.mxu0 0.0
    %1423 = vmatprep.subr.mxu0 0.0
    %1424 = vmatpush1.msra.mxu0 0.0
    %1425 = vmatprep.subr.mxu0 0.0
    %1426 = vmatpush1.msra.mxu0 0.0
    %1427 = vmatprep.subr.mxu0 0.0
    %1428 = vmatpush1.msra.mxu0 0.0
    %1429 = vmatprep.subr.mxu0 0.0
    %1430 = vmatpush1.msra.mxu0 0.0
    %1431 = vmatprep.subr.mxu0 0.0
    %1432 = vmatpush1.msra.mxu0 0.0
    %1433 = vmatprep.subr.mxu0 0.0
    %1434 = vmatpush1.msra.mxu0 0.0
    %1435 = vmatprep.subr.mxu0 0.0
    %1436 = vmatpush1.msra.mxu0 0.0
    %1437 = vmatprep.subr.mxu0 0.0
    %1438 = vmatpush1.msra.mxu0 0.0
    %1439 = vmatprep.subr.mxu0 0.0
    %1440 = vmatpush1.msra.mxu0 0.0
    %1441 = vmatprep.subr.mxu0 0.0
    %1442 = vmatpush1.msra.mxu0 0.0
    %1443 = vmatprep.subr.mxu0 0.0
    %1444 = vmatpush1.msra.mxu0 0.0
    %1445 = vmatprep.subr.mxu0 0.0
    %1446 = vmatpush1.msra.mxu0 0.0
    %1447 = vmatprep.subr.mxu0 0.0
    %1448 = vmatpush1.msra.mxu0 0.0
    %1449 = vmatprep.subr.mxu0 0.0
    %1450 = vmatpush1.msra.mxu0 0.0
    %1451 = vmatprep.mubr.f32.mxu0 0.0
    %1452 = vmatmul.mubr.f32.gmra.mrb[0].mxu0 %v1385
    %v1453 = vpop.f32.mrb[0].mxu0
    %v1454 = vadd.f32 0.0, %v1453
    %v1455 = vpop.f32.mrb[0].mxu0
    %1456 = vdwg.mxu0
    %v1457 = vadd.f32 %v512, %v1454
    %v1458 = vxor.u32 %v1457, 2147483648
    %v1459 = vmul.f32 %v1458, 1.442695
    %v1460 = vpow.pop %v1459
    %v1461 = vadd.f32 %v1460, 1.0
    %v1462 = vrcp.pop %v1461
    %v1463 = vmul.f32 1.0, %v1462
    %v1464 = vtanh.pop %v1457
    %v1466 = vrot.slane %v1266, 6
    %v1468 = vmul.f32 %v1463, %v1466
    %1470 = vrot.lane.b32.xlu0 %v1464, 96
    %v1471 = vpop.permute.xlu0 %1470
    %v1473 = vmul.f32 %v1463, %v1471
    %1475 = vrot.lane.b32.xlu0 %v1473, 16
    %v1476 = vpop.permute.xlu0 %1475
    %v1478 = vadd.f32 %v1468, %v1476
    %v1479 = vtanh.pop %v1478
    %1481 = vrot.lane.b32.xlu0 %v1479, 32
    %v1482 = vpop.permute.xlu0 %1481
    %v1484 = vmul.f32 %v1463, %v1482
    %1486 = vrot.lane.b32.xlu0 %v1380, 16
    %v1487 = vpop.permute.xlu0 %1486
    %v1488 = vsel %vm347, %v1487, 0
    %1490 = vmatprep.subr.mxu0 0.0
    %1491 = vmatpush1.msra.mxu0 %v517
    %1492 = vmatprep.subr.mxu0 0.0
    %1493 = vmatpush1.msra.mxu0 %v518
    %1494 = vmatprep.subr.mxu0 0.0
    %1495 = vmatpush1.msra.mxu0 0.0
    %1496 = vmatprep.subr.mxu0 0.0
    %1497 = vmatpush1.msra.mxu0 0.0
    %1498 = vmatprep.subr.mxu0 0.0
    %1499 = vmatpush1.msra.mxu0 0.0
    %1500 = vmatprep.subr.mxu0 0.0
    %1501 = vmatpush1.msra.mxu0 0.0
    %1502 = vmatprep.subr.mxu0 0.0
    %1503 = vmatpush1.msra.mxu0 0.0
    %1504 = vmatprep.subr.mxu0 0.0
    %1505 = vmatpush1.msra.mxu0 0.0
    %1506 = vmatprep.subr.mxu0 0.0
    %1507 = vmatpush1.msra.mxu0 0.0
    %1508 = vmatprep.subr.mxu0 0.0
    %1509 = vmatpush1.msra.mxu0 0.0
    %1510 = vmatprep.subr.mxu0 0.0
    %1511 = vmatpush1.msra.mxu0 0.0
    %1512 = vmatprep.subr.mxu0 0.0
    %1513 = vmatpush1.msra.mxu0 0.0
    %1514 = vmatprep.subr.mxu0 0.0
    %1515 = vmatpush1.msra.mxu0 0.0
    %1516 = vmatprep.subr.mxu0 0.0
    %1517 = vmatpush1.msra.mxu0 0.0
    %1518 = vmatprep.subr.mxu0 0.0
    %1519 = vmatpush1.msra.mxu0 0.0
    %1520 = vmatprep.subr.mxu0 0.0
    %1521 = vmatpush1.msra.mxu0 0.0
    %1522 = vmatprep.subr.mxu0 0.0
    %1523 = vmatpush1.msra.mxu0 0.0
    %1524 = vmatprep.subr.mxu0 0.0
    %1525 = vmatpush1.msra.mxu0 0.0
    %1526 = vmatprep.subr.mxu0 0.0
    %1527 = vmatpush1.msra.mxu0 0.0
    %1528 = vmatprep.subr.mxu0 0.0
    %1529 = vmatpush1.msra.mxu0 0.0
    %1530 = vmatprep.subr.mxu0 0.0
    %1531 = vmatpush1.msra.mxu0 0.0
    %1532 = vmatprep.subr.mxu0 0.0
    %1533 = vmatpush1.msra.mxu0 0.0
    %1534 = vmatprep.subr.mxu0 0.0
    %1535 = vmatpush1.msra.mxu0 0.0
    %1536 = vmatprep.subr.mxu0 0.0
    %1537 = vmatpush1.msra.mxu0 0.0
    %1538 = vmatprep.subr.mxu0 0.0
    %1539 = vmatpush1.msra.mxu0 0.0
    %1540 = vmatprep.subr.mxu0 0.0
    %1541 = vmatpush1.msra.mxu0 0.0
    %1542 = vmatprep.subr.mxu0 0.0
    %1543 = vmatpush1.msra.mxu0 0.0
    %1544 = vmatprep.subr.mxu0 0.0
    %1545 = vmatpush1.msra.mxu0 0.0
    %1546 = vmatprep.subr.mxu0 0.0
    %1547 = vmatpush1.msra.mxu0 0.0
    %1548 = vmatprep.subr.mxu0 0.0
    %1549 = vmatpush1.msra.mxu0 0.0
    %1550 = vmatprep.subr.mxu0 0.0
    %1551 = vmatpush1.msra.mxu0 0.0
    %1552 = vmatprep.subr.mxu0 0.0
    %1553 = vmatpush1.msra.mxu0 0.0
    %1554 = vmatprep.mubr.f32.mxu0 0.0
    %1555 = vmatmul.mubr.f32.gmra.mrb[0].mxu0 %v1488
    %v1556 = vpop.f32.mrb[0].mxu0
    %v1557 = vadd.f32 0.0, %v1556
    %v1558 = vpop.f32.mrb[0].mxu0
    %1559 = vdwg.mxu0
    %v1561 = vrot.slane %v1557, 2
    %1562 = vrot.lane.b32.xlu0 %v1561, 64
    %v1563 = vpop.permute.xlu0 %1562
    %v1565 = vadd.f32 %v507, %v1563
    %v1566 = vxor.u32 %v1565, 2147483648
    %v1567 = vmul.f32 %v1566, 1.442695
    %v1568 = vpow.pop %v1567
    %v1569 = vadd.f32 %v1568, 1.0
    %v1570 = vrcp.pop %v1569
    %v1571 = vmul.f32 1.0, %v1570
    %v1572 = vtanh.pop %v1565
    %v1574 = vrot.slane %v1374, 2
    %v1576 = vmul.f32 %v1571, %v1574
    %1578 = vrot.lane.b32.xlu0 %v1572, 96
    %v1579 = vpop.permute.xlu0 %1578
    %v1581 = vmul.f32 %v1571, %v1579
    %1583 = vrot.lane.b32.xlu0 %v1581, 16
    %v1584 = vpop.permute.xlu0 %1583
    %v1586 = vadd.f32 %v1576, %v1584
    %v1587 = vtanh.pop %v1586
    %1589 = vrot.lane.b32.xlu0 %v1587, 32
    %v1590 = vpop.permute.xlu0 %1589
    %v1592 = vmul.f32 %v1571, %v1590
    %1594 = vrot.lane.b32.xlu0 %v1484, 80
    %v1595 = vpop.permute.xlu0 %1594
    %v1596 = vsel %vm347, %v1595, 0
    %1598 = vmatprep.subr.mxu0 0.0
    %1599 = vmatpush1.msra.mxu0 %v515
    %1600 = vmatprep.subr.mxu0 0.0
    %1601 = vmatpush1.msra.mxu0 %v516
    %1602 = vmatprep.subr.mxu0 0.0
    %1603 = vmatpush1.msra.mxu0 0.0
    %1604 = vmatprep.subr.mxu0 0.0
    %1605 = vmatpush1.msra.mxu0 0.0
    %1606 = vmatprep.subr.mxu0 0.0
    %1607 = vmatpush1.msra.mxu0 0.0
    %1608 = vmatprep.subr.mxu0 0.0
    %1609 = vmatpush1.msra.mxu0 0.0
    %1610 = vmatprep.subr.mxu0 0.0
    %1611 = vmatpush1.msra.mxu0 0.0
    %1612 = vmatprep.subr.mxu0 0.0
    %1613 = vmatpush1.msra.mxu0 0.0
    %1614 = vmatprep.subr.mxu0 0.0
    %1615 = vmatpush1.msra.mxu0 0.0
    %1616 = vmatprep.subr.mxu0 0.0
    %1617 = vmatpush1.msra.mxu0 0.0
    %1618 = vmatprep.subr.mxu0 0.0
    %1619 = vmatpush1.msra.mxu0 0.0
    %1620 = vmatprep.subr.mxu0 0.0
    %1621 = vmatpush1.msra.mxu0 0.0
    %1622 = vmatprep.subr.mxu0 0.0
    %1623 = vmatpush1.msra.mxu0 0.0
    %1624 = vmatprep.subr.mxu0 0.0
    %1625 = vmatpush1.msra.mxu0 0.0
    %1626 = vmatprep.subr.mxu0 0.0
    %1627 = vmatpush1.msra.mxu0 0.0
    %1628 = vmatprep.subr.mxu0 0.0
    %1629 = vmatpush1.msra.mxu0 0.0
    %1630 = vmatprep.subr.mxu0 0.0
    %1631 = vmatpush1.msra.mxu0 0.0
    %1632 = vmatprep.subr.mxu0 0.0
    %1633 = vmatpush1.msra.mxu0 0.0
    %1634 = vmatprep.subr.mxu0 0.0
    %1635 = vmatpush1.msra.mxu0 0.0
    %1636 = vmatprep.subr.mxu0 0.0
    %1637 = vmatpush1.msra.mxu0 0.0
    %1638 = vmatprep.subr.mxu0 0.0
    %1639 = vmatpush1.msra.mxu0 0.0
    %1640 = vmatprep.subr.mxu0 0.0
    %1641 = vmatpush1.msra.mxu0 0.0
    %1642 = vmatprep.subr.mxu0 0.0
    %1643 = vmatpush1.msra.mxu0 0.0
    %1644 = vmatprep.subr.mxu0 0.0
    %1645 = vmatpush1.msra.mxu0 0.0
    %1646 = vmatprep.subr.mxu0 0.0
    %1647 = vmatpush1.msra.mxu0 0.0
    %1648 = vmatprep.subr.mxu0 0.0
    %1649 = vmatpush1.msra.mxu0 0.0
    %1650 = vmatprep.subr.mxu0 0.0
    %1651 = vmatpush1.msra.mxu0 0.0
    %1652 = vmatprep.subr.mxu0 0.0
    %1653 = vmatpush1.msra.mxu0 0.0
    %1654 = vmatprep.subr.mxu0 0.0
    %1655 = vmatpush1.msra.mxu0 0.0
    %1656 = vmatprep.subr.mxu0 0.0
    %1657 = vmatpush1.msra.mxu0 0.0
    %1658 = vmatprep.subr.mxu0 0.0
    %1659 = vmatpush1.msra.mxu0 0.0
    %1660 = vmatprep.subr.mxu0 0.0
    %1661 = vmatpush1.msra.mxu0 0.0
    %1662 = vmatprep.mubr.f32.mxu0 0.0
    %1663 = vmatmul.mubr.f32.gmra.mrb[0].mxu0 %v1596
    %v1664 = vpop.f32.mrb[0].mxu0
    %v1665 = vadd.f32 0.0, %v1664
    %v1666 = vpop.f32.mrb[0].mxu0
    %1667 = vdwg.mxu0
    %v1669 = vrot.slane %v1665, 6
    %v1671 = vadd.f32 %v512, %v1669
    %v1672 = vxor.u32 %v1671, 2147483648
    %v1673 = vmul.f32 %v1672, 1.442695
    %v1674 = vpow.pop %v1673
    %v1675 = vadd.f32 %v1674, 1.0
    %v1676 = vrcp.pop %v1675
    %v1677 = vmul.f32 1.0, %v1676
    %v1678 = vtanh.pop %v1671
    %v1680 = vrot.slane %v1478, 6
    %v1682 = vmul.f32 %v1677, %v1680
    %1684 = vrot.lane.b32.xlu0 %v1678, 96
    %v1685 = vpop.permute.xlu0 %1684
    %v1687 = vmul.f32 %v1677, %v1685
    %1689 = vrot.lane.b32.xlu0 %v1687, 16
    %v1690 = vpop.permute.xlu0 %1689
    %v1692 = vadd.f32 %v1682, %v1690
    %v1693 = vtanh.pop %v1692
    %1695 = vrot.lane.b32.xlu0 %v1693, 32
    %v1696 = vpop.permute.xlu0 %1695
    %v1698 = vmul.f32 %v1677, %v1696
    %v1700 = vrot.slane %v1592, 6
    %1701 = vrot.lane.b32.xlu0 %v1700, 16
    %v1702 = vpop.permute.xlu0 %1701
    %v1703 = vsel %vm347, %v1702, 0
    %1705 = vmatprep.subr.mxu0 0.0
    %1706 = vmatpush1.msra.mxu0 %v517
    %1707 = vmatprep.subr.mxu0 0.0
    %1708 = vmatpush1.msra.mxu0 %v518
    %1709 = vmatprep.subr.mxu0 0.0
    %1710 = vmatpush1.msra.mxu0 0.0
    %1711 = vmatprep.subr.mxu0 0.0
    %1712 = vmatpush1.msra.mxu0 0.0
    %1713 = vmatprep.subr.mxu0 0.0
    %1714 = vmatpush1.msra.mxu0 0.0
    %1715 = vmatprep.subr.mxu0 0.0
    %1716 = vmatpush1.msra.mxu0 0.0
    %1717 = vmatprep.subr.mxu0 0.0
    %1718 = vmatpush1.msra.mxu0 0.0
    %1719 = vmatprep.subr.mxu0 0.0
    %1720 = vmatpush1.msra.mxu0 0.0
    %1721 = vmatprep.subr.mxu0 0.0
    %1722 = vmatpush1.msra.mxu0 0.0
    %1723 = vmatprep.subr.mxu0 0.0
    %1724 = vmatpush1.msra.mxu0 0.0
    %1725 = vmatprep.subr.mxu0 0.0
    %1726 = vmatpush1.msra.mxu0 0.0
    %1727 = vmatprep.subr.mxu0 0.0
    %1728 = vmatpush1.msra.mxu0 0.0
    %1729 = vmatprep.subr.mxu0 0.0
    %1730 = vmatpush1.msra.mxu0 0.0
    %1731 = vmatprep.subr.mxu0 0.0
    %1732 = vmatpush1.msra.mxu0 0.0
    %1733 = vmatprep.subr.mxu0 0.0
    %1734 = vmatpush1.msra.mxu0 0.0
    %1735 = vmatprep.subr.mxu0 0.0
    %1736 = vmatpush1.msra.mxu0 0.0
    %1737 = vmatprep.subr.mxu0 0.0
    %1738 = vmatpush1.msra.mxu0 0.0
    %1739 = vmatprep.subr.mxu0 0.0
    %1740 = vmatpush1.msra.mxu0 0.0
    %1741 = vmatprep.subr.mxu0 0.0
    %1742 = vmatpush1.msra.mxu0 0.0
    %1743 = vmatprep.subr.mxu0 0.0
    %1744 = vmatpush1.msra.mxu0 0.0
    %1745 = vmatprep.subr.mxu0 0.0
    %1746 = vmatpush1.msra.mxu0 0.0
    %1747 = vmatprep.subr.mxu0 0.0
    %1748 = vmatpush1.msra.mxu0 0.0
    %1749 = vmatprep.subr.mxu0 0.0
    %1750 = vmatpush1.msra.mxu0 0.0
    %1751 = vmatprep.subr.mxu0 0.0
    %1752 = vmatpush1.msra.mxu0 0.0
    %1753 = vmatprep.subr.mxu0 0.0
    %1754 = vmatpush1.msra.mxu0 0.0
    %1755 = vmatprep.subr.mxu0 0.0
    %1756 = vmatpush1.msra.mxu0 0.0
    %1757 = vmatprep.subr.mxu0 0.0
    %1758 = vmatpush1.msra.mxu0 0.0
    %1759 = vmatprep.subr.mxu0 0.0
    %1760 = vmatpush1.msra.mxu0 0.0
    %1761 = vmatprep.subr.mxu0 0.0
    %1762 = vmatpush1.msra.mxu0 0.0
    %1763 = vmatprep.subr.mxu0 0.0
    %1764 = vmatpush1.msra.mxu0 0.0
    %1765 = vmatprep.subr.mxu0 0.0
    %1766 = vmatpush1.msra.mxu0 0.0
    %1767 = vmatprep.subr.mxu0 0.0
    %1768 = vmatpush1.msra.mxu0 0.0
    %1769 = vmatprep.mubr.f32.mxu0 0.0
    %1770 = vmatmul.mubr.f32.gmra.mrb[0].mxu0 %v1703
    %v1771 = vpop.f32.mrb[0].mxu0
    %v1772 = vadd.f32 0.0, %v1771
    %v1773 = vpop.f32.mrb[0].mxu0
    %1774 = vdwg.mxu0
    %v1776 = vrot.slane %v1772, 4
    %1777 = vrot.lane.b32.xlu0 %v1776, 64
    %v1778 = vpop.permute.xlu0 %1777
    %v1780 = vadd.f32 %v507, %v1778
    %v1781 = vxor.u32 %v1780, 2147483648
    %v1782 = vmul.f32 %v1781, 1.442695
    %v1783 = vpow.pop %v1782
    %v1784 = vadd.f32 %v1783, 1.0
    %v1785 = vrcp.pop %v1784
    %v1786 = vmul.f32 1.0, %v1785
    %v1787 = vtanh.pop %v1780
    %v1789 = vrot.slane %v1586, 2
    %v1791 = vmul.f32 %v1786, %v1789
    %1793 = vrot.lane.b32.xlu0 %v1787, 96
    %v1794 = vpop.permute.xlu0 %1793
    %v1796 = vmul.f32 %v1786, %v1794
    %1798 = vrot.lane.b32.xlu0 %v1796, 16
    %v1799 = vpop.permute.xlu0 %1798
    %v1801 = vadd.f32 %v1791, %v1799
    %v1802 = vtanh.pop %v1801
    %1804 = vrot.lane.b32.xlu0 %v1802, 32
    %v1805 = vpop.permute.xlu0 %1804
    %v1807 = vmul.f32 %v1786, %v1805
    %v1809 = vrot.slane %v1698, 2
    %1810 = vrot.lane.b32.xlu0 %v1809, 80
    %v1811 = vpop.permute.xlu0 %1810
    %v1812 = vsel %vm347, %v1811, 0
    %1814 = vmatprep.subr.mxu0 0.0
    %1815 = vmatpush1.msra.mxu0 %v515
    %1816 = vmatprep.subr.mxu0 0.0
    %1817 = vmatpush1.msra.mxu0 %v516
    %1818 = vmatprep.subr.mxu0 0.0
    %1819 = vmatpush1.msra.mxu0 0.0
    %1820 = vmatprep.subr.mxu0 0.0
    %1821 = vmatpush1.msra.mxu0 0.0
    %1822 = vmatprep.subr.mxu0 0.0
    %1823 = vmatpush1.msra.mxu0 0.0
    %1824 = vmatprep.subr.mxu0 0.0
    %1825 = vmatpush1.msra.mxu0 0.0
    %1826 = vmatprep.subr.mxu0 0.0
    %1827 = vmatpush1.msra.mxu0 0.0
    %1828 = vmatprep.subr.mxu0 0.0
    %1829 = vmatpush1.msra.mxu0 0.0
    %1830 = vmatprep.subr.mxu0 0.0
    %1831 = vmatpush1.msra.mxu0 0.0
    %1832 = vmatprep.subr.mxu0 0.0
    %1833 = vmatpush1.msra.mxu0 0.0
    %1834 = vmatprep.subr.mxu0 0.0
    %1835 = vmatpush1.msra.mxu0 0.0
    %1836 = vmatprep.subr.mxu0 0.0
    %1837 = vmatpush1.msra.mxu0 0.0
    %1838 = vmatprep.subr.mxu0 0.0
    %1839 = vmatpush1.msra.mxu0 0.0
    %1840 = vmatprep.subr.mxu0 0.0
    %1841 = vmatpush1.msra.mxu0 0.0
    %1842 = vmatprep.subr.mxu0 0.0
    %1843 = vmatpush1.msra.mxu0 0.0
    %1844 = vmatprep.subr.mxu0 0.0
    %1845 = vmatpush1.msra.mxu0 0.0
    %1846 = vmatprep.subr.mxu0 0.0
    %1847 = vmatpush1.msra.mxu0 0.0
    %1848 = vmatprep.subr.mxu0 0.0
    %1849 = vmatpush1.msra.mxu0 0.0
    %1850 = vmatprep.subr.mxu0 0.0
    %1851 = vmatpush1.msra.mxu0 0.0
    %1852 = vmatprep.subr.mxu0 0.0
    %1853 = vmatpush1.msra.mxu0 0.0
    %1854 = vmatprep.subr.mxu0 0.0
    %1855 = vmatpush1.msra.mxu0 0.0
    %1856 = vmatprep.subr.mxu0 0.0
    %1857 = vmatpush1.msra.mxu0 0.0
    %1858 = vmatprep.subr.mxu0 0.0
    %1859 = vmatpush1.msra.mxu0 0.0
    %1860 = vmatprep.subr.mxu0 0.0
    %1861 = vmatpush1.msra.mxu0 0.0
    %1862 = vmatprep.subr.mxu0 0.0
    %1863 = vmatpush1.msra.mxu0 0.0
    %1864 = vmatprep.subr.mxu0 0.0
    %1865 = vmatpush1.msra.mxu0 0.0
    %1866 = vmatprep.subr.mxu0 0.0
    %1867 = vmatpush1.msra.mxu0 0.0
    %1868 = vmatprep.subr.mxu0 0.0
    %1869 = vmatpush1.msra.mxu0 0.0
    %1870 = vmatprep.subr.mxu0 0.0
    %1871 = vmatpush1.msra.mxu0 0.0
    %1872 = vmatprep.subr.mxu0 0.0
    %1873 = vmatpush1.msra.mxu0 0.0
    %1874 = vmatprep.subr.mxu0 0.0
    %1875 = vmatpush1.msra.mxu0 0.0
    %1876 = vmatprep.subr.mxu0 0.0
    %1877 = vmatpush1.msra.mxu0 0.0
    %1878 = vmatprep.mubr.f32.mxu0 0.0
    %1879 = vmatmul.mubr.f32.gmra.mrb[0].mxu0 %v1812
    %v1880 = vpop.f32.mrb[0].mxu0
    %v1881 = vadd.f32 0.0, %v1880
    %v1882 = vpop.f32.mrb[0].mxu0
    %1883 = vdwg.mxu0
    %v1885 = vrot.slane %v1881, 4
    %v1887 = vadd.f32 %v512, %v1885
    %v1888 = vxor.u32 %v1887, 2147483648
    %v1889 = vmul.f32 %v1888, 1.442695
    %v1890 = vpow.pop %v1889
    %v1891 = vadd.f32 %v1890, 1.0
    %v1892 = vrcp.pop %v1891
    %v1893 = vmul.f32 1.0, %v1892
    %v1894 = vtanh.pop %v1887
    %v1896 = vrot.slane %v1692, 6
    %v1898 = vmul.f32 %v1893, %v1896
    %1900 = vrot.lane.b32.xlu0 %v1894, 96
    %v1901 = vpop.permute.xlu0 %1900
    %v1903 = vmul.f32 %v1893, %v1901
    %1905 = vrot.lane.b32.xlu0 %v1903, 16
    %v1906 = vpop.permute.xlu0 %1905
    %v1908 = vadd.f32 %v1898, %v1906
    %v1909 = vtanh.pop %v1908
    %1911 = vrot.lane.b32.xlu0 %v1909, 32
    %v1912 = vpop.permute.xlu0 %1911
    %v1914 = vmul.f32 %v1893, %v1912
    %v1916 = vrot.slane %v1807, 4
    %1917 = vrot.lane.b32.xlu0 %v1916, 16
    %v1918 = vpop.permute.xlu0 %1917
    %v1919 = vsel %vm347, %v1918, 0
    %1921 = vmatprep.subr.mxu0 0.0
    %1922 = vmatpush1.msra.mxu0 %v517
    %1923 = vmatprep.subr.mxu0 0.0
    %1924 = vmatpush1.msra.mxu0 %v518
    %1925 = vmatprep.subr.mxu0 0.0
    %1926 = vmatpush1.msra.mxu0 0.0
    %1927 = vmatprep.subr.mxu0 0.0
    %1928 = vmatpush1.msra.mxu0 0.0
    %1929 = vmatprep.subr.mxu0 0.0
    %1930 = vmatpush1.msra.mxu0 0.0
    %1931 = vmatprep.subr.mxu0 0.0
    %1932 = vmatpush1.msra.mxu0 0.0
    %1933 = vmatprep.subr.mxu0 0.0
    %1934 = vmatpush1.msra.mxu0 0.0
    %1935 = vmatprep.subr.mxu0 0.0
    %1936 = vmatpush1.msra.mxu0 0.0
    %1937 = vmatprep.subr.mxu0 0.0
    %1938 = vmatpush1.msra.mxu0 0.0
    %1939 = vmatprep.subr.mxu0 0.0
    %1940 = vmatpush1.msra.mxu0 0.0
    %1941 = vmatprep.subr.mxu0 0.0
    %1942 = vmatpush1.msra.mxu0 0.0
    %1943 = vmatprep.subr.mxu0 0.0
    %1944 = vmatpush1.msra.mxu0 0.0
    %1945 = vmatprep.subr.mxu0 0.0
    %1946 = vmatpush1.msra.mxu0 0.0
    %1947 = vmatprep.subr.mxu0 0.0
    %1948 = vmatpush1.msra.mxu0 0.0
    %1949 = vmatprep.subr.mxu0 0.0
    %1950 = vmatpush1.msra.mxu0 0.0
    %1951 = vmatprep.subr.mxu0 0.0
    %1952 = vmatpush1.msra.mxu0 0.0
    %1953 = vmatprep.subr.mxu0 0.0
    %1954 = vmatpush1.msra.mxu0 0.0
    %1955 = vmatprep.subr.mxu0 0.0
    %1956 = vmatpush1.msra.mxu0 0.0
    %1957 = vmatprep.subr.mxu0 0.0
    %1958 = vmatpush1.msra.mxu0 0.0
    %1959 = vmatprep.subr.mxu0 0.0
    %1960 = vmatpush1.msra.mxu0 0.0
    %1961 = vmatprep.subr.mxu0 0.0
    %1962 = vmatpush1.msra.mxu0 0.0
    %1963 = vmatprep.subr.mxu0 0.0
    %1964 = vmatpush1.msra.mxu0 0.0
    %1965 = vmatprep.subr.mxu0 0.0
    %1966 = vmatpush1.msra.mxu0 0.0
    %1967 = vmatprep.subr.mxu0 0.0
    %1968 = vmatpush1.msra.mxu0 0.0
    %1969 = vmatprep.subr.mxu0 0.0
    %1970 = vmatpush1.msra.mxu0 0.0
    %1971 = vmatprep.subr.mxu0 0.0
    %1972 = vmatpush1.msra.mxu0 0.0
    %1973 = vmatprep.subr.mxu0 0.0
    %1974 = vmatpush1.msra.mxu0 0.0
    %1975 = vmatprep.subr.mxu0 0.0
    %1976 = vmatpush1.msra.mxu0 0.0
    %1977 = vmatprep.subr.mxu0 0.0
    %1978 = vmatpush1.msra.mxu0 0.0
    %1979 = vmatprep.subr.mxu0 0.0
    %1980 = vmatpush1.msra.mxu0 0.0
    %1981 = vmatprep.subr.mxu0 0.0
    %1982 = vmatpush1.msra.mxu0 0.0
    %1983 = vmatprep.subr.mxu0 0.0
    %1984 = vmatpush1.msra.mxu0 0.0
    %1985 = vmatprep.mubr.f32.mxu0 0.0
    %1986 = vmatmul.mubr.f32.gmra.mrb[0].mxu0 %v1919
    %v1987 = vpop.f32.mrb[0].mxu0
    %v1988 = vadd.f32 0.0, %v1987
    %v1989 = vpop.f32.mrb[0].mxu0
    %1990 = vdwg.mxu0
    %v1992 = vrot.slane %v1988, 6
    %1993 = vrot.lane.b32.xlu0 %v1992, 64
    %v1994 = vpop.permute.xlu0 %1993
    %v1996 = vadd.f32 %v507, %v1994
    %v1997 = vxor.u32 %v1996, 2147483648
    %v1998 = vmul.f32 %v1997, 1.442695
    %v1999 = vpow.pop %v1998
    %v2000 = vadd.f32 %v1999, 1.0
    %v2001 = vrcp.pop %v2000
    %v2002 = vmul.f32 1.0, %v2001
    %v2003 = vtanh.pop %v1996
    %v2005 = vrot.slane %v1801, 2
    %v2007 = vmul.f32 %v2002, %v2005
    %2009 = vrot.lane.b32.xlu0 %v2003, 96
    %v2010 = vpop.permute.xlu0 %2009
    %v2012 = vmul.f32 %v2002, %v2010
    %2014 = vrot.lane.b32.xlu0 %v2012, 16
    %v2015 = vpop.permute.xlu0 %2014
    %v2017 = vadd.f32 %v2007, %v2015
    %v2018 = vtanh.pop %v2017
    %2020 = vrot.lane.b32.xlu0 %v2018, 32
    %v2021 = vpop.permute.xlu0 %2020
    %v2023 = vmul.f32 %v2002, %v2021
    %v2025 = vrot.slane %v1914, 4
    %2026 = vrot.lane.b32.xlu0 %v2025, 80
    %v2027 = vpop.permute.xlu0 %2026
    %v2028 = vsel %vm347, %v2027, 0
    %2030 = vmatprep.subr.mxu0 0.0
    %2031 = vmatpush1.msra.mxu0 %v515
    %2032 = vmatprep.subr.mxu0 0.0
    %2033 = vmatpush1.msra.mxu0 %v516
    %2034 = vmatprep.subr.mxu0 0.0
    %2035 = vmatpush1.msra.mxu0 0.0
    %2036 = vmatprep.subr.mxu0 0.0
    %2037 = vmatpush1.msra.mxu0 0.0
    %2038 = vmatprep.subr.mxu0 0.0
    %2039 = vmatpush1.msra.mxu0 0.0
    %2040 = vmatprep.subr.mxu0 0.0
    %2041 = vmatpush1.msra.mxu0 0.0
    %2042 = vmatprep.subr.mxu0 0.0
    %2043 = vmatpush1.msra.mxu0 0.0
    %2044 = vmatprep.subr.mxu0 0.0
    %2045 = vmatpush1.msra.mxu0 0.0
    %2046 = vmatprep.subr.mxu0 0.0
    %2047 = vmatpush1.msra.mxu0 0.0
    %2048 = vmatprep.subr.mxu0 0.0
    %2049 = vmatpush1.msra.mxu0 0.0
    %2050 = vmatprep.subr.mxu0 0.0
    %2051 = vmatpush1.msra.mxu0 0.0
    %2052 = vmatprep.subr.mxu0 0.0
    %2053 = vmatpush1.msra.mxu0 0.0
    %2054 = vmatprep.subr.mxu0 0.0
    %2055 = vmatpush1.msra.mxu0 0.0
    %2056 = vmatprep.subr.mxu0 0.0
    %2057 = vmatpush1.msra.mxu0 0.0
    %2058 = vmatprep.subr.mxu0 0.0
    %2059 = vmatpush1.msra.mxu0 0.0
    %2060 = vmatprep.subr.mxu0 0.0
    %2061 = vmatpush1.msra.mxu0 0.0
    %2062 = vmatprep.subr.mxu0 0.0
    %2063 = vmatpush1.msra.mxu0 0.0
    %2064 = vmatprep.subr.mxu0 0.0
    %2065 = vmatpush1.msra.mxu0 0.0
    %2066 = vmatprep.subr.mxu0 0.0
    %2067 = vmatpush1.msra.mxu0 0.0
    %2068 = vmatprep.subr.mxu0 0.0
    %2069 = vmatpush1.msra.mxu0 0.0
    %2070 = vmatprep.subr.mxu0 0.0
    %2071 = vmatpush1.msra.mxu0 0.0
    %2072 = vmatprep.subr.mxu0 0.0
    %2073 = vmatpush1.msra.mxu0 0.0
    %2074 = vmatprep.subr.mxu0 0.0
    %2075 = vmatpush1.msra.mxu0 0.0
    %2076 = vmatprep.subr.mxu0 0.0
    %2077 = vmatpush1.msra.mxu0 0.0
    %2078 = vmatprep.subr.mxu0 0.0
    %2079 = vmatpush1.msra.mxu0 0.0
    %2080 = vmatprep.subr.mxu0 0.0
    %2081 = vmatpush1.msra.mxu0 0.0
    %2082 = vmatprep.subr.mxu0 0.0
    %2083 = vmatpush1.msra.mxu0 0.0
    %2084 = vmatprep.subr.mxu0 0.0
    %2085 = vmatpush1.msra.mxu0 0.0
    %2086 = vmatprep.subr.mxu0 0.0
    %2087 = vmatpush1.msra.mxu0 0.0
    %2088 = vmatprep.subr.mxu0 0.0
    %2089 = vmatpush1.msra.mxu0 0.0
    %2090 = vmatprep.subr.mxu0 0.0
    %2091 = vmatpush1.msra.mxu0 0.0
    %2092 = vmatprep.subr.mxu0 0.0
    %2093 = vmatpush1.msra.mxu0 0.0
    %2094 = vmatprep.mubr.f32.mxu0 0.0
    %2095 = vmatmul.mubr.f32.gmra.mrb[0].mxu0 %v2028
    %v2096 = vpop.f32.mrb[0].mxu0
    %v2097 = vadd.f32 0.0, %v2096
    %v2098 = vpop.f32.mrb[0].mxu0
    %2099 = vdwg.mxu0
    %v2101 = vrot.slane %v2097, 2
    %v2103 = vadd.f32 %v512, %v2101
    %v2104 = vxor.u32 %v2103, 2147483648
    %v2105 = vmul.f32 %v2104, 1.442695
    %v2106 = vpow.pop %v2105
    %v2107 = vadd.f32 %v2106, 1.0
    %v2108 = vrcp.pop %v2107
    %v2109 = vmul.f32 1.0, %v2108
    %v2110 = vtanh.pop %v2103
    %v2112 = vrot.slane %v1908, 6
    %v2114 = vmul.f32 %v2109, %v2112
    %2116 = vrot.lane.b32.xlu0 %v2110, 96
    %v2117 = vpop.permute.xlu0 %2116
    %v2119 = vmul.f32 %v2109, %v2117
    %2121 = vrot.lane.b32.xlu0 %v2119, 16
    %v2122 = vpop.permute.xlu0 %2121
    %v2124 = vadd.f32 %v2114, %v2122
    %v2125 = vtanh.pop %v2124
    %2127 = vrot.lane.b32.xlu0 %v2125, 32
    %v2128 = vpop.permute.xlu0 %2127
    %v2130 = vmul.f32 %v2109, %v2128
    %v2132 = vrot.slane %v2023, 2
    %2133 = vrot.lane.b32.xlu0 %v2132, 16
    %v2134 = vpop.permute.xlu0 %2133
    %v2135 = vsel %vm347, %v2134, 0
    %2137 = vmatprep.subr.mxu0 0.0
    %2138 = vmatpush1.msra.mxu0 %v517
    %2139 = vmatprep.subr.mxu0 0.0
    %2140 = vmatpush1.msra.mxu0 %v518
    %2141 = vmatprep.subr.mxu0 0.0
    %2142 = vmatpush1.msra.mxu0 0.0
    %2143 = vmatprep.subr.mxu0 0.0
    %2144 = vmatpush1.msra.mxu0 0.0
    %2145 = vmatprep.subr.mxu0 0.0
    %2146 = vmatpush1.msra.mxu0 0.0
    %2147 = vmatprep.subr.mxu0 0.0
    %2148 = vmatpush1.msra.mxu0 0.0
    %2149 = vmatprep.subr.mxu0 0.0
    %2150 = vmatpush1.msra.mxu0 0.0
    %2151 = vmatprep.subr.mxu0 0.0
    %2152 = vmatpush1.msra.mxu0 0.0
    %2153 = vmatprep.subr.mxu0 0.0
    %2154 = vmatpush1.msra.mxu0 0.0
    %2155 = vmatprep.subr.mxu0 0.0
    %2156 = vmatpush1.msra.mxu0 0.0
    %2157 = vmatprep.subr.mxu0 0.0
    %2158 = vmatpush1.msra.mxu0 0.0
    %2159 = vmatprep.subr.mxu0 0.0
    %2160 = vmatpush1.msra.mxu0 0.0
    %2161 = vmatprep.subr.mxu0 0.0
    %2162 = vmatpush1.msra.mxu0 0.0
    %2163 = vmatprep.subr.mxu0 0.0
    %2164 = vmatpush1.msra.mxu0 0.0
    %2165 = vmatprep.subr.mxu0 0.0
    %2166 = vmatpush1.msra.mxu0 0.0
    %2167 = vmatprep.subr.mxu0 0.0
    %2168 = vmatpush1.msra.mxu0 0.0
    %2169 = vmatprep.subr.mxu0 0.0
    %2170 = vmatpush1.msra.mxu0 0.0
    %2171 = vmatprep.subr.mxu0 0.0
    %2172 = vmatpush1.msra.mxu0 0.0
    %2173 = vmatprep.subr.mxu0 0.0
    %2174 = vmatpush1.msra.mxu0 0.0
    %2175 = vmatprep.subr.mxu0 0.0
    %2176 = vmatpush1.msra.mxu0 0.0
    %2177 = vmatprep.subr.mxu0 0.0
    %2178 = vmatpush1.msra.mxu0 0.0
    %2179 = vmatprep.subr.mxu0 0.0
    %2180 = vmatpush1.msra.mxu0 0.0
    %2181 = vmatprep.subr.mxu0 0.0
    %2182 = vmatpush1.msra.mxu0 0.0
    %2183 = vmatprep.subr.mxu0 0.0
    %2184 = vmatpush1.msra.mxu0 0.0
    %2185 = vmatprep.subr.mxu0 0.0
    %2186 = vmatpush1.msra.mxu0 0.0
    %2187 = vmatprep.subr.mxu0 0.0
    %2188 = vmatpush1.msra.mxu0 0.0
    %2189 = vmatprep.subr.mxu0 0.0
    %2190 = vmatpush1.msra.mxu0 0.0
    %2191 = vmatprep.subr.mxu0 0.0
    %2192 = vmatpush1.msra.mxu0 0.0
    %2193 = vmatprep.subr.mxu0 0.0
    %2194 = vmatpush1.msra.mxu0 0.0
    %2195 = vmatprep.subr.mxu0 0.0
    %2196 = vmatpush1.msra.mxu0 0.0
    %2197 = vmatprep.subr.mxu0 0.0
    %2198 = vmatpush1.msra.mxu0 0.0
    %2199 = vmatprep.subr.mxu0 0.0
    %2200 = vmatpush1.msra.mxu0 0.0
    %2201 = vmatprep.mubr.f32.mxu0 0.0
    %2202 = vmatmul.mubr.f32.gmra.mrb[0].mxu0 %v2135
    %v2203 = vpop.f32.mrb[0].mxu0
    %v2204 = vadd.f32 0.0, %v2203
    %v2205 = vpop.f32.mrb[0].mxu0
    %2206 = vdwg.mxu0
    %2208 = vrot.lane.b32.xlu0 %v2204, 64
    %v2209 = vpop.permute.xlu0 %2208
    %v2211 = vadd.f32 %v507, %v2209
    %v2212 = vxor.u32 %v2211, 2147483648
    %v2213 = vmul.f32 %v2212, 1.442695
    %v2214 = vpow.pop %v2213
    %v2215 = vadd.f32 %v2214, 1.0
    %v2216 = vrcp.pop %v2215
    %v2217 = vmul.f32 1.0, %v2216
    %v2218 = vtanh.pop %v2211
    %v2220 = vrot.slane %v2017, 2
    %v2222 = vmul.f32 %v2217, %v2220
    %2224 = vrot.lane.b32.xlu0 %v2218, 96
    %v2225 = vpop.permute.xlu0 %2224
    %v2227 = vmul.f32 %v2217, %v2225
    %2229 = vrot.lane.b32.xlu0 %v2227, 16
    %v2230 = vpop.permute.xlu0 %2229
    %v2232 = vadd.f32 %v2222, %v2230
    %v2233 = vtanh.pop %v2232
    %2235 = vrot.lane.b32.xlu0 %v2233, 32
    %v2236 = vpop.permute.xlu0 %2235
    %v2238 = vmul.f32 %v2217, %v2236
    %2241 = vrot.lane.b32.xlu0 %v2238, 32
    %v2242 = vpop.permute.xlu0 %2241
    %v2244 = vsel %vm347, %v737, %v2242
    %2245 = vrot.lane.b32.xlu0 %v840, 80
    %v2246 = vpop.permute.xlu0 %2245
    %2248 = vrot.lane.b32.xlu0 %v2023, 32
    %v2249 = vpop.permute.xlu0 %2248
    %v2251 = vsel %vm347, %v2246, %v2249
    %2252 = vrot.lane.b32.xlu0 %v1056, 80
    %v2253 = vpop.permute.xlu0 %2252
    %2255 = vrot.lane.b32.xlu0 %v1807, 32
    %v2256 = vpop.permute.xlu0 %2255
    %v2258 = vsel %vm347, %v2253, %v2256
    %2259 = vrot.lane.b32.xlu0 %v1272, 80
    %v2260 = vpop.permute.xlu0 %2259
    %2262 = vrot.lane.b32.xlu0 %v1592, 32
    %v2263 = vpop.permute.xlu0 %2262
    %v2265 = vsel %vm347, %v2260, %v2263
    %2267 = vrot.lane.b32.xlu0 %v1380, 32
    %v2268 = vpop.permute.xlu0 %2267
    %v2270 = vsel %vm347, %v1595, %v2268
    %2271 = vrot.lane.b32.xlu0 %v1698, 80
    %v2272 = vpop.permute.xlu0 %2271
    %2274 = vrot.lane.b32.xlu0 %v1165, 32
    %v2275 = vpop.permute.xlu0 %2274
    %v2277 = vsel %vm347, %v2272, %v2275
    %2278 = vrot.lane.b32.xlu0 %v1914, 80
    %v2279 = vpop.permute.xlu0 %2278
    %2281 = vrot.lane.b32.xlu0 %v949, 32
    %v2282 = vpop.permute.xlu0 %2281
    %v2284 = vsel %vm347, %v2279, %v2282
    %2286 = vrot.lane.b32.xlu0 %v2130, 80
    %v2287 = vpop.permute.xlu0 %2286
    %2289 = vrot.lane.b32.xlu0 %v734, 32
    %v2290 = vpop.permute.xlu0 %2289
    %v2292 = vsel %vm347, %v2287, %v2290
    %vm2293 = vcmask 1041408
    %v2294 = vsel %vm2293, %v2244, %v2251
    %vm2295 = vcmask 1043456
    %v2296 = vsel %vm2295, %v2294, %v2258
    %vm2297 = vcmask 1045504
    %v2298 = vsel %vm2297, %v2296, %v2265
    %v2299 = vsel %vm2293, %v2270, %v2277
    %v2300 = vsel %vm2295, %v2299, %v2284
    %v2301 = vsel %vm2297, %v2300, %v2292
    %v2302 = vld [vmem:[%s14] sm:$0xff]
    %v2303 = vld [vmem:[%s14 + $0x8] sm:$0xff]
    %v2304 = vld [vmem:[%s14 + $0x10] sm:$0xff]
    %v2305 = vld [vmem:[%s14 + $0x18] sm:$0xff]
    %v2306 = vld [vmem:[%s17] sm:$0x1]
    %v2308 = vlaneseq
    %v2309 = vshrl.u32 %v2308, 7
    %v2310 = vsub.s32 0, %v2309
    %v2311 = vrot.slane %v2306, %v2310
    %v2314 = vsel %vm93, %v2298, 0
    %v2317 = vsel %vm93, %v2301, 0
    %2319 = vmatprep.subr.mxu0 0.0
    %2320 = vmatpush1.msra.mxu0 %v2302
    %2321 = vmatprep.subr.mxu0 0.0
    %2322 = vmatpush1.msra.mxu0 %v2303
    %2323 = vmatprep.subr.mxu0 0.0
    %2324 = vmatpush1.msra.mxu0 %v2304
    %2325 = vmatprep.subr.mxu0 0.0
    %2326 = vmatpush1.msra.mxu0 %v2305
    %2327 = vmatprep.subr.mxu0 0.0
    %2328 = vmatpush1.msra.mxu0 0.0
    %2329 = vmatprep.subr.mxu0 0.0
    %2330 = vmatpush1.msra.mxu0 0.0
    %2331 = vmatprep.subr.mxu0 0.0
    %2332 = vmatpush1.msra.mxu0 0.0
    %2333 = vmatprep.subr.mxu0 0.0
    %2334 = vmatpush1.msra.mxu0 0.0
    %2335 = vmatprep.subr.mxu0 0.0
    %2336 = vmatpush1.msra.mxu0 0.0
    %2337 = vmatprep.subr.mxu0 0.0
    %2338 = vmatpush1.msra.mxu0 0.0
    %2339 = vmatprep.subr.mxu0 0.0
    %2340 = vmatpush1.msra.mxu0 0.0
    %2341 = vmatprep.subr.mxu0 0.0
    %2342 = vmatpush1.msra.mxu0 0.0
    %2343 = vmatprep.subr.mxu0 0.0
    %2344 = vmatpush1.msra.mxu0 0.0
    %2345 = vmatprep.subr.mxu0 0.0
    %2346 = vmatpush1.msra.mxu0 0.0
    %2347 = vmatprep.subr.mxu0 0.0
    %2348 = vmatpush1.msra.mxu0 0.0
    %2349 = vmatprep.subr.mxu0 0.0
    %2350 = vmatpush1.msra.mxu0 0.0
    %2351 = vmatprep.subr.mxu0 0.0
    %2352 = vmatpush1.msra.mxu0 0.0
    %2353 = vmatprep.subr.mxu0 0.0
    %2354 = vmatpush1.msra.mxu0 0.0
    %2355 = vmatprep.subr.mxu0 0.0
    %2356 = vmatpush1.msra.mxu0 0.0
    %2357 = vmatprep.subr.mxu0 0.0
    %2358 = vmatpush1.msra.mxu0 0.0
    %2359 = vmatprep.subr.mxu0 0.0
    %2360 = vmatpush1.msra.mxu0 0.0
    %2361 = vmatprep.subr.mxu0 0.0
    %2362 = vmatpush1.msra.mxu0 0.0
    %2363 = vmatprep.subr.mxu0 0.0
    %2364 = vmatpush1.msra.mxu0 0.0
    %2365 = vmatprep.subr.mxu0 0.0
    %2366 = vmatpush1.msra.mxu0 0.0
    %2367 = vmatprep.subr.mxu0 0.0
    %2368 = vmatpush1.msra.mxu0 0.0
    %2369 = vmatprep.subr.mxu0 0.0
    %2370 = vmatpush1.msra.mxu0 0.0
    %2371 = vmatprep.subr.mxu0 0.0
    %2372 = vmatpush1.msra.mxu0 0.0
    %2373 = vmatprep.subr.mxu0 0.0
    %2374 = vmatpush1.msra.mxu0 0.0
    %2375 = vmatprep.subr.mxu0 0.0
    %2376 = vmatpush1.msra.mxu0 0.0
    %2377 = vmatprep.subr.mxu0 0.0
    %2378 = vmatpush1.msra.mxu0 0.0
    %2379 = vmatprep.subr.mxu0 0.0
    %2380 = vmatpush1.msra.mxu0 0.0
    %2381 = vmatprep.subr.mxu0 0.0
    %2382 = vmatpush1.msra.mxu0 0.0
    %2383 = vmatprep.mubr.f32.mxu0 0.0
    %2384 = vmatmul.mubr.f32.gmra.mrb[0].mxu0 %v2314
    %v2385 = vpop.f32.mrb[0].mxu0
    %v2386 = vadd.f32 %v2311, %v2385
    %v2387 = vpop.f32.mrb[0].mxu0
    %2388 = vmatprep.mubr.f32.mxu0 0.0
    %2389 = vmatmul.mubr.f32.gmra.mrb[0].mxu0 %v2317
    %v2390 = vpop.f32.mrb[0].mxu0
    %v2391 = vadd.f32 %v2311, %v2390
    %v2392 = vpop.f32.mrb[0].mxu0
    %2393 = vdwg.mxu0
    %v2394 = vld [vmem:[%s15] sm:$0xff]
    %v2395 = vld [vmem:[%s15 + $0x8] sm:$0xff]
    %v2396 = vld [vmem:[%s16] sm:$0xff]
    %v2397 = vld [vmem:[%s16 + $0x8] sm:$0xff]
    %s2398 = scalar_lea.vmem %s18, 4
    %v2399 = vld [vmem:[%s2398] sm:$0x3]
    %s2400 = scalar_lea.vmem %s19, 4
    %v2401 = vld [vmem:[%s2400] sm:$0x3]
    %s2402 = scalar_lea.vmem %s18, 6
    %v2403 = vld [vmem:[%s2402] sm:$0x3]
    %s2404 = scalar_lea.vmem %s19, 6
    %v2405 = vld [vmem:[%s2404] sm:$0x3]
    %v2407 = vsel %vm347, %v2399, 0
    %2409 = vmatprep.subr.mxu0 0.0
    %2410 = vmatpush1.msra.mxu0 %v2394
    %2411 = vmatprep.subr.mxu0 0.0
    %2412 = vmatpush1.msra.mxu0 %v2395
    %2413 = vmatprep.subr.mxu0 0.0
    %2414 = vmatpush1.msra.mxu0 0.0
    %2415 = vmatprep.subr.mxu0 0.0
    %2416 = vmatpush1.msra.mxu0 0.0
    %2417 = vmatprep.subr.mxu0 0.0
    %2418 = vmatpush1.msra.mxu0 0.0
    %2419 = vmatprep.subr.mxu0 0.0
    %2420 = vmatpush1.msra.mxu0 0.0
    %2421 = vmatprep.subr.mxu0 0.0
    %2422 = vmatpush1.msra.mxu0 0.0
    %2423 = vmatprep.subr.mxu0 0.0
    %2424 = vmatpush1.msra.mxu0 0.0
    %2425 = vmatprep.subr.mxu0 0.0
    %2426 = vmatpush1.msra.mxu0 0.0
    %2427 = vmatprep.subr.mxu0 0.0
    %2428 = vmatpush1.msra.mxu0 0.0
    %2429 = vmatprep.subr.mxu0 0.0
    %2430 = vmatpush1.msra.mxu0 0.0
    %2431 = vmatprep.subr.mxu0 0.0
    %2432 = vmatpush1.msra.mxu0 0.0
    %2433 = vmatprep.subr.mxu0 0.0
    %2434 = vmatpush1.msra.mxu0 0.0
    %2435 = vmatprep.subr.mxu0 0.0
    %2436 = vmatpush1.msra.mxu0 0.0
    %2437 = vmatprep.subr.mxu0 0.0
    %2438 = vmatpush1.msra.mxu0 0.0
    %2439 = vmatprep.subr.mxu0 0.0
    %2440 = vmatpush1.msra.mxu0 0.0
    %2441 = vmatprep.subr.mxu0 0.0
    %2442 = vmatpush1.msra.mxu0 0.0
    %2443 = vmatprep.subr.mxu0 0.0
    %2444 = vmatpush1.msra.mxu0 0.0
    %2445 = vmatprep.subr.mxu0 0.0
    %2446 = vmatpush1.msra.mxu0 0.0
    %2447 = vmatprep.subr.mxu0 0.0
    %2448 = vmatpush1.msra.mxu0 0.0
    %2449 = vmatprep.subr.mxu0 0.0
    %2450 = vmatpush1.msra.mxu0 0.0
    %2451 = vmatprep.subr.mxu0 0.0
    %2452 = vmatpush1.msra.mxu0 0.0
    %2453 = vmatprep.subr.mxu0 0.0
    %2454 = vmatpush1.msra.mxu0 0.0
    %2455 = vmatprep.subr.mxu0 0.0
    %2456 = vmatpush1.msra.mxu0 0.0
    %2457 = vmatprep.subr.mxu0 0.0
    %2458 = vmatpush1.msra.mxu0 0.0
    %2459 = vmatprep.subr.mxu0 0.0
    %2460 = vmatpush1.msra.mxu0 0.0
    %2461 = vmatprep.subr.mxu0 0.0
    %2462 = vmatpush1.msra.mxu0 0.0
    %2463 = vmatprep.subr.mxu0 0.0
    %2464 = vmatpush1.msra.mxu0 0.0
    %2465 = vmatprep.subr.mxu0 0.0
    %2466 = vmatpush1.msra.mxu0 0.0
    %2467 = vmatprep.subr.mxu0 0.0
    %2468 = vmatpush1.msra.mxu0 0.0
    %2469 = vmatprep.subr.mxu0 0.0
    %2470 = vmatpush1.msra.mxu0 0.0
    %2471 = vmatprep.subr.mxu0 0.0
    %2472 = vmatpush1.msra.mxu0 0.0
    %2473 = vmatprep.mubr.f32.mxu0 0.0
    %2474 = vmatmul.mubr.f32.gmra.mrb[0].mxu0 %v2407
    %v2475 = vpop.f32.mrb[0].mxu0
    %v2476 = vadd.f32 0.0, %v2475
    %v2477 = vpop.f32.mrb[0].mxu0
    %2478 = vdwg.mxu0
    %v2479 = vadd.f32 %v2386, %v2476
    %v2480 = vxor.u32 %v2479, 2147483648
    %v2481 = vmul.f32 %v2480, 1.442695
    %v2482 = vpow.pop %v2481
    %v2483 = vadd.f32 %v2482, 1.0
    %v2484 = vrcp.pop %v2483
    %v2485 = vmul.f32 1.0, %v2484
    %v2486 = vtanh.pop %v2479
    %2488 = vrot.lane.b32.xlu0 %v2401, 16
    %v2489 = vpop.permute.xlu0 %2488
    %v2491 = vmul.f32 %v2485, %v2489
    %2493 = vrot.lane.b32.xlu0 %v2486, 96
    %v2494 = vpop.permute.xlu0 %2493
    %v2496 = vmul.f32 %v2485, %v2494
    %2498 = vrot.lane.b32.xlu0 %v2496, 16
    %v2499 = vpop.permute.xlu0 %2498
    %v2501 = vadd.f32 %v2491, %v2499
    %v2502 = vtanh.pop %v2501
    %2504 = vrot.lane.b32.xlu0 %v2502, 32
    %v2505 = vpop.permute.xlu0 %2504
    %v2507 = vmul.f32 %v2485, %v2505
    %2509 = vrot.lane.b32.xlu0 %v2507, 80
    %v2510 = vpop.permute.xlu0 %2509
    %v2511 = vsel %vm347, %v2510, 0
    %2513 = vmatprep.subr.mxu0 0.0
    %2514 = vmatpush1.msra.mxu0 %v2394
    %2515 = vmatprep.subr.mxu0 0.0
    %2516 = vmatpush1.msra.mxu0 %v2395
    %2517 = vmatprep.subr.mxu0 0.0
    %2518 = vmatpush1.msra.mxu0 0.0
    %2519 = vmatprep.subr.mxu0 0.0
    %2520 = vmatpush1.msra.mxu0 0.0
    %2521 = vmatprep.subr.mxu0 0.0
    %2522 = vmatpush1.msra.mxu0 0.0
    %2523 = vmatprep.subr.mxu0 0.0
    %2524 = vmatpush1.msra.mxu0 0.0
    %2525 = vmatprep.subr.mxu0 0.0
    %2526 = vmatpush1.msra.mxu0 0.0
    %2527 = vmatprep.subr.mxu0 0.0
    %2528 = vmatpush1.msra.mxu0 0.0
    %2529 = vmatprep.subr.mxu0 0.0
    %2530 = vmatpush1.msra.mxu0 0.0
    %2531 = vmatprep.subr.mxu0 0.0
    %2532 = vmatpush1.msra.mxu0 0.0
    %2533 = vmatprep.subr.mxu0 0.0
    %2534 = vmatpush1.msra.mxu0 0.0
    %2535 = vmatprep.subr.mxu0 0.0
    %2536 = vmatpush1.msra.mxu0 0.0
    %2537 = vmatprep.subr.mxu0 0.0
    %2538 = vmatpush1.msra.mxu0 0.0
    %2539 = vmatprep.subr.mxu0 0.0
    %2540 = vmatpush1.msra.mxu0 0.0
    %2541 = vmatprep.subr.mxu0 0.0
    %2542 = vmatpush1.msra.mxu0 0.0
    %2543 = vmatprep.subr.mxu0 0.0
    %2544 = vmatpush1.msra.mxu0 0.0
    %2545 = vmatprep.subr.mxu0 0.0
    %2546 = vmatpush1.msra.mxu0 0.0
    %2547 = vmatprep.subr.mxu0 0.0
    %2548 = vmatpush1.msra.mxu0 0.0
    %2549 = vmatprep.subr.mxu0 0.0
    %2550 = vmatpush1.msra.mxu0 0.0
    %2551 = vmatprep.subr.mxu0 0.0
    %2552 = vmatpush1.msra.mxu0 0.0
    %2553 = vmatprep.subr.mxu0 0.0
    %2554 = vmatpush1.msra.mxu0 0.0
    %2555 = vmatprep.subr.mxu0 0.0
    %2556 = vmatpush1.msra.mxu0 0.0
    %2557 = vmatprep.subr.mxu0 0.0
    %2558 = vmatpush1.msra.mxu0 0.0
    %2559 = vmatprep.subr.mxu0 0.0
    %2560 = vmatpush1.msra.mxu0 0.0
    %2561 = vmatprep.subr.mxu0 0.0
    %2562 = vmatpush1.msra.mxu0 0.0
    %2563 = vmatprep.subr.mxu0 0.0
    %2564 = vmatpush1.msra.mxu0 0.0
    %2565 = vmatprep.subr.mxu0 0.0
    %2566 = vmatpush1.msra.mxu0 0.0
    %2567 = vmatprep.subr.mxu0 0.0
    %2568 = vmatpush1.msra.mxu0 0.0
    %2569 = vmatprep.subr.mxu0 0.0
    %2570 = vmatpush1.msra.mxu0 0.0
    %2571 = vmatprep.subr.mxu0 0.0
    %2572 = vmatpush1.msra.mxu0 0.0
    %2573 = vmatprep.subr.mxu0 0.0
    %2574 = vmatpush1.msra.mxu0 0.0
    %2575 = vmatprep.subr.mxu0 0.0
    %2576 = vmatpush1.msra.mxu0 0.0
    %2577 = vmatprep.mubr.f32.mxu0 0.0
    %2578 = vmatmul.mubr.f32.gmra.mrb[0].mxu0 %v2511
    %v2579 = vpop.f32.mrb[0].mxu0
    %v2580 = vadd.f32 0.0, %v2579
    %v2581 = vpop.f32.mrb[0].mxu0
    %2582 = vdwg.mxu0
    %v2584 = vrot.slane %v2580, 6
    %v2586 = vadd.f32 %v2386, %v2584
    %v2587 = vxor.u32 %v2586, 2147483648
    %v2588 = vmul.f32 %v2587, 1.442695
    %v2589 = vpow.pop %v2588
    %v2590 = vadd.f32 %v2589, 1.0
    %v2591 = vrcp.pop %v2590
    %v2592 = vmul.f32 1.0, %v2591
    %v2593 = vtanh.pop %v2586
    %v2595 = vrot.slane %v2501, 6
    %v2597 = vmul.f32 %v2592, %v2595
    %2599 = vrot.lane.b32.xlu0 %v2593, 96
    %v2600 = vpop.permute.xlu0 %2599
    %v2602 = vmul.f32 %v2592, %v2600
    %2604 = vrot.lane.b32.xlu0 %v2602, 16
    %v2605 = vpop.permute.xlu0 %2604
    %v2607 = vadd.f32 %v2597, %v2605
    %v2608 = vtanh.pop %v2607
    %2610 = vrot.lane.b32.xlu0 %v2608, 32
    %v2611 = vpop.permute.xlu0 %2610
    %v2613 = vmul.f32 %v2592, %v2611
    %v2615 = vrot.slane %v2613, 2
    %2616 = vrot.lane.b32.xlu0 %v2615, 80
    %v2617 = vpop.permute.xlu0 %2616
    %v2618 = vsel %vm347, %v2617, 0
    %2620 = vmatprep.subr.mxu0 0.0
    %2621 = vmatpush1.msra.mxu0 %v2394
    %2622 = vmatprep.subr.mxu0 0.0
    %2623 = vmatpush1.msra.mxu0 %v2395
    %2624 = vmatprep.subr.mxu0 0.0
    %2625 = vmatpush1.msra.mxu0 0.0
    %2626 = vmatprep.subr.mxu0 0.0
    %2627 = vmatpush1.msra.mxu0 0.0
    %2628 = vmatprep.subr.mxu0 0.0
    %2629 = vmatpush1.msra.mxu0 0.0
    %2630 = vmatprep.subr.mxu0 0.0
    %2631 = vmatpush1.msra.mxu0 0.0
    %2632 = vmatprep.subr.mxu0 0.0
    %2633 = vmatpush1.msra.mxu0 0.0
    %2634 = vmatprep.subr.mxu0 0.0
    %2635 = vmatpush1.msra.mxu0 0.0
    %2636 = vmatprep.subr.mxu0 0.0
    %2637 = vmatpush1.msra.mxu0 0.0
    %2638 = vmatprep.subr.mxu0 0.0
    %2639 = vmatpush1.msra.mxu0 0.0
    %2640 = vmatprep.subr.mxu0 0.0
    %2641 = vmatpush1.msra.mxu0 0.0
    %2642 = vmatprep.subr.mxu0 0.0
    %2643 = vmatpush1.msra.mxu0 0.0
    %2644 = vmatprep.subr.mxu0 0.0
    %2645 = vmatpush1.msra.mxu0 0.0
    %2646 = vmatprep.subr.mxu0 0.0
    %2647 = vmatpush1.msra.mxu0 0.0
    %2648 = vmatprep.subr.mxu0 0.0
    %2649 = vmatpush1.msra.mxu0 0.0
    %2650 = vmatprep.subr.mxu0 0.0
    %2651 = vmatpush1.msra.mxu0 0.0
    %2652 = vmatprep.subr.mxu0 0.0
    %2653 = vmatpush1.msra.mxu0 0.0
    %2654 = vmatprep.subr.mxu0 0.0
    %2655 = vmatpush1.msra.mxu0 0.0
    %2656 = vmatprep.subr.mxu0 0.0
    %2657 = vmatpush1.msra.mxu0 0.0
    %2658 = vmatprep.subr.mxu0 0.0
    %2659 = vmatpush1.msra.mxu0 0.0
    %2660 = vmatprep.subr.mxu0 0.0
    %2661 = vmatpush1.msra.mxu0 0.0
    %2662 = vmatprep.subr.mxu0 0.0
    %2663 = vmatpush1.msra.mxu0 0.0
    %2664 = vmatprep.subr.mxu0 0.0
    %2665 = vmatpush1.msra.mxu0 0.0
    %2666 = vmatprep.subr.mxu0 0.0
    %2667 = vmatpush1.msra.mxu0 0.0
    %2668 = vmatprep.subr.mxu0 0.0
    %2669 = vmatpush1.msra.mxu0 0.0
    %2670 = vmatprep.subr.mxu0 0.0
    %2671 = vmatpush1.msra.mxu0 0.0
    %2672 = vmatprep.subr.mxu0 0.0
    %2673 = vmatpush1.msra.mxu0 0.0
    %2674 = vmatprep.subr.mxu0 0.0
    %2675 = vmatpush1.msra.mxu0 0.0
    %2676 = vmatprep.subr.mxu0 0.0
    %2677 = vmatpush1.msra.mxu0 0.0
    %2678 = vmatprep.subr.mxu0 0.0
    %2679 = vmatpush1.msra.mxu0 0.0
    %2680 = vmatprep.subr.mxu0 0.0
    %2681 = vmatpush1.msra.mxu0 0.0
    %2682 = vmatprep.subr.mxu0 0.0
    %2683 = vmatpush1.msra.mxu0 0.0
    %2684 = vmatprep.mubr.f32.mxu0 0.0
    %2685 = vmatmul.mubr.f32.gmra.mrb[0].mxu0 %v2618
    %v2686 = vpop.f32.mrb[0].mxu0
    %v2687 = vadd.f32 0.0, %v2686
    %v2688 = vpop.f32.mrb[0].mxu0
    %2689 = vdwg.mxu0
    %v2691 = vrot.slane %v2687, 4
    %v2693 = vadd.f32 %v2386, %v2691
    %v2694 = vxor.u32 %v2693, 2147483648
    %v2695 = vmul.f32 %v2694, 1.442695
    %v2696 = vpow.pop %v2695
    %v2697 = vadd.f32 %v2696, 1.0
    %v2698 = vrcp.pop %v2697
    %v2699 = vmul.f32 1.0, %v2698
    %v2700 = vtanh.pop %v2693
    %v2702 = vrot.slane %v2607, 6
    %v2704 = vmul.f32 %v2699, %v2702
    %2706 = vrot.lane.b32.xlu0 %v2700, 96
    %v2707 = vpop.permute.xlu0 %2706
    %v2709 = vmul.f32 %v2699, %v2707
    %2711 = vrot.lane.b32.xlu0 %v2709, 16
    %v2712 = vpop.permute.xlu0 %2711
    %v2714 = vadd.f32 %v2704, %v2712
    %v2715 = vtanh.pop %v2714
    %2717 = vrot.lane.b32.xlu0 %v2715, 32
    %v2718 = vpop.permute.xlu0 %2717
    %v2720 = vmul.f32 %v2699, %v2718
    %v2722 = vrot.slane %v2720, 4
    %2723 = vrot.lane.b32.xlu0 %v2722, 80
    %v2724 = vpop.permute.xlu0 %2723
    %v2725 = vsel %vm347, %v2724, 0
    %2727 = vmatprep.subr.mxu0 0.0
    %2728 = vmatpush1.msra.mxu0 %v2394
    %2729 = vmatprep.subr.mxu0 0.0
    %2730 = vmatpush1.msra.mxu0 %v2395
    %2731 = vmatprep.subr.mxu0 0.0
    %2732 = vmatpush1.msra.mxu0 0.0
    %2733 = vmatprep.subr.mxu0 0.0
    %2734 = vmatpush1.msra.mxu0 0.0
    %2735 = vmatprep.subr.mxu0 0.0
    %2736 = vmatpush1.msra.mxu0 0.0
    %2737 = vmatprep.subr.mxu0 0.0
    %2738 = vmatpush1.msra.mxu0 0.0
    %2739 = vmatprep.subr.mxu0 0.0
    %2740 = vmatpush1.msra.mxu0 0.0
    %2741 = vmatprep.subr.mxu0 0.0
    %2742 = vmatpush1.msra.mxu0 0.0
    %2743 = vmatprep.subr.mxu0 0.0
    %2744 = vmatpush1.msra.mxu0 0.0
    %2745 = vmatprep.subr.mxu0 0.0
    %2746 = vmatpush1.msra.mxu0 0.0
    %2747 = vmatprep.subr.mxu0 0.0
    %2748 = vmatpush1.msra.mxu0 0.0
    %2749 = vmatprep.subr.mxu0 0.0
    %2750 = vmatpush1.msra.mxu0 0.0
    %2751 = vmatprep.subr.mxu0 0.0
    %2752 = vmatpush1.msra.mxu0 0.0
    %2753 = vmatprep.subr.mxu0 0.0
    %2754 = vmatpush1.msra.mxu0 0.0
    %2755 = vmatprep.subr.mxu0 0.0
    %2756 = vmatpush1.msra.mxu0 0.0
    %2757 = vmatprep.subr.mxu0 0.0
    %2758 = vmatpush1.msra.mxu0 0.0
    %2759 = vmatprep.subr.mxu0 0.0
    %2760 = vmatpush1.msra.mxu0 0.0
    %2761 = vmatprep.subr.mxu0 0.0
    %2762 = vmatpush1.msra.mxu0 0.0
    %2763 = vmatprep.subr.mxu0 0.0
    %2764 = vmatpush1.msra.mxu0 0.0
    %2765 = vmatprep.subr.mxu0 0.0
    %2766 = vmatpush1.msra.mxu0 0.0
    %2767 = vmatprep.subr.mxu0 0.0
    %2768 = vmatpush1.msra.mxu0 0.0
    %2769 = vmatprep.subr.mxu0 0.0
    %2770 = vmatpush1.msra.mxu0 0.0
    %2771 = vmatprep.subr.mxu0 0.0
    %2772 = vmatpush1.msra.mxu0 0.0
    %2773 = vmatprep.subr.mxu0 0.0
    %2774 = vmatpush1.msra.mxu0 0.0
    %2775 = vmatprep.subr.mxu0 0.0
    %2776 = vmatpush1.msra.mxu0 0.0
    %2777 = vmatprep.subr.mxu0 0.0
    %2778 = vmatpush1.msra.mxu0 0.0
    %2779 = vmatprep.subr.mxu0 0.0
    %2780 = vmatpush1.msra.mxu0 0.0
    %2781 = vmatprep.subr.mxu0 0.0
    %2782 = vmatpush1.msra.mxu0 0.0
    %2783 = vmatprep.subr.mxu0 0.0
    %2784 = vmatpush1.msra.mxu0 0.0
    %2785 = vmatprep.subr.mxu0 0.0
    %2786 = vmatpush1.msra.mxu0 0.0
    %2787 = vmatprep.subr.mxu0 0.0
    %2788 = vmatpush1.msra.mxu0 0.0
    %2789 = vmatprep.subr.mxu0 0.0
    %2790 = vmatpush1.msra.mxu0 0.0
    %2791 = vmatprep.mubr.f32.mxu0 0.0
    %2792 = vmatmul.mubr.f32.gmra.mrb[0].mxu0 %v2725
    %v2793 = vpop.f32.mrb[0].mxu0
    %v2794 = vadd.f32 0.0, %v2793
    %v2795 = vpop.f32.mrb[0].mxu0
    %2796 = vdwg.mxu0
    %v2798 = vrot.slane %v2794, 2
    %v2800 = vadd.f32 %v2386, %v2798
    %v2801 = vxor.u32 %v2800, 2147483648
    %v2802 = vmul.f32 %v2801, 1.442695
    %v2803 = vpow.pop %v2802
    %v2804 = vadd.f32 %v2803, 1.0
    %v2805 = vrcp.pop %v2804
    %v2806 = vmul.f32 1.0, %v2805
    %v2807 = vtanh.pop %v2800
    %v2809 = vrot.slane %v2714, 6
    %v2811 = vmul.f32 %v2806, %v2809
    %2813 = vrot.lane.b32.xlu0 %v2807, 96
    %v2814 = vpop.permute.xlu0 %2813
    %v2816 = vmul.f32 %v2806, %v2814
    %2818 = vrot.lane.b32.xlu0 %v2816, 16
    %v2819 = vpop.permute.xlu0 %2818
    %v2821 = vadd.f32 %v2811, %v2819
    %v2822 = vtanh.pop %v2821
    %2824 = vrot.lane.b32.xlu0 %v2822, 32
    %v2825 = vpop.permute.xlu0 %2824
    %v2827 = vmul.f32 %v2806, %v2825
    %v2829 = vrot.slane %v2827, 6
    %2830 = vrot.lane.b32.xlu0 %v2829, 80
    %v2831 = vpop.permute.xlu0 %2830
    %v2832 = vsel %vm347, %v2831, 0
    %2834 = vmatprep.subr.mxu0 0.0
    %2835 = vmatpush1.msra.mxu0 %v2394
    %2836 = vmatprep.subr.mxu0 0.0
    %2837 = vmatpush1.msra.mxu0 %v2395
    %2838 = vmatprep.subr.mxu0 0.0
    %2839 = vmatpush1.msra.mxu0 0.0
    %2840 = vmatprep.subr.mxu0 0.0
    %2841 = vmatpush1.msra.mxu0 0.0
    %2842 = vmatprep.subr.mxu0 0.0
    %2843 = vmatpush1.msra.mxu0 0.0
    %2844 = vmatprep.subr.mxu0 0.0
    %2845 = vmatpush1.msra.mxu0 0.0
    %2846 = vmatprep.subr.mxu0 0.0
    %2847 = vmatpush1.msra.mxu0 0.0
    %2848 = vmatprep.subr.mxu0 0.0
    %2849 = vmatpush1.msra.mxu0 0.0
    %2850 = vmatprep.subr.mxu0 0.0
    %2851 = vmatpush1.msra.mxu0 0.0
    %2852 = vmatprep.subr.mxu0 0.0
    %2853 = vmatpush1.msra.mxu0 0.0
    %2854 = vmatprep.subr.mxu0 0.0
    %2855 = vmatpush1.msra.mxu0 0.0
    %2856 = vmatprep.subr.mxu0 0.0
    %2857 = vmatpush1.msra.mxu0 0.0
    %2858 = vmatprep.subr.mxu0 0.0
    %2859 = vmatpush1.msra.mxu0 0.0
    %2860 = vmatprep.subr.mxu0 0.0
    %2861 = vmatpush1.msra.mxu0 0.0
    %2862 = vmatprep.subr.mxu0 0.0
    %2863 = vmatpush1.msra.mxu0 0.0
    %2864 = vmatprep.subr.mxu0 0.0
    %2865 = vmatpush1.msra.mxu0 0.0
    %2866 = vmatprep.subr.mxu0 0.0
    %2867 = vmatpush1.msra.mxu0 0.0
    %2868 = vmatprep.subr.mxu0 0.0
    %2869 = vmatpush1.msra.mxu0 0.0
    %2870 = vmatprep.subr.mxu0 0.0
    %2871 = vmatpush1.msra.mxu0 0.0
    %2872 = vmatprep.subr.mxu0 0.0
    %2873 = vmatpush1.msra.mxu0 0.0
    %2874 = vmatprep.subr.mxu0 0.0
    %2875 = vmatpush1.msra.mxu0 0.0
    %2876 = vmatprep.subr.mxu0 0.0
    %2877 = vmatpush1.msra.mxu0 0.0
    %2878 = vmatprep.subr.mxu0 0.0
    %2879 = vmatpush1.msra.mxu0 0.0
    %2880 = vmatprep.subr.mxu0 0.0
    %2881 = vmatpush1.msra.mxu0 0.0
    %2882 = vmatprep.subr.mxu0 0.0
    %2883 = vmatpush1.msra.mxu0 0.0
    %2884 = vmatprep.subr.mxu0 0.0
    %2885 = vmatpush1.msra.mxu0 0.0
    %2886 = vmatprep.subr.mxu0 0.0
    %2887 = vmatpush1.msra.mxu0 0.0
    %2888 = vmatprep.subr.mxu0 0.0
    %2889 = vmatpush1.msra.mxu0 0.0
    %2890 = vmatprep.subr.mxu0 0.0
    %2891 = vmatpush1.msra.mxu0 0.0
    %2892 = vmatprep.subr.mxu0 0.0
    %2893 = vmatpush1.msra.mxu0 0.0
    %2894 = vmatprep.subr.mxu0 0.0
    %2895 = vmatpush1.msra.mxu0 0.0
    %2896 = vmatprep.subr.mxu0 0.0
    %2897 = vmatpush1.msra.mxu0 0.0
    %2898 = vmatprep.mubr.f32.mxu0 0.0
    %2899 = vmatmul.mubr.f32.gmra.mrb[0].mxu0 %v2832
    %v2900 = vpop.f32.mrb[0].mxu0
    %v2901 = vadd.f32 0.0, %v2900
    %v2902 = vpop.f32.mrb[0].mxu0
    %2903 = vdwg.mxu0
    %v2904 = vadd.f32 %v2391, %v2901
    %v2905 = vxor.u32 %v2904, 2147483648
    %v2906 = vmul.f32 %v2905, 1.442695
    %v2907 = vpow.pop %v2906
    %v2908 = vadd.f32 %v2907, 1.0
    %v2909 = vrcp.pop %v2908
    %v2910 = vmul.f32 1.0, %v2909
    %v2911 = vtanh.pop %v2904
    %v2913 = vrot.slane %v2821, 6
    %v2915 = vmul.f32 %v2910, %v2913
    %2917 = vrot.lane.b32.xlu0 %v2911, 96
    %v2918 = vpop.permute.xlu0 %2917
    %v2920 = vmul.f32 %v2910, %v2918
    %2922 = vrot.lane.b32.xlu0 %v2920, 16
    %v2923 = vpop.permute.xlu0 %2922
    %v2925 = vadd.f32 %v2915, %v2923
    %v2926 = vtanh.pop %v2925
    %2928 = vrot.lane.b32.xlu0 %v2926, 32
    %v2929 = vpop.permute.xlu0 %2928
    %v2931 = vmul.f32 %v2910, %v2929
    %2933 = vrot.lane.b32.xlu0 %v2931, 80
    %v2934 = vpop.permute.xlu0 %2933
    %v2935 = vsel %vm347, %v2934, 0
    %2937 = vmatprep.subr.mxu0 0.0
    %2938 = vmatpush1.msra.mxu0 %v2394
    %2939 = vmatprep.subr.mxu0 0.0
    %2940 = vmatpush1.msra.mxu0 %v2395
    %2941 = vmatprep.subr.mxu0 0.0
    %2942 = vmatpush1.msra.mxu0 0.0
    %2943 = vmatprep.subr.mxu0 0.0
    %2944 = vmatpush1.msra.mxu0 0.0
    %2945 = vmatprep.subr.mxu0 0.0
    %2946 = vmatpush1.msra.mxu0 0.0
    %2947 = vmatprep.subr.mxu0 0.0
    %2948 = vmatpush1.msra.mxu0 0.0
    %2949 = vmatprep.subr.mxu0 0.0
    %2950 = vmatpush1.msra.mxu0 0.0
    %2951 = vmatprep.subr.mxu0 0.0
    %2952 = vmatpush1.msra.mxu0 0.0
    %2953 = vmatprep.subr.mxu0 0.0
    %2954 = vmatpush1.msra.mxu0 0.0
    %2955 = vmatprep.subr.mxu0 0.0
    %2956 = vmatpush1.msra.mxu0 0.0
    %2957 = vmatprep.subr.mxu0 0.0
    %2958 = vmatpush1.msra.mxu0 0.0
    %2959 = vmatprep.subr.mxu0 0.0
    %2960 = vmatpush1.msra.mxu0 0.0
    %2961 = vmatprep.subr.mxu0 0.0
    %2962 = vmatpush1.msra.mxu0 0.0
    %2963 = vmatprep.subr.mxu0 0.0
    %2964 = vmatpush1.msra.mxu0 0.0
    %2965 = vmatprep.subr.mxu0 0.0
    %2966 = vmatpush1.msra.mxu0 0.0
    %2967 = vmatprep.subr.mxu0 0.0
    %2968 = vmatpush1.msra.mxu0 0.0
    %2969 = vmatprep.subr.mxu0 0.0
    %2970 = vmatpush1.msra.mxu0 0.0
    %2971 = vmatprep.subr.mxu0 0.0
    %2972 = vmatpush1.msra.mxu0 0.0
    %2973 = vmatprep.subr.mxu0 0.0
    %2974 = vmatpush1.msra.mxu0 0.0
    %2975 = vmatprep.subr.mxu0 0.0
    %2976 = vmatpush1.msra.mxu0 0.0
    %2977 = vmatprep.subr.mxu0 0.0
    %2978 = vmatpush1.msra.mxu0 0.0
    %2979 = vmatprep.subr.mxu0 0.0
    %2980 = vmatpush1.msra.mxu0 0.0
    %2981 = vmatprep.subr.mxu0 0.0
    %2982 = vmatpush1.msra.mxu0 0.0
    %2983 = vmatprep.subr.mxu0 0.0
    %2984 = vmatpush1.msra.mxu0 0.0
    %2985 = vmatprep.subr.mxu0 0.0
    %2986 = vmatpush1.msra.mxu0 0.0
    %2987 = vmatprep.subr.mxu0 0.0
    %2988 = vmatpush1.msra.mxu0 0.0
    %2989 = vmatprep.subr.mxu0 0.0
    %2990 = vmatpush1.msra.mxu0 0.0
    %2991 = vmatprep.subr.mxu0 0.0
    %2992 = vmatpush1.msra.mxu0 0.0
    %2993 = vmatprep.subr.mxu0 0.0
    %2994 = vmatpush1.msra.mxu0 0.0
    %2995 = vmatprep.subr.mxu0 0.0
    %2996 = vmatpush1.msra.mxu0 0.0
    %2997 = vmatprep.subr.mxu0 0.0
    %2998 = vmatpush1.msra.mxu0 0.0
    %2999 = vmatprep.subr.mxu0 0.0
    %3000 = vmatpush1.msra.mxu0 0.0
    %3001 = vmatprep.mubr.f32.mxu0 0.0
    %3002 = vmatmul.mubr.f32.gmra.mrb[0].mxu0 %v2935
    %v3003 = vpop.f32.mrb[0].mxu0
    %v3004 = vadd.f32 0.0, %v3003
    %v3005 = vpop.f32.mrb[0].mxu0
    %3006 = vdwg.mxu0
    %v3008 = vrot.slane %v3004, 6
    %v3010 = vadd.f32 %v2391, %v3008
    %v3011 = vxor.u32 %v3010, 2147483648
    %v3012 = vmul.f32 %v3011, 1.442695
    %v3013 = vpow.pop %v3012
    %v3014 = vadd.f32 %v3013, 1.0
    %v3015 = vrcp.pop %v3014
    %v3016 = vmul.f32 1.0, %v3015
    %v3017 = vtanh.pop %v3010
    %v3019 = vrot.slane %v2925, 6
    %v3021 = vmul.f32 %v3016, %v3019
    %3023 = vrot.lane.b32.xlu0 %v3017, 96
    %v3024 = vpop.permute.xlu0 %3023
    %v3026 = vmul.f32 %v3016, %v3024
    %3028 = vrot.lane.b32.xlu0 %v3026, 16
    %v3029 = vpop.permute.xlu0 %3028
    %v3031 = vadd.f32 %v3021, %v3029
    %v3032 = vtanh.pop %v3031
    %3034 = vrot.lane.b32.xlu0 %v3032, 32
    %v3035 = vpop.permute.xlu0 %3034
    %v3037 = vmul.f32 %v3016, %v3035
    %v3039 = vrot.slane %v3037, 2
    %3040 = vrot.lane.b32.xlu0 %v3039, 80
    %v3041 = vpop.permute.xlu0 %3040
    %v3042 = vsel %vm347, %v3041, 0
    %3044 = vmatprep.subr.mxu0 0.0
    %3045 = vmatpush1.msra.mxu0 %v2394
    %3046 = vmatprep.subr.mxu0 0.0
    %3047 = vmatpush1.msra.mxu0 %v2395
    %3048 = vmatprep.subr.mxu0 0.0
    %3049 = vmatpush1.msra.mxu0 0.0
    %3050 = vmatprep.subr.mxu0 0.0
    %3051 = vmatpush1.msra.mxu0 0.0
    %3052 = vmatprep.subr.mxu0 0.0
    %3053 = vmatpush1.msra.mxu0 0.0
    %3054 = vmatprep.subr.mxu0 0.0
    %3055 = vmatpush1.msra.mxu0 0.0
    %3056 = vmatprep.subr.mxu0 0.0
    %3057 = vmatpush1.msra.mxu0 0.0
    %3058 = vmatprep.subr.mxu0 0.0
    %3059 = vmatpush1.msra.mxu0 0.0
    %3060 = vmatprep.subr.mxu0 0.0
    %3061 = vmatpush1.msra.mxu0 0.0
    %3062 = vmatprep.subr.mxu0 0.0
    %3063 = vmatpush1.msra.mxu0 0.0
    %3064 = vmatprep.subr.mxu0 0.0
    %3065 = vmatpush1.msra.mxu0 0.0
    %3066 = vmatprep.subr.mxu0 0.0
    %3067 = vmatpush1.msra.mxu0 0.0
    %3068 = vmatprep.subr.mxu0 0.0
    %3069 = vmatpush1.msra.mxu0 0.0
    %3070 = vmatprep.subr.mxu0 0.0
    %3071 = vmatpush1.msra.mxu0 0.0
    %3072 = vmatprep.subr.mxu0 0.0
    %3073 = vmatpush1.msra.mxu0 0.0
    %3074 = vmatprep.subr.mxu0 0.0
    %3075 = vmatpush1.msra.mxu0 0.0
    %3076 = vmatprep.subr.mxu0 0.0
    %3077 = vmatpush1.msra.mxu0 0.0
    %3078 = vmatprep.subr.mxu0 0.0
    %3079 = vmatpush1.msra.mxu0 0.0
    %3080 = vmatprep.subr.mxu0 0.0
    %3081 = vmatpush1.msra.mxu0 0.0
    %3082 = vmatprep.subr.mxu0 0.0
    %3083 = vmatpush1.msra.mxu0 0.0
    %3084 = vmatprep.subr.mxu0 0.0
    %3085 = vmatpush1.msra.mxu0 0.0
    %3086 = vmatprep.subr.mxu0 0.0
    %3087 = vmatpush1.msra.mxu0 0.0
    %3088 = vmatprep.subr.mxu0 0.0
    %3089 = vmatpush1.msra.mxu0 0.0
    %3090 = vmatprep.subr.mxu0 0.0
    %3091 = vmatpush1.msra.mxu0 0.0
    %3092 = vmatprep.subr.mxu0 0.0
    %3093 = vmatpush1.msra.mxu0 0.0
    %3094 = vmatprep.subr.mxu0 0.0
    %3095 = vmatpush1.msra.mxu0 0.0
    %3096 = vmatprep.subr.mxu0 0.0
    %3097 = vmatpush1.msra.mxu0 0.0
    %3098 = vmatprep.subr.mxu0 0.0
    %3099 = vmatpush1.msra.mxu0 0.0
    %3100 = vmatprep.subr.mxu0 0.0
    %3101 = vmatpush1.msra.mxu0 0.0
    %3102 = vmatprep.subr.mxu0 0.0
    %3103 = vmatpush1.msra.mxu0 0.0
    %3104 = vmatprep.subr.mxu0 0.0
    %3105 = vmatpush1.msra.mxu0 0.0
    %3106 = vmatprep.subr.mxu0 0.0
    %3107 = vmatpush1.msra.mxu0 0.0
    %3108 = vmatprep.mubr.f32.mxu0 0.0
    %3109 = vmatmul.mubr.f32.gmra.mrb[0].mxu0 %v3042
    %v3110 = vpop.f32.mrb[0].mxu0
    %v3111 = vadd.f32 0.0, %v3110
    %v3112 = vpop.f32.mrb[0].mxu0
    %3113 = vdwg.mxu0
    %v3115 = vrot.slane %v3111, 4
    %v3117 = vadd.f32 %v2391, %v3115
    %v3118 = vxor.u32 %v3117, 2147483648
    %v3119 = vmul.f32 %v3118, 1.442695
    %v3120 = vpow.pop %v3119
    %v3121 = vadd.f32 %v3120, 1.0
    %v3122 = vrcp.pop %v3121
    %v3123 = vmul.f32 1.0, %v3122
    %v3124 = vtanh.pop %v3117
    %v3126 = vrot.slane %v3031, 6
    %v3128 = vmul.f32 %v3123, %v3126
    %3130 = vrot.lane.b32.xlu0 %v3124, 96
    %v3131 = vpop.permute.xlu0 %3130
    %v3133 = vmul.f32 %v3123, %v3131
    %3135 = vrot.lane.b32.xlu0 %v3133, 16
    %v3136 = vpop.permute.xlu0 %3135
    %v3138 = vadd.f32 %v3128, %v3136
    %v3139 = vtanh.pop %v3138
    %3141 = vrot.lane.b32.xlu0 %v3139, 32
    %v3142 = vpop.permute.xlu0 %3141
    %v3144 = vmul.f32 %v3123, %v3142
    %v3146 = vrot.slane %v3144, 4
    %3147 = vrot.lane.b32.xlu0 %v3146, 80
    %v3148 = vpop.permute.xlu0 %3147
    %v3149 = vsel %vm347, %v3148, 0
    %3151 = vmatprep.subr.mxu0 0.0
    %3152 = vmatpush1.msra.mxu0 %v2394
    %3153 = vmatprep.subr.mxu0 0.0
    %3154 = vmatpush1.msra.mxu0 %v2395
    %3155 = vmatprep.subr.mxu0 0.0
    %3156 = vmatpush1.msra.mxu0 0.0
    %3157 = vmatprep.subr.mxu0 0.0
    %3158 = vmatpush1.msra.mxu0 0.0
    %3159 = vmatprep.subr.mxu0 0.0
    %3160 = vmatpush1.msra.mxu0 0.0
    %3161 = vmatprep.subr.mxu0 0.0
    %3162 = vmatpush1.msra.mxu0 0.0
    %3163 = vmatprep.subr.mxu0 0.0
    %3164 = vmatpush1.msra.mxu0 0.0
    %3165 = vmatprep.subr.mxu0 0.0
    %3166 = vmatpush1.msra.mxu0 0.0
    %3167 = vmatprep.subr.mxu0 0.0
    %3168 = vmatpush1.msra.mxu0 0.0
    %3169 = vmatprep.subr.mxu0 0.0
    %3170 = vmatpush1.msra.mxu0 0.0
    %3171 = vmatprep.subr.mxu0 0.0
    %3172 = vmatpush1.msra.mxu0 0.0
    %3173 = vmatprep.subr.mxu0 0.0
    %3174 = vmatpush1.msra.mxu0 0.0
    %3175 = vmatprep.subr.mxu0 0.0
    %3176 = vmatpush1.msra.mxu0 0.0
    %3177 = vmatprep.subr.mxu0 0.0
    %3178 = vmatpush1.msra.mxu0 0.0
    %3179 = vmatprep.subr.mxu0 0.0
    %3180 = vmatpush1.msra.mxu0 0.0
    %3181 = vmatprep.subr.mxu0 0.0
    %3182 = vmatpush1.msra.mxu0 0.0
    %3183 = vmatprep.subr.mxu0 0.0
    %3184 = vmatpush1.msra.mxu0 0.0
    %3185 = vmatprep.subr.mxu0 0.0
    %3186 = vmatpush1.msra.mxu0 0.0
    %3187 = vmatprep.subr.mxu0 0.0
    %3188 = vmatpush1.msra.mxu0 0.0
    %3189 = vmatprep.subr.mxu0 0.0
    %3190 = vmatpush1.msra.mxu0 0.0
    %3191 = vmatprep.subr.mxu0 0.0
    %3192 = vmatpush1.msra.mxu0 0.0
    %3193 = vmatprep.subr.mxu0 0.0
    %3194 = vmatpush1.msra.mxu0 0.0
    %3195 = vmatprep.subr.mxu0 0.0
    %3196 = vmatpush1.msra.mxu0 0.0
    %3197 = vmatprep.subr.mxu0 0.0
    %3198 = vmatpush1.msra.mxu0 0.0
    %3199 = vmatprep.subr.mxu0 0.0
    %3200 = vmatpush1.msra.mxu0 0.0
    %3201 = vmatprep.subr.mxu0 0.0
    %3202 = vmatpush1.msra.mxu0 0.0
    %3203 = vmatprep.subr.mxu0 0.0
    %3204 = vmatpush1.msra.mxu0 0.0
    %3205 = vmatprep.subr.mxu0 0.0
    %3206 = vmatpush1.msra.mxu0 0.0
    %3207 = vmatprep.subr.mxu0 0.0
    %3208 = vmatpush1.msra.mxu0 0.0
    %3209 = vmatprep.subr.mxu0 0.0
    %3210 = vmatpush1.msra.mxu0 0.0
    %3211 = vmatprep.subr.mxu0 0.0
    %3212 = vmatpush1.msra.mxu0 0.0
    %3213 = vmatprep.subr.mxu0 0.0
    %3214 = vmatpush1.msra.mxu0 0.0
    %3215 = vmatprep.mubr.f32.mxu0 0.0
    %3216 = vmatmul.mubr.f32.gmra.mrb[0].mxu0 %v3149
    %v3217 = vpop.f32.mrb[0].mxu0
    %v3218 = vadd.f32 0.0, %v3217
    %v3219 = vpop.f32.mrb[0].mxu0
    %3220 = vdwg.mxu0
    %v3222 = vrot.slane %v3218, 2
    %v3224 = vadd.f32 %v2391, %v3222
    %v3225 = vxor.u32 %v3224, 2147483648
    %v3226 = vmul.f32 %v3225, 1.442695
    %v3227 = vpow.pop %v3226
    %v3228 = vadd.f32 %v3227, 1.0
    %v3229 = vrcp.pop %v3228
    %v3230 = vmul.f32 1.0, %v3229
    %v3231 = vtanh.pop %v3224
    %v3233 = vrot.slane %v3138, 6
    %v3235 = vmul.f32 %v3230, %v3233
    %3237 = vrot.lane.b32.xlu0 %v3231, 96
    %v3238 = vpop.permute.xlu0 %3237
    %v3240 = vmul.f32 %v3230, %v3238
    %3242 = vrot.lane.b32.xlu0 %v3240, 16
    %v3243 = vpop.permute.xlu0 %3242
    %v3245 = vadd.f32 %v3235, %v3243
    %v3246 = vtanh.pop %v3245
    %3248 = vrot.lane.b32.xlu0 %v3246, 32
    %v3249 = vpop.permute.xlu0 %3248
    %v3251 = vmul.f32 %v3230, %v3249
    %v3253 = vsel %vm347, %v2403, 0
    %3255 = vmatprep.subr.mxu0 0.0
    %3256 = vmatpush1.msra.mxu0 %v2396
    %3257 = vmatprep.subr.mxu0 0.0
    %3258 = vmatpush1.msra.mxu0 %v2397
    %3259 = vmatprep.subr.mxu0 0.0
    %3260 = vmatpush1.msra.mxu0 0.0
    %3261 = vmatprep.subr.mxu0 0.0
    %3262 = vmatpush1.msra.mxu0 0.0
    %3263 = vmatprep.subr.mxu0 0.0
    %3264 = vmatpush1.msra.mxu0 0.0
    %3265 = vmatprep.subr.mxu0 0.0
    %3266 = vmatpush1.msra.mxu0 0.0
    %3267 = vmatprep.subr.mxu0 0.0
    %3268 = vmatpush1.msra.mxu0 0.0
    %3269 = vmatprep.subr.mxu0 0.0
    %3270 = vmatpush1.msra.mxu0 0.0
    %3271 = vmatprep.subr.mxu0 0.0
    %3272 = vmatpush1.msra.mxu0 0.0
    %3273 = vmatprep.subr.mxu0 0.0
    %3274 = vmatpush1.msra.mxu0 0.0
    %3275 = vmatprep.subr.mxu0 0.0
    %3276 = vmatpush1.msra.mxu0 0.0
    %3277 = vmatprep.subr.mxu0 0.0
    %3278 = vmatpush1.msra.mxu0 0.0
    %3279 = vmatprep.subr.mxu0 0.0
    %3280 = vmatpush1.msra.mxu0 0.0
    %3281 = vmatprep.subr.mxu0 0.0
    %3282 = vmatpush1.msra.mxu0 0.0
    %3283 = vmatprep.subr.mxu0 0.0
    %3284 = vmatpush1.msra.mxu0 0.0
    %3285 = vmatprep.subr.mxu0 0.0
    %3286 = vmatpush1.msra.mxu0 0.0
    %3287 = vmatprep.subr.mxu0 0.0
    %3288 = vmatpush1.msra.mxu0 0.0
    %3289 = vmatprep.subr.mxu0 0.0
    %3290 = vmatpush1.msra.mxu0 0.0
    %3291 = vmatprep.subr.mxu0 0.0
    %3292 = vmatpush1.msra.mxu0 0.0
    %3293 = vmatprep.subr.mxu0 0.0
    %3294 = vmatpush1.msra.mxu0 0.0
    %3295 = vmatprep.subr.mxu0 0.0
    %3296 = vmatpush1.msra.mxu0 0.0
    %3297 = vmatprep.subr.mxu0 0.0
    %3298 = vmatpush1.msra.mxu0 0.0
    %3299 = vmatprep.subr.mxu0 0.0
    %3300 = vmatpush1.msra.mxu0 0.0
    %3301 = vmatprep.subr.mxu0 0.0
    %3302 = vmatpush1.msra.mxu0 0.0
    %3303 = vmatprep.subr.mxu0 0.0
    %3304 = vmatpush1.msra.mxu0 0.0
    %3305 = vmatprep.subr.mxu0 0.0
    %3306 = vmatpush1.msra.mxu0 0.0
    %3307 = vmatprep.subr.mxu0 0.0
    %3308 = vmatpush1.msra.mxu0 0.0
    %3309 = vmatprep.subr.mxu0 0.0
    %3310 = vmatpush1.msra.mxu0 0.0
    %3311 = vmatprep.subr.mxu0 0.0
    %3312 = vmatpush1.msra.mxu0 0.0
    %3313 = vmatprep.subr.mxu0 0.0
    %3314 = vmatpush1.msra.mxu0 0.0
    %3315 = vmatprep.subr.mxu0 0.0
    %3316 = vmatpush1.msra.mxu0 0.0
    %3317 = vmatprep.subr.mxu0 0.0
    %3318 = vmatpush1.msra.mxu0 0.0
    %3319 = vmatprep.mubr.f32.mxu0 0.0
    %3320 = vmatmul.mubr.f32.gmra.mrb[0].mxu0 %v3253
    %v3321 = vpop.f32.mrb[0].mxu0
    %v3322 = vadd.f32 0.0, %v3321
    %v3323 = vpop.f32.mrb[0].mxu0
    %3324 = vdwg.mxu0
    %v3326 = vrot.slane %v3322, 2
    %3327 = vrot.lane.b32.xlu0 %v3326, 64
    %v3328 = vpop.permute.xlu0 %3327
    %v3330 = vadd.f32 %v2391, %v3328
    %v3331 = vxor.u32 %v3330, 2147483648
    %v3332 = vmul.f32 %v3331, 1.442695
    %v3333 = vpow.pop %v3332
    %v3334 = vadd.f32 %v3333, 1.0
    %v3335 = vrcp.pop %v3334
    %v3336 = vmul.f32 1.0, %v3335
    %v3337 = vtanh.pop %v3330
    %v3339 = vrot.slane %v2405, 2
    %3340 = vrot.lane.b32.xlu0 %v3339, 80
    %v3341 = vpop.permute.xlu0 %3340
    %v3343 = vmul.f32 %v3336, %v3341
    %3345 = vrot.lane.b32.xlu0 %v3337, 96
    %v3346 = vpop.permute.xlu0 %3345
    %v3348 = vmul.f32 %v3336, %v3346
    %3350 = vrot.lane.b32.xlu0 %v3348, 16
    %v3351 = vpop.permute.xlu0 %3350
    %v3353 = vadd.f32 %v3343, %v3351
    %v3354 = vtanh.pop %v3353
    %3356 = vrot.lane.b32.xlu0 %v3354, 32
    %v3357 = vpop.permute.xlu0 %3356
    %v3359 = vmul.f32 %v3336, %v3357
    %3361 = vrot.lane.b32.xlu0 %v3251, 80
    %v3362 = vpop.permute.xlu0 %3361
    %3365 = vrot.lane.b32.xlu0 %v3359, 32
    %v3366 = vpop.permute.xlu0 %3365
    %v3368 = vsel %vm347, %v3362, %v3366
    %v3369 = vmax.f32 %v3368, 0.0
    %v3370 = vld [vmem:[%s20] sm:$0xff]
    %v3371 = vld [vmem:[%s20 + $0x8] sm:$0xff]
    %v3372 = vld [vmem:[%s20 + $0x10] sm:$0xff]
    %v3373 = vld [vmem:[%s20 + $0x18] sm:$0xff]
    %v3374 = vld [vmem:[%s21] sm:$0x1]
    %v3376 = vlaneseq
    %v3377 = vshrl.u32 %v3376, 7
    %v3378 = vsub.s32 0, %v3377
    %v3379 = vrot.slane %v3374, %v3378
    %v3382 = vrot.slane %v3369, 6
    %v3383 = vsel %vm93, %v3382, 0
    %3385 = vmatprep.subr.mxu0 0.0
    %3386 = vmatpush1.msra.mxu0 %v3370
    %3387 = vmatprep.subr.mxu0 0.0
    %3388 = vmatpush1.msra.mxu0 %v3371
    %3389 = vmatprep.subr.mxu0 0.0
    %3390 = vmatpush1.msra.mxu0 %v3372
    %3391 = vmatprep.subr.mxu0 0.0
    %3392 = vmatpush1.msra.mxu0 %v3373
    %3393 = vmatprep.subr.mxu0 0.0
    %3394 = vmatpush1.msra.mxu0 0.0
    %3395 = vmatprep.subr.mxu0 0.0
    %3396 = vmatpush1.msra.mxu0 0.0
    %3397 = vmatprep.subr.mxu0 0.0
    %3398 = vmatpush1.msra.mxu0 0.0
    %3399 = vmatprep.subr.mxu0 0.0
    %3400 = vmatpush1.msra.mxu0 0.0
    %3401 = vmatprep.subr.mxu0 0.0
    %3402 = vmatpush1.msra.mxu0 0.0
    %3403 = vmatprep.subr.mxu0 0.0
    %3404 = vmatpush1.msra.mxu0 0.0
    %3405 = vmatprep.subr.mxu0 0.0
    %3406 = vmatpush1.msra.mxu0 0.0
    %3407 = vmatprep.subr.mxu0 0.0
    %3408 = vmatpush1.msra.mxu0 0.0
    %3409 = vmatprep.subr.mxu0 0.0
    %3410 = vmatpush1.msra.mxu0 0.0
    %3411 = vmatprep.subr.mxu0 0.0
    %3412 = vmatpush1.msra.mxu0 0.0
    %3413 = vmatprep.subr.mxu0 0.0
    %3414 = vmatpush1.msra.mxu0 0.0
    %3415 = vmatprep.subr.mxu0 0.0
    %3416 = vmatpush1.msra.mxu0 0.0
    %3417 = vmatprep.subr.mxu0 0.0
    %3418 = vmatpush1.msra.mxu0 0.0
    %3419 = vmatprep.subr.mxu0 0.0
    %3420 = vmatpush1.msra.mxu0 0.0
    %3421 = vmatprep.subr.mxu0 0.0
    %3422 = vmatpush1.msra.mxu0 0.0
    %3423 = vmatprep.subr.mxu0 0.0
    %3424 = vmatpush1.msra.mxu0 0.0
    %3425 = vmatprep.subr.mxu0 0.0
    %3426 = vmatpush1.msra.mxu0 0.0
    %3427 = vmatprep.subr.mxu0 0.0
    %3428 = vmatpush1.msra.mxu0 0.0
    %3429 = vmatprep.subr.mxu0 0.0
    %3430 = vmatpush1.msra.mxu0 0.0
    %3431 = vmatprep.subr.mxu0 0.0
    %3432 = vmatpush1.msra.mxu0 0.0
    %3433 = vmatprep.subr.mxu0 0.0
    %3434 = vmatpush1.msra.mxu0 0.0
    %3435 = vmatprep.subr.mxu0 0.0
    %3436 = vmatpush1.msra.mxu0 0.0
    %3437 = vmatprep.subr.mxu0 0.0
    %3438 = vmatpush1.msra.mxu0 0.0
    %3439 = vmatprep.subr.mxu0 0.0
    %3440 = vmatpush1.msra.mxu0 0.0
    %3441 = vmatprep.subr.mxu0 0.0
    %3442 = vmatpush1.msra.mxu0 0.0
    %3443 = vmatprep.subr.mxu0 0.0
    %3444 = vmatpush1.msra.mxu0 0.0
    %3445 = vmatprep.subr.mxu0 0.0
    %3446 = vmatpush1.msra.mxu0 0.0
    %3447 = vmatprep.subr.mxu0 0.0
    %3448 = vmatpush1.msra.mxu0 0.0
    %3449 = vmatprep.mubr.f32.mxu0 0.0
    %3450 = vmatmul.mubr.f32.gmra.mrb[0].mxu0 %v3383
    %v3451 = vpop.f32.mrb[0].mxu0
    %v3452 = vadd.f32 %v3379, %v3451
    %v3453 = vpop.f32.mrb[0].mxu0
    %3454 = vdwg.mxu0
    %v3455 = vmax.f32 %v3452, 0.0
    %v3456 = vld [vmem:[%s22] sm:$0xff]
    %v3457 = vld [vmem:[%s22 + $0x8] sm:$0xff]
    %v3458 = vld [vmem:[%s23] sm:$0x1]
    %v3460 = vlaneseq
    %v3461 = vshrl.u32 %v3460, 7
    %v3462 = vsub.s32 0, %v3461
    %v3463 = vrot.slane %v3458, %v3462
    %v3466 = vsel %vm347, %v3455, 0
    %3468 = vmatprep.subr.mxu0 0.0
    %3469 = vmatpush1.msra.mxu0 %v3456
    %3470 = vmatprep.subr.mxu0 0.0
    %3471 = vmatpush1.msra.mxu0 %v3457
    %3472 = vmatprep.subr.mxu0 0.0
    %3473 = vmatpush1.msra.mxu0 0.0
    %3474 = vmatprep.subr.mxu0 0.0
    %3475 = vmatpush1.msra.mxu0 0.0
    %3476 = vmatprep.subr.mxu0 0.0
    %3477 = vmatpush1.msra.mxu0 0.0
    %3478 = vmatprep.subr.mxu0 0.0
    %3479 = vmatpush1.msra.mxu0 0.0
    %3480 = vmatprep.subr.mxu0 0.0
    %3481 = vmatpush1.msra.mxu0 0.0
    %3482 = vmatprep.subr.mxu0 0.0
    %3483 = vmatpush1.msra.mxu0 0.0
    %3484 = vmatprep.subr.mxu0 0.0
    %3485 = vmatpush1.msra.mxu0 0.0
    %3486 = vmatprep.subr.mxu0 0.0
    %3487 = vmatpush1.msra.mxu0 0.0
    %3488 = vmatprep.subr.mxu0 0.0
    %3489 = vmatpush1.msra.mxu0 0.0
    %3490 = vmatprep.subr.mxu0 0.0
    %3491 = vmatpush1.msra.mxu0 0.0
    %3492 = vmatprep.subr.mxu0 0.0
    %3493 = vmatpush1.msra.mxu0 0.0
    %3494 = vmatprep.subr.mxu0 0.0
    %3495 = vmatpush1.msra.mxu0 0.0
    %3496 = vmatprep.subr.mxu0 0.0
    %3497 = vmatpush1.msra.mxu0 0.0
    %3498 = vmatprep.subr.mxu0 0.0
    %3499 = vmatpush1.msra.mxu0 0.0
    %3500 = vmatprep.subr.mxu0 0.0
    %3501 = vmatpush1.msra.mxu0 0.0
    %3502 = vmatprep.subr.mxu0 0.0
    %3503 = vmatpush1.msra.mxu0 0.0
    %3504 = vmatprep.subr.mxu0 0.0
    %3505 = vmatpush1.msra.mxu0 0.0
    %3506 = vmatprep.subr.mxu0 0.0
    %3507 = vmatpush1.msra.mxu0 0.0
    %3508 = vmatprep.subr.mxu0 0.0
    %3509 = vmatpush1.msra.mxu0 0.0
    %3510 = vmatprep.subr.mxu0 0.0
    %3511 = vmatpush1.msra.mxu0 0.0
    %3512 = vmatprep.subr.mxu0 0.0
    %3513 = vmatpush1.msra.mxu0 0.0
    %3514 = vmatprep.subr.mxu0 0.0
    %3515 = vmatpush1.msra.mxu0 0.0
    %3516 = vmatprep.subr.mxu0 0.0
    %3517 = vmatpush1.msra.mxu0 0.0
    %3518 = vmatprep.subr.mxu0 0.0
    %3519 = vmatpush1.msra.mxu0 0.0
    %3520 = vmatprep.subr.mxu0 0.0
    %3521 = vmatpush1.msra.mxu0 0.0
    %3522 = vmatprep.subr.mxu0 0.0
    %3523 = vmatpush1.msra.mxu0 0.0
    %3524 = vmatprep.subr.mxu0 0.0
    %3525 = vmatpush1.msra.mxu0 0.0
    %3526 = vmatprep.subr.mxu0 0.0
    %3527 = vmatpush1.msra.mxu0 0.0
    %3528 = vmatprep.subr.mxu0 0.0
    %3529 = vmatpush1.msra.mxu0 0.0
    %3530 = vmatprep.subr.mxu0 0.0
    %3531 = vmatpush1.msra.mxu0 0.0
    %3532 = vmatprep.mubr.f32.mxu0 0.0
    %3533 = vmatmul.mubr.f32.gmra.mrb[0].mxu0 %v3466
    %v3534 = vpop.f32.mrb[0].mxu0
    %v3535 = vadd.f32 %v3463, %v3534
    %v3536 = vpop.f32.mrb[0].mxu0
    %3537 = vdwg.mxu0
    %3538 = vst.msk [vmem:[#allocation4] sm:$0x3] %vm421, %v3535
    // Predicated region
    $region98: #{psiamese_forward.3} parent=1 // pred_check
      _
    $region99: #{psiamese_forward.3} parent=1 // pred_check_branch
      %3540 = sbr.rel (0) target = $region101
    $region100: #{psiamese_forward.3} parent=1 // pred_region
      %s3542 = ssub.s32 32, 32
      %3543 = vsyncadd [#allocation3], %s3542
      %s3545 = sshll.u32 [#allocation2], 4
      %s3546 = int_to_ptr.vmem [resolvable:$true] %s3545
      %3548 = dma.vmem_to_hbm [thread:$0]  %s3546, 32, %s24, [#allocation3]
    $region101: #{psiamese_forward.3} parent=1 // pred_fallthru
      _
    // Predicated region
    $region102: #{psiamese_forward.3} parent=1 // pred_check
      _
    $region103: #{psiamese_forward.3} parent=1 // pred_check_branch
      %3550 = sbr.rel (0) target = $region105
    $region104: #{psiamese_forward.3} parent=1 // pred_region
      %s3552 = ssub.s32 32, 32
      %3553 = vsyncadd [#allocation5], %s3552
      %s3555 = sshll.u32 [#allocation4], 4
      %s3556 = int_to_ptr.vmem [resolvable:$true] %s3555
      %3558 = dma.vmem_to_hbm [thread:$0]  %s3556, 32, %s25, [#allocation5]
    $region105: #{psiamese_forward.3} parent=1 // pred_fallthru
      _
    // Predicated region
    $region106: #{psiamese_forward.3} parent=1 // pred_check
      _
    $region107: #{psiamese_forward.3} parent=1 // pred_check_branch
      %3560 = sbr.rel (0) target = $region109
    $region108: #{psiamese_forward.3} parent=1 // pred_region
      %3561 = dma.done [#allocation3], 32
    $region109: #{psiamese_forward.3} parent=1 // pred_fallthru
      _
    // Predicated region
    $region110: #{psiamese_forward.3} parent=1 // pred_check
      _
    $region111: #{psiamese_forward.3} parent=1 // pred_check_branch
      %3563 = sbr.rel (0) target = $region113
    $region112: #{psiamese_forward.3} parent=1 // pred_region
      %3564 = dma.done [#allocation5], 32
    $region113: #{psiamese_forward.3} parent=1 // pred_fallthru
      _
    %3565 = vsyncpa [#allocation3], 1
    %3566 = vsyncpa [#allocation5], 1

</llo_original>
